<compile_context>
chip_gen: v7x
topology: tpu7x:2x2x1
jax: 0.10.0
libtpu: 0.0.40
codegen_flags: <defaults>
</compile_context>

<pallas_src>
import functools

import jax
import jax.numpy as jnp
from jax.experimental import pallas as pl
from jax.experimental.pallas import tpu as pltpu


def _round_up(n, m):
    return ((n + m - 1) // m) * m


# ----------------------------------------------------------------------------
# Weight-slab layout (shared by the one-time prepare step and the kernel)
# ----------------------------------------------------------------------------
def _slab_layout(D, L):
    # Column widths of each fused block; every block starts 128-lane aligned.
    widths = dict(
        phix=L,            # phi_x:  (D, L)            bias phi_x_b
        wx=9 * L,          # x_enc ->[enc|gru_ih|lstm_ih] bias [enc_b|gru_bi|lstm_bi+bh]
        wh=9 * L,          # h     ->[enc|gru_hh|lstm_hh] bias [0|gru_bh|0]
        phiz=L,            # phi_z:  (L, L)            bias phi_z_b
        wz=7 * L,          # z_enc ->[gru_ih|lstm_ih]  no bias
        wph=2 * L + D,     # h     ->[prior|dec_h]     bias [prior_b|dec_b]
        wpz=D,             # z_enc ->[dec_z]           no bias
    )
    off, cur = {}, 0
    for name in ("phix", "wx", "wh", "phiz", "wz", "wph", "wpz"):
        off[name] = cur
        cur += _round_up(widths[name], 128)
    total = _round_up(cur, 128)
    bias_row = max(D, L)
    rows = _round_up(bias_row + 1, 8)
    return off, total, bias_row, rows


def prepare_mvrnn_weights(p):
    """One-time host-side weight fusion into a single lane-dense slab."""
    D, L = p["phi_x_w"].shape
    off, total, bias_row, rows = _slab_layout(D, L)

    z2L = jnp.zeros((1, 2 * L), jnp.float32)
    z4L = jnp.zeros((1, 4 * L), jnp.float32)

    # [a, b] @ W == a @ W_top + b @ W_bot  -> concats become weight prep.
    w_x = jnp.concatenate([p["enc_w"][:L], p["gru_wi"][:L], p["lstm_wi"][:L]], axis=1)
    b_x = jnp.concatenate([p["enc_b"], p["gru_bi"], p["lstm_bi"] + p["lstm_bh"]], axis=1)
    w_h = jnp.concatenate([p["enc_w"][L:], p["gru_wh"], p["lstm_wh"]], axis=1)
    b_h = jnp.concatenate([z2L, p["gru_bh"], z4L], axis=1)   # GRU n-gate keeps hh bias
    w_z = jnp.concatenate([p["gru_wi"][L:], p["lstm_wi"][L:]], axis=1)
    w_ph = jnp.concatenate([p["prior_w"], p["dec_w"][L:]], axis=1)
    b_ph = jnp.concatenate([p["prior_b"], p["dec_b"]], axis=1)
    w_pz = p["dec_w"][:L]

    slab = jnp.zeros((rows, total), jnp.float32)

    def put(s, name, w, b=None):
        o = off[name]
        k, n = w.shape
        s = s.at[:k, o:o + n].set(w)
        if b is not None:
            s = s.at[bias_row:bias_row + 1, o:o + n].set(b)
        return s

    slab = put(slab, "phix", p["phi_x_w"], p["phi_x_b"])
    slab = put(slab, "wx", w_x, b_x)
    slab = put(slab, "wh", w_h, b_h)
    slab = put(slab, "phiz", p["phi_z_w"], p["phi_z_b"])
    slab = put(slab, "wz", w_z)
    slab = put(slab, "wph", w_ph, b_ph)
    slab = put(slab, "wpz", w_pz)

    return dict(slab=slab, D=int(D), L=int(L), off=off, bias_row=int(bias_row))


# ----------------------------------------------------------------------------
# Pallas kernel
# ----------------------------------------------------------------------------
def _mvrnn_kernel(
    x_ref, eps_ref, w_ref,           # inputs
    out_ref,                          # output (1, 3)
    xpre_ref, h_ref, enc_ref, zenc_ref,   # VMEM scratch
    *, T, B, Bp, D, L,
    o_phix, o_wx, o_wh, o_phiz, o_wz, o_wph, o_wpz,
    bias_row, alpha, beta,
):
    f32 = jnp.float32

    def w_at(off, k, n):          # weight block (k, n), read at the use site
        return w_ref[0:k, off:off + n]

    def b_at(off, n):             # bias row (1, n)
        return w_ref[bias_row:bias_row + 1, off:off + n]

    # ---- Hoisted, recurrence-independent work: one batched pass over T*Bp rows ----
    x_all = x_ref[...]                                               # (T*Bp, D)
    x_enc_all = jnp.maximum(
        jnp.dot(x_all, w_at(o_phix, D, L), preferred_element_type=f32)
        + b_at(o_phix, L), 0.0)
    # [enc_x (2L) | gru_ih_x (3L) | lstm_ih_x (4L)]  (biases folded in)
    xpre_ref[...] = (
        jnp.dot(x_enc_all, w_at(o_wx, L, 9 * L), preferred_element_type=f32)
        + b_at(o_wx, 9 * L))

    # Per-step biases hoisted as broadcast values (tiny, stays resident).
    b_wh = jnp.broadcast_to(b_at(o_wh, 9 * L), (Bp, 9 * L))
    b_phiz = jnp.broadcast_to(b_at(o_phiz, L), (Bp, L))

    h = jnp.zeros((Bp, L), f32)
    c = jnp.zeros((Bp, L), f32)

    # T is small & static -> fully unrolled; all slices are sublane-aligned statics.
    for t in range(T):
        r0 = t * Bp
        xe = xpre_ref[r0:r0 + Bp, :]           # (Bp, 9L)
        eps_t = eps_ref[r0:r0 + Bp, :]         # (Bp, L)
        h_ref[r0:r0 + Bp, :] = h               # h entering step t (for prior/decoder)

        # One fused matmul for every recurrence-consuming Linear on h:
        # [enc_h (2L) | gru_hh (3L) | lstm_hh (4L)]
        hh = jnp.dot(h, w_at(o_wh, L, 9 * L), preferred_element_type=f32) + b_wh

        # ---- Encoder + reparameterized sample ----
        enc = xe[:, 0:2 * L] + hh[:, 0:2 * L]
        enc_ref[r0:r0 + Bp, :] = enc            # mu_post | log_sigma_post, for the loss
        mu_post = enc[:, 0:L]
        sigma_post = jnp.exp(enc[:, L:2 * L])
        z = mu_post + sigma_post * eps_t

        # ---- phi_z + fused z_enc-consuming weights ----
        z_enc = jnp.maximum(
            jnp.dot(z, w_at(o_phiz, L, L), preferred_element_type=f32) + b_phiz, 0.0)
        zenc_ref[r0:r0 + Bp, :] = z_enc
        # [gru_ih_z (3L) | lstm_ih_z (4L)]
        zz = jnp.dot(z_enc, w_at(o_wz, L, 7 * L), preferred_element_type=f32)

        # ---- GRU branch (gate order r, z, n; n keeps split hidden bias) ----
        gi = xe[:, 2 * L:5 * L] + zz[:, 0:3 * L]
        gh = hh[:, 2 * L:5 * L]
        r_g = jax.nn.sigmoid(gi[:, 0:L] + gh[:, 0:L])
        z_g = jax.nn.sigmoid(gi[:, L:2 * L] + gh[:, L:2 * L])
        n_g = jnp.tanh(gi[:, 2 * L:3 * L] + r_g * gh[:, 2 * L:3 * L])
        h_gru = (1.0 - z_g) * n_g + z_g * h

        # ---- LSTMCell branch (gate order i, f, g, o; both biases pre-summed) ----
        gates = xe[:, 5 * L:9 * L] + zz[:, 3 * L:7 * L] + hh[:, 5 * L:9 * L]
        i_g = jax.nn.sigmoid(gates[:, 0:L])
        f_g = jax.nn.sigmoid(gates[:, L:2 * L])
        g_g = jnp.tanh(gates[:, 2 * L:3 * L])
        o_g = jax.nn.sigmoid(gates[:, 3 * L:4 * L])
        c = f_g * c + i_g * g_g
        h_lstm = o_g * jnp.tanh(c)

        # Hybrid state update (module uses alpha on BOTH branches).
        h = alpha * h_gru + alpha * h_lstm

    # ---- Post-loop: prior / decoder logits / KL / BCE, batched over all rows ----
    h_all = h_ref[...]                                   # (T*Bp, L)
    z_all = zenc_ref[...]                                # (T*Bp, L)
    enc_all = enc_ref[...]                               # (T*Bp, 2L)

    # [prior mu (L) | prior log_sigma (L) | dec_h (D)]  + dec_z half from z_enc
    post = (jnp.dot(h_all, w_at(o_wph, L, 2 * L + D), preferred_element_type=f32)
            + b_at(o_wph, 2 * L + D))
    mu_pri = post[:, 0:L]
    ls_pri = post[:, L:2 * L]
    logits = post[:, 2 * L:2 * L + D] + jnp.dot(
        z_all, w_at(o_wpz, L, D), preferred_element_type=f32)

    mu_post = enc_all[:, 0:L]
    ls_post = enc_all[:, L:2 * L]

    # Valid-row mask: first B rows of every padded Bp-row group.
    row_in_group = jax.lax.broadcasted_iota(jnp.int32, (Bp, 1), 0)
    mask_g = (row_in_group < B).astype(f32)              # (Bp, 1)
    mask = jnp.concatenate([mask_g] * T, axis=0)         # (T*Bp, 1)

    # KL(posterior || prior), elementwise then masked.
    diff = mu_post - mu_pri
    var_post = jnp.exp(2.0 * ls_post)
    inv_var_pri = jnp.exp(-2.0 * ls_pri)
    kl_elem = (2.0 * ls_pri - 2.0 * ls_post
               + (var_post + diff * diff) * inv_var_pri) * mask

    # BCE from logits via stable softplus (keeps torch.BCELoss -100 clamp parity
    # at this init scale; exact clamp behaviour differs only for saturated logits).
    x_tgt = x_ref[...]
    sp = jnp.maximum(logits, 0.0) + jnp.log(1.0 + jnp.exp(-jnp.abs(logits)))
    log_p = jnp.maximum(logits - sp, -100.0)
    log_1mp = jnp.maximum(-sp, -100.0)
    bce_elem = -(x_tgt * log_p + (1.0 - x_tgt) * log_1mp) * mask

    kl_sum = jnp.sum(jnp.sum(kl_elem, axis=1, keepdims=True), axis=0, keepdims=True)
    recon_sum = jnp.sum(jnp.sum(bce_elem, axis=1, keepdims=True), axis=0, keepdims=True)

    kl_total = 0.5 * (kl_sum - jnp.float32(L * T * B))   # (1, 1)
    denom = jnp.float32(T * 10)                          # seq_len * 10 (module constant)
    recon_loss = recon_sum / denom
    kl_div = kl_total / denom
    total_loss = recon_loss + jnp.float32(beta) * kl_div

    out_ref[...] = jnp.concatenate([total_loss, recon_loss, kl_div], axis=1)  # (1, 3)


# ----------------------------------------------------------------------------
# Wrapper: per-call work is only x/eps layout + the pallas_call
# ----------------------------------------------------------------------------
def mvrnn_forward(x_btd, eps_btl, prep, alpha=1.0, beta=1.0):
    """x_btd: (B, T, D) like the PyTorch module. Returns (total, recon, kl)."""
    x = jnp.asarray(x_btd, jnp.float32)
    eps = jnp.asarray(eps_btl, jnp.float32)
    B, T, D = x.shape
    L = eps.shape[-1]
    assert D == prep["D"] and L == prep["L"]

    Bp = _round_up(max(B, 8), 8)          # pad batch to full sublane groups
    # Time-major + sublane padding: row index = t * Bp + b.
    pad = ((0, 0), (0, Bp - B), (0, 0))
    x_pad = jnp.pad(jnp.transpose(x, (1, 0, 2)), pad).reshape(T * Bp, D)
    eps_pad = jnp.pad(jnp.transpose(eps, (1, 0, 2)), pad).reshape(T * Bp, L)

    off = prep["off"]
    kernel = functools.partial(
        _mvrnn_kernel, T=int(T), B=int(B), Bp=int(Bp), D=int(D), L=int(L),
        o_phix=off["phix"], o_wx=off["wx"], o_wh=off["wh"], o_phiz=off["phiz"],
        o_wz=off["wz"], o_wph=off["wph"], o_wpz=off["wpz"],
        bias_row=prep["bias_row"], alpha=float(alpha), beta=float(beta))

    vmem = pl.BlockSpec(memory_space=pltpu.MemorySpace.VMEM)
    out = pl.pallas_call(
        kernel,
        out_shape=jax.ShapeDtypeStruct((1, 3), jnp.float32),
        in_specs=[vmem, vmem, vmem],
        out_specs=vmem,
        scratch_shapes=[
            pltpu.VMEM((T * Bp, 9 * L), jnp.float32),   # x_pre (hoisted x contributions)
            pltpu.VMEM((T * Bp, L), jnp.float32),       # h entering each step
            pltpu.VMEM((T * Bp, 2 * L), jnp.float32),   # posterior mu | log_sigma
            pltpu.VMEM((T * Bp, L), jnp.float32),       # z_enc
        ],
    )(x_pad, eps_pad, prep["slab"])
    return out[0, 0], out[0, 1], out[0, 2]


# ----------------------------------------------------------------------------
# Deterministic parameter init (shapes from the module's __init__, pre-transposed)
# ----------------------------------------------------------------------------
def init_params(key, input_dim, latent_dim):
    D, L = input_dim, latent_dim
    ks = jax.random.split(key, 18)

    def w(k, shape, scale=0.1):
        return jax.random.normal(k, shape, dtype=jnp.float32) * scale

    return dict(
        phi_x_w=w(ks[0], (D, L)),          # Encoder.phi_x Linear(D -> L), transposed
        phi_x_b=w(ks[1], (1, L)),
        enc_w=w(ks[2], (2 * L, 2 * L)),    # Encoder.encoder_net Linear(2L -> 2L)
        enc_b=w(ks[3], (1, 2 * L)),
        prior_w=w(ks[4], (L, 2 * L)),      # Prior.prior_net Linear(L -> 2L)
        prior_b=w(ks[5], (1, 2 * L)),
        phi_z_w=w(ks[6], (L, L)),          # Decoder.phi_z Linear(L -> L)
        phi_z_b=w(ks[7], (1, L)),
        dec_w=w(ks[8], (2 * L, D)),        # Decoder.decoder_net Linear(2L -> D)
        dec_b=w(ks[9], (1, D)),
        gru_wi=w(ks[10], (2 * L, 3 * L)),  # nn.GRU weight_ih_l0^T (gates r,z,n)
        gru_wh=w(ks[11], (L, 3 * L)),      # nn.GRU weight_hh_l0^T
        gru_bi=w(ks[12], (1, 3 * L)),
        gru_bh=w(ks[13], (1, 3 * L)),
        lstm_wi=w(ks[14], (2 * L, 4 * L)), # nn.LSTMCell weight_ih^T (gates i,f,g,o)
        lstm_wh=w(ks[15], (L, 4 * L)),     # nn.LSTMCell weight_hh^T
        lstm_bi=w(ks[16], (1, 4 * L)),
        lstm_bh=w(ks[17], (1, 4 * L)),
    )


# ----------------------------------------------------------------------------
# Pure-JAX reference (faithful to the PyTorch module) for correctness check
# ----------------------------------------------------------------------------
def mvrnn_forward_ref(x_btd, eps_btl, p, alpha=1.0, beta=1.0):
    x = jnp.asarray(x_btd, jnp.float32)
    eps = jnp.asarray(eps_btl, jnp.float32)
    B, T, _D = x.shape
    L = eps.shape[-1]
    h = jnp.zeros((B, L), jnp.float32)
    c = jnp.zeros((B, L), jnp.float32)
    kl_acc = 0.0
    recon_acc = 0.0
    for t in range(T):
        x_t = x[:, t, :]
        e_t = eps[:, t, :]
        ph = h @ p["prior_w"] + p["prior_b"]
        mu_pri, ls_pri = ph[:, :L], ph[:, L:]
        x_enc = jnp.maximum(x_t @ p["phi_x_w"] + p["phi_x_b"], 0.0)
        enc = jnp.concatenate([x_enc, h], -1) @ p["enc_w"] + p["enc_b"]
        mu_post, ls_post = enc[:, :L], enc[:, L:]
        z = mu_post + jnp.exp(ls_post) * e_t
        z_enc = jnp.maximum(z @ p["phi_z_w"] + p["phi_z_b"], 0.0)
        logits = jnp.concatenate([z_enc, h], -1) @ p["dec_w"] + p["dec_b"]
        x_recon = jax.nn.sigmoid(logits)
        su = jnp.concatenate([x_enc, z_enc], -1)
        gi = su @ p["gru_wi"] + p["gru_bi"]
        gh = h @ p["gru_wh"] + p["gru_bh"]
        r = jax.nn.sigmoid(gi[:, :L] + gh[:, :L])
        zg = jax.nn.sigmoid(gi[:, L:2 * L] + gh[:, L:2 * L])
        n = jnp.tanh(gi[:, 2 * L:] + r * gh[:, 2 * L:])
        h_gru = (1 - zg) * n + zg * h
        gates = su @ p["lstm_wi"] + p["lstm_bi"] + h @ p["lstm_wh"] + p["lstm_bh"]
        ig = jax.nn.sigmoid(gates[:, :L])
        fg = jax.nn.sigmoid(gates[:, L:2 * L])
        gg = jnp.tanh(gates[:, 2 * L:3 * L])
        og = jax.nn.sigmoid(gates[:, 3 * L:])
        c = fg * c + ig * gg
        h_lstm = og * jnp.tanh(c)
        h = alpha * h_gru + alpha * h_lstm
        t1 = jnp.sum(2 * ls_pri - 2 * ls_post, -1)
        t2 = jnp.sum((jnp.exp(2 * ls_post) + (mu_post - mu_pri) ** 2)
                     / jnp.exp(2 * ls_pri), -1)
        kl_acc = kl_acc + jnp.sum(0.5 * (t1 + t2 - L))
        lp = jnp.maximum(jnp.log(x_recon), -100.0)
        l1p = jnp.maximum(jnp.log(1.0 - x_recon), -100.0)
        recon_acc = recon_acc + jnp.sum(-(x_t * lp + (1 - x_t) * l1p))
    recon_loss = recon_acc / (T * 10)
    kl_div = kl_acc / (T * 10)
    return recon_loss + beta * kl_div, recon_loss, kl_div


if __name__ == "__main__":
    B, T, D, L = 2, 8, 16, 32  # batch, seq_len, input_dim, latent_dim

    key = jax.random.PRNGKey(0)
    k_x, k_eps, k_p = jax.random.split(key, 3)
    x = jax.random.uniform(k_x, (B, T, D), dtype=jnp.float32)     # BCE targets in [0,1]
    eps = jax.random.normal(k_eps, (B, T, L), dtype=jnp.float32)  # reparam noise
    params = init_params(k_p, D, L)

    prep = prepare_mvrnn_weights(params)   # one-time weight fusion, off the call path

    total, recon, kl = mvrnn_forward(x, eps, prep, alpha=1.0, beta=1.0)
    jax.block_until_ready(total)

    total_r, recon_r, kl_r = mvrnn_forward_ref(x, eps, params, alpha=1.0, beta=1.0)
    assert jnp.allclose(total, total_r, rtol=1e-4, atol=1e-4), (total, total_r)
    assert jnp.allclose(recon, recon_r, rtol=1e-4, atol=1e-4), (recon, recon_r)
    assert jnp.allclose(kl, kl_r, rtol=1e-4, atol=1e-4), (kl, kl_r)

    print("KERNEL_OK")
</pallas_src>

<mosaic_0001>
module attributes {stable_mosaic.version = 11 : i64} {
  func.func @_mvrnn_kernel(%arg0: memref<64x16xf32, #tpu.memory_space<vmem>>, %arg1: memref<64x32xf32, #tpu.memory_space<vmem>>, %arg2: memref<40x1536xf32, #tpu.memory_space<vmem>>, %arg3: memref<1x3xf32, #tpu.memory_space<vmem>>, %arg4: memref<64x288xf32, #tpu.memory_space<vmem>>, %arg5: memref<64x32xf32, #tpu.memory_space<vmem>>, %arg6: memref<64x64xf32, #tpu.memory_space<vmem>>, %arg7: memref<64x32xf32, #tpu.memory_space<vmem>>) attributes {dimension_semantics = [], scalar_prefetch = 0 : i64, scratch_operands = 4 : i64, tpu.core_type = #tpu.core_type<tc>} {
    %c0 = arith.constant 0 : index
    %c0_0 = arith.constant 0 : index
    %0 = vector.load %arg0[%c0, %c0_0] : memref<64x16xf32, #tpu.memory_space<vmem>>, vector<64x16xf32>
    %c0_1 = arith.constant 0 : index
    %c0_2 = arith.constant 0 : index
    %1 = vector.load %arg2[%c0_1, %c0_2] : memref<40x1536xf32, #tpu.memory_space<vmem>>, vector<16x32xf32>
    %cst = arith.constant dense<0.000000e+00> : vector<64x32xf32>
    %2 = tpu.matmul %0, %1, %cst {dimension_numbers = #tpu.dot_dimension_numbers<[1], [0], [0], [1], [0, 0, 1, 1], [], []>} : vector<64x16xf32>, vector<16x32xf32>, vector<64x32xf32> -> vector<64x32xf32>
    %c32 = arith.constant 32 : index
    %c0_3 = arith.constant 0 : index
    %3 = vector.load %arg2[%c32, %c0_3] : memref<40x1536xf32, #tpu.memory_space<vmem>>, vector<1x32xf32>
    %4 = vector.broadcast %3 : vector<1x32xf32> to vector<64x32xf32>
    %5 = arith.addf %2, %4 : vector<64x32xf32>
    %cst_4 = arith.constant 0.000000e+00 : f32
    %6 = vector.broadcast %cst_4 : f32 to vector<64x32xf32>
    %7 = arith.maximumf %5, %6 : vector<64x32xf32>
    %c0_5 = arith.constant 0 : index
    %c128 = arith.constant 128 : index
    %8 = vector.load %arg2[%c0_5, %c128] : memref<40x1536xf32, #tpu.memory_space<vmem>>, vector<32x288xf32>
    %cst_6 = arith.constant dense<0.000000e+00> : vector<64x288xf32>
    %9 = tpu.matmul %7, %8, %cst_6 {dimension_numbers = #tpu.dot_dimension_numbers<[1], [0], [0], [1], [0, 0, 1, 1], [], []>} : vector<64x32xf32>, vector<32x288xf32>, vector<64x288xf32> -> vector<64x288xf32>
    %c32_7 = arith.constant 32 : index
    %c128_8 = arith.constant 128 : index
    %10 = vector.load %arg2[%c32_7, %c128_8] : memref<40x1536xf32, #tpu.memory_space<vmem>>, vector<1x288xf32>
    %11 = vector.broadcast %10 : vector<1x288xf32> to vector<64x288xf32>
    %12 = arith.addf %9, %11 : vector<64x288xf32>
    %c0_9 = arith.constant 0 : index
    %c0_10 = arith.constant 0 : index
    %13 = vector.load %arg4[%c0_9, %c0_10] : memref<64x288xf32, #tpu.memory_space<vmem>>, vector<64x288xf32>
    tpu.vector_store %arg4[%c0_9, %c0_10], %12 {strides = array<i32>} : memref<64x288xf32, #tpu.memory_space<vmem>>, vector<64x288xf32>,
    %c32_11 = arith.constant 32 : index
    %c512 = arith.constant 512 : index
    %14 = vector.load %arg2[%c32_11, %c512] : memref<40x1536xf32, #tpu.memory_space<vmem>>, vector<1x288xf32>
    %15 = vector.shape_cast %14 : vector<1x288xf32> to vector<1x288xf32>
    %16 = vector.broadcast %15 : vector<1x288xf32> to vector<8x288xf32>
    %c32_12 = arith.constant 32 : index
    %c896 = arith.constant 896 : index
    %17 = vector.load %arg2[%c32_12, %c896] : memref<40x1536xf32, #tpu.memory_space<vmem>>, vector<1x32xf32>
    %18 = vector.shape_cast %17 : vector<1x32xf32> to vector<1x32xf32>
    %19 = vector.broadcast %18 : vector<1x32xf32> to vector<8x32xf32>
    %cst_13 = arith.constant 0.000000e+00 : f32
    %20 = vector.broadcast %cst_13 : f32 to vector<8x32xf32>
    %cst_14 = arith.constant 0.000000e+00 : f32
    %21 = vector.broadcast %cst_14 : f32 to vector<8x32xf32>
    %c0_15 = arith.constant 0 : index
    %c0_16 = arith.constant 0 : index
    %22 = vector.load %arg4[%c0_15, %c0_16] : memref<64x288xf32, #tpu.memory_space<vmem>>, vector<8x288xf32>
    %c0_17 = arith.constant 0 : index
    %c0_18 = arith.constant 0 : index
    %23 = vector.load %arg1[%c0_17, %c0_18] : memref<64x32xf32, #tpu.memory_space<vmem>>, vector<8x32xf32>
    %c0_19 = arith.constant 0 : index
    %c0_20 = arith.constant 0 : index
    %24 = vector.load %arg5[%c0_19, %c0_20] : memref<64x32xf32, #tpu.memory_space<vmem>>, vector<8x32xf32>
    tpu.vector_store %arg5[%c0_19, %c0_20], %20 {strides = array<i32>} : memref<64x32xf32, #tpu.memory_space<vmem>>, vector<8x32xf32>,
    %c0_21 = arith.constant 0 : index
    %c512_22 = arith.constant 512 : index
    %25 = vector.load %arg2[%c0_21, %c512_22] : memref<40x1536xf32, #tpu.memory_space<vmem>>, vector<32x288xf32>
    %cst_23 = arith.constant dense<0.000000e+00> : vector<8x288xf32>
    %26 = tpu.matmul %20, %25, %cst_23 {dimension_numbers = #tpu.dot_dimension_numbers<[1], [0], [0], [1], [0, 0, 1, 1], [], []>} : vector<8x32xf32>, vector<32x288xf32>, vector<8x288xf32> -> vector<8x288xf32>
    %27 = arith.addf %26, %16 : vector<8x288xf32>
    %28 = vector.extract_strided_slice %22 {offsets = [0, 0], sizes = [8, 64], strides = [1, 1]} : vector<8x288xf32> to vector<8x64xf32>
    %29 = vector.extract_strided_slice %27 {offsets = [0, 0], sizes = [8, 64], strides = [1, 1]} : vector<8x288xf32> to vector<8x64xf32>
    %30 = arith.addf %28, %29 : vector<8x64xf32>
    %c0_24 = arith.constant 0 : index
    %c0_25 = arith.constant 0 : index
    %31 = vector.load %arg6[%c0_24, %c0_25] : memref<64x64xf32, #tpu.memory_space<vmem>>, vector<8x64xf32>
    tpu.vector_store %arg6[%c0_24, %c0_25], %30 {strides = array<i32>} : memref<64x64xf32, #tpu.memory_space<vmem>>, vector<8x64xf32>,
    %32 = vector.extract_strided_slice %30 {offsets = [0, 0], sizes = [8, 32], strides = [1, 1]} : vector<8x64xf32> to vector<8x32xf32>
    %33 = vector.extract_strided_slice %30 {offsets = [0, 32], sizes = [8, 32], strides = [1, 1]} : vector<8x64xf32> to vector<8x32xf32>
    %34 = math.exp %33 : vector<8x32xf32>
    %35 = arith.mulf %34, %23 : vector<8x32xf32>
    %36 = arith.addf %32, %35 : vector<8x32xf32>
    %c0_26 = arith.constant 0 : index
    %c896_27 = arith.constant 896 : index
    %37 = vector.load %arg2[%c0_26, %c896_27] : memref<40x1536xf32, #tpu.memory_space<vmem>>, vector<32x32xf32>
    %cst_28 = arith.constant dense<0.000000e+00> : vector<8x32xf32>
    %38 = tpu.matmul %36, %37, %cst_28 {dimension_numbers = #tpu.dot_dimension_numbers<[1], [0], [0], [1], [0, 0, 1, 1], [], []>} : vector<8x32xf32>, vector<32x32xf32>, vector<8x32xf32> -> vector<8x32xf32>
    %39 = arith.addf %38, %19 : vector<8x32xf32>
    %cst_29 = arith.constant 0.000000e+00 : f32
    %40 = vector.broadcast %cst_29 : f32 to vector<8x32xf32>
    %41 = arith.maximumf %39, %40 : vector<8x32xf32>
    %c0_30 = arith.constant 0 : index
    %c0_31 = arith.constant 0 : index
    %42 = vector.load %arg7[%c0_30, %c0_31] : memref<64x32xf32, #tpu.memory_space<vmem>>, vector<8x32xf32>
    tpu.vector_store %arg7[%c0_30, %c0_31], %41 {strides = array<i32>} : memref<64x32xf32, #tpu.memory_space<vmem>>, vector<8x32xf32>,
    %c0_32 = arith.constant 0 : index
    %c1024 = arith.constant 1024 : index
    %43 = vector.load %arg2[%c0_32, %c1024] : memref<40x1536xf32, #tpu.memory_space<vmem>>, vector<32x224xf32>
    %cst_33 = arith.constant dense<0.000000e+00> : vector<8x224xf32>
    %44 = tpu.matmul %41, %43, %cst_33 {dimension_numbers = #tpu.dot_dimension_numbers<[1], [0], [0], [1], [0, 0, 1, 1], [], []>} : vector<8x32xf32>, vector<32x224xf32>, vector<8x224xf32> -> vector<8x224xf32>
    %45 = vector.extract_strided_slice %22 {offsets = [0, 64], sizes = [8, 96], strides = [1, 1]} : vector<8x288xf32> to vector<8x96xf32>
    %46 = vector.extract_strided_slice %44 {offsets = [0, 0], sizes = [8, 96], strides = [1, 1]} : vector<8x224xf32> to vector<8x96xf32>
    %47 = arith.addf %45, %46 : vector<8x96xf32>
    %48 = vector.extract_strided_slice %27 {offsets = [0, 64], sizes = [8, 96], strides = [1, 1]} : vector<8x288xf32> to vector<8x96xf32>
    %49 = vector.extract_strided_slice %47 {offsets = [0, 0], sizes = [8, 32], strides = [1, 1]} : vector<8x96xf32> to vector<8x32xf32>
    %50 = vector.extract_strided_slice %48 {offsets = [0, 0], sizes = [8, 32], strides = [1, 1]} : vector<8x96xf32> to vector<8x32xf32>
    %51 = arith.addf %49, %50 : vector<8x32xf32>
    %52 = arith.negf %51 : vector<8x32xf32>
    %53 = math.exp %52 : vector<8x32xf32>
    %cst_34 = arith.constant 1.000000e+00 : f32
    %54 = vector.broadcast %cst_34 : f32 to vector<8x32xf32>
    %55 = arith.addf %54, %53 : vector<8x32xf32>
    %56 = arith.divf %54, %55 : vector<8x32xf32>
    %57 = vector.extract_strided_slice %47 {offsets = [0, 32], sizes = [8, 32], strides = [1, 1]} : vector<8x96xf32> to vector<8x32xf32>
    %58 = vector.extract_strided_slice %48 {offsets = [0, 32], sizes = [8, 32], strides = [1, 1]} : vector<8x96xf32> to vector<8x32xf32>
    %59 = arith.addf %57, %58 : vector<8x32xf32>
    %60 = arith.negf %59 : vector<8x32xf32>
    %61 = math.exp %60 : vector<8x32xf32>
    %cst_35 = arith.constant 1.000000e+00 : f32
    %62 = vector.broadcast %cst_35 : f32 to vector<8x32xf32>
    %63 = arith.addf %62, %61 : vector<8x32xf32>
    %64 = arith.divf %62, %63 : vector<8x32xf32>
    %65 = vector.extract_strided_slice %47 {offsets = [0, 64], sizes = [8, 32], strides = [1, 1]} : vector<8x96xf32> to vector<8x32xf32>
    %66 = vector.extract_strided_slice %48 {offsets = [0, 64], sizes = [8, 32], strides = [1, 1]} : vector<8x96xf32> to vector<8x32xf32>
    %67 = arith.mulf %56, %66 : vector<8x32xf32>
    %68 = arith.addf %65, %67 : vector<8x32xf32>
    %69 = math.tanh %68 : vector<8x32xf32>
    %cst_36 = arith.constant 1.000000e+00 : f32
    %70 = vector.broadcast %cst_36 : f32 to vector<8x32xf32>
    %71 = arith.subf %70, %64 : vector<8x32xf32>
    %72 = arith.mulf %71, %69 : vector<8x32xf32>
    %73 = arith.mulf %64, %20 : vector<8x32xf32>
    %74 = arith.addf %72, %73 : vector<8x32xf32>
    %75 = vector.extract_strided_slice %22 {offsets = [0, 160], sizes = [8, 128], strides = [1, 1]} : vector<8x288xf32> to vector<8x128xf32>
    %76 = vector.extract_strided_slice %44 {offsets = [0, 96], sizes = [8, 128], strides = [1, 1]} : vector<8x224xf32> to vector<8x128xf32>
    %77 = arith.addf %75, %76 : vector<8x128xf32>
    %78 = vector.extract_strided_slice %27 {offsets = [0, 160], sizes = [8, 128], strides = [1, 1]} : vector<8x288xf32> to vector<8x128xf32>
    %79 = arith.addf %77, %78 : vector<8x128xf32>
    %80 = vector.extract_strided_slice %79 {offsets = [0, 0], sizes = [8, 32], strides = [1, 1]} : vector<8x128xf32> to vector<8x32xf32>
    %81 = arith.negf %80 : vector<8x32xf32>
    %82 = math.exp %81 : vector<8x32xf32>
    %cst_37 = arith.constant 1.000000e+00 : f32
    %83 = vector.broadcast %cst_37 : f32 to vector<8x32xf32>
    %84 = arith.addf %83, %82 : vector<8x32xf32>
    %85 = arith.divf %83, %84 : vector<8x32xf32>
    %86 = vector.extract_strided_slice %79 {offsets = [0, 32], sizes = [8, 32], strides = [1, 1]} : vector<8x128xf32> to vector<8x32xf32>
    %87 = arith.negf %86 : vector<8x32xf32>
    %88 = math.exp %87 : vector<8x32xf32>
    %cst_38 = arith.constant 1.000000e+00 : f32
    %89 = vector.broadcast %cst_38 : f32 to vector<8x32xf32>
    %90 = arith.addf %89, %88 : vector<8x32xf32>
    %91 = arith.divf %89, %90 : vector<8x32xf32>
    %92 = vector.extract_strided_slice %79 {offsets = [0, 64], sizes = [8, 32], strides = [1, 1]} : vector<8x128xf32> to vector<8x32xf32>
    %93 = math.tanh %92 : vector<8x32xf32>
    %94 = vector.extract_strided_slice %79 {offsets = [0, 96], sizes = [8, 32], strides = [1, 1]} : vector<8x128xf32> to vector<8x32xf32>
    %95 = arith.negf %94 : vector<8x32xf32>
    %96 = math.exp %95 : vector<8x32xf32>
    %cst_39 = arith.constant 1.000000e+00 : f32
    %97 = vector.broadcast %cst_39 : f32 to vector<8x32xf32>
    %98 = arith.addf %97, %96 : vector<8x32xf32>
    %99 = arith.divf %97, %98 : vector<8x32xf32>
    %100 = arith.mulf %91, %21 : vector<8x32xf32>
    %101 = arith.mulf %85, %93 : vector<8x32xf32>
    %102 = arith.addf %100, %101 : vector<8x32xf32>
    %103 = math.tanh %102 : vector<8x32xf32>
    %104 = arith.mulf %99, %103 : vector<8x32xf32>
    %cst_40 = arith.constant 1.000000e+00 : f32
    %105 = vector.broadcast %cst_40 : f32 to vector<8x32xf32>
    %106 = arith.mulf %105, %74 : vector<8x32xf32>
    %cst_41 = arith.constant 1.000000e+00 : f32
    %107 = vector.broadcast %cst_41 : f32 to vector<8x32xf32>
    %108 = arith.mulf %107, %104 : vector<8x32xf32>
    %109 = arith.addf %106, %108 : vector<8x32xf32>
    %c8 = arith.constant 8 : index
    %c0_42 = arith.constant 0 : index
    %110 = vector.load %arg4[%c8, %c0_42] : memref<64x288xf32, #tpu.memory_space<vmem>>, vector<8x288xf32>
    %c8_43 = arith.constant 8 : index
    %c0_44 = arith.constant 0 : index
    %111 = vector.load %arg1[%c8_43, %c0_44] : memref<64x32xf32, #tpu.memory_space<vmem>>, vector<8x32xf32>
    %c8_45 = arith.constant 8 : index
    %c0_46 = arith.constant 0 : index
    %112 = vector.load %arg5[%c8_45, %c0_46] : memref<64x32xf32, #tpu.memory_space<vmem>>, vector<8x32xf32>
    tpu.vector_store %arg5[%c8_45, %c0_46], %109 {strides = array<i32>} : memref<64x32xf32, #tpu.memory_space<vmem>>, vector<8x32xf32>,
    %c0_47 = arith.constant 0 : index
    %c512_48 = arith.constant 512 : index
    %113 = vector.load %arg2[%c0_47, %c512_48] : memref<40x1536xf32, #tpu.memory_space<vmem>>, vector<32x288xf32>
    %cst_49 = arith.constant dense<0.000000e+00> : vector<8x288xf32>
    %114 = tpu.matmul %109, %113, %cst_49 {dimension_numbers = #tpu.dot_dimension_numbers<[1], [0], [0], [1], [0, 0, 1, 1], [], []>} : vector<8x32xf32>, vector<32x288xf32>, vector<8x288xf32> -> vector<8x288xf32>
    %115 = arith.addf %114, %16 : vector<8x288xf32>
    %116 = vector.extract_strided_slice %110 {offsets = [0, 0], sizes = [8, 64], strides = [1, 1]} : vector<8x288xf32> to vector<8x64xf32>
    %117 = vector.extract_strided_slice %115 {offsets = [0, 0], sizes = [8, 64], strides = [1, 1]} : vector<8x288xf32> to vector<8x64xf32>
    %118 = arith.addf %116, %117 : vector<8x64xf32>
    %c8_50 = arith.constant 8 : index
    %c0_51 = arith.constant 0 : index
    %119 = vector.load %arg6[%c8_50, %c0_51] : memref<64x64xf32, #tpu.memory_space<vmem>>, vector<8x64xf32>
    tpu.vector_store %arg6[%c8_50, %c0_51], %118 {strides = array<i32>} : memref<64x64xf32, #tpu.memory_space<vmem>>, vector<8x64xf32>,
    %120 = vector.extract_strided_slice %118 {offsets = [0, 0], sizes = [8, 32], strides = [1, 1]} : vector<8x64xf32> to vector<8x32xf32>
    %121 = vector.extract_strided_slice %118 {offsets = [0, 32], sizes = [8, 32], strides = [1, 1]} : vector<8x64xf32> to vector<8x32xf32>
    %122 = math.exp %121 : vector<8x32xf32>
    %123 = arith.mulf %122, %111 : vector<8x32xf32>
    %124 = arith.addf %120, %123 : vector<8x32xf32>
    %c0_52 = arith.constant 0 : index
    %c896_53 = arith.constant 896 : index
    %125 = vector.load %arg2[%c0_52, %c896_53] : memref<40x1536xf32, #tpu.memory_space<vmem>>, vector<32x32xf32>
    %cst_54 = arith.constant dense<0.000000e+00> : vector<8x32xf32>
    %126 = tpu.matmul %124, %125, %cst_54 {dimension_numbers = #tpu.dot_dimension_numbers<[1], [0], [0], [1], [0, 0, 1, 1], [], []>} : vector<8x32xf32>, vector<32x32xf32>, vector<8x32xf32> -> vector<8x32xf32>
    %127 = arith.addf %126, %19 : vector<8x32xf32>
    %cst_55 = arith.constant 0.000000e+00 : f32
    %128 = vector.broadcast %cst_55 : f32 to vector<8x32xf32>
    %129 = arith.maximumf %127, %128 : vector<8x32xf32>
    %c8_56 = arith.constant 8 : index
    %c0_57 = arith.constant 0 : index
    %130 = vector.load %arg7[%c8_56, %c0_57] : memref<64x32xf32, #tpu.memory_space<vmem>>, vector<8x32xf32>
    tpu.vector_store %arg7[%c8_56, %c0_57], %129 {strides = array<i32>} : memref<64x32xf32, #tpu.memory_space<vmem>>, vector<8x32xf32>,
    %c0_58 = arith.constant 0 : index
    %c1024_59 = arith.constant 1024 : index
    %131 = vector.load %arg2[%c0_58, %c1024_59] : memref<40x1536xf32, #tpu.memory_space<vmem>>, vector<32x224xf32>
    %cst_60 = arith.constant dense<0.000000e+00> : vector<8x224xf32>
    %132 = tpu.matmul %129, %131, %cst_60 {dimension_numbers = #tpu.dot_dimension_numbers<[1], [0], [0], [1], [0, 0, 1, 1], [], []>} : vector<8x32xf32>, vector<32x224xf32>, vector<8x224xf32> -> vector<8x224xf32>
    %133 = vector.extract_strided_slice %110 {offsets = [0, 64], sizes = [8, 96], strides = [1, 1]} : vector<8x288xf32> to vector<8x96xf32>
    %134 = vector.extract_strided_slice %132 {offsets = [0, 0], sizes = [8, 96], strides = [1, 1]} : vector<8x224xf32> to vector<8x96xf32>
    %135 = arith.addf %133, %134 : vector<8x96xf32>
    %136 = vector.extract_strided_slice %115 {offsets = [0, 64], sizes = [8, 96], strides = [1, 1]} : vector<8x288xf32> to vector<8x96xf32>
    %137 = vector.extract_strided_slice %135 {offsets = [0, 0], sizes = [8, 32], strides = [1, 1]} : vector<8x96xf32> to vector<8x32xf32>
    %138 = vector.extract_strided_slice %136 {offsets = [0, 0], sizes = [8, 32], strides = [1, 1]} : vector<8x96xf32> to vector<8x32xf32>
    %139 = arith.addf %137, %138 : vector<8x32xf32>
    %140 = arith.negf %139 : vector<8x32xf32>
    %141 = math.exp %140 : vector<8x32xf32>
    %cst_61 = arith.constant 1.000000e+00 : f32
    %142 = vector.broadcast %cst_61 : f32 to vector<8x32xf32>
    %143 = arith.addf %142, %141 : vector<8x32xf32>
    %144 = arith.divf %142, %143 : vector<8x32xf32>
    %145 = vector.extract_strided_slice %135 {offsets = [0, 32], sizes = [8, 32], strides = [1, 1]} : vector<8x96xf32> to vector<8x32xf32>
    %146 = vector.extract_strided_slice %136 {offsets = [0, 32], sizes = [8, 32], strides = [1, 1]} : vector<8x96xf32> to vector<8x32xf32>
    %147 = arith.addf %145, %146 : vector<8x32xf32>
    %148 = arith.negf %147 : vector<8x32xf32>
    %149 = math.exp %148 : vector<8x32xf32>
    %cst_62 = arith.constant 1.000000e+00 : f32
    %150 = vector.broadcast %cst_62 : f32 to vector<8x32xf32>
    %151 = arith.addf %150, %149 : vector<8x32xf32>
    %152 = arith.divf %150, %151 : vector<8x32xf32>
    %153 = vector.extract_strided_slice %135 {offsets = [0, 64], sizes = [8, 32], strides = [1, 1]} : vector<8x96xf32> to vector<8x32xf32>
    %154 = vector.extract_strided_slice %136 {offsets = [0, 64], sizes = [8, 32], strides = [1, 1]} : vector<8x96xf32> to vector<8x32xf32>
    %155 = arith.mulf %144, %154 : vector<8x32xf32>
    %156 = arith.addf %153, %155 : vector<8x32xf32>
    %157 = math.tanh %156 : vector<8x32xf32>
    %cst_63 = arith.constant 1.000000e+00 : f32
    %158 = vector.broadcast %cst_63 : f32 to vector<8x32xf32>
    %159 = arith.subf %158, %152 : vector<8x32xf32>
    %160 = arith.mulf %159, %157 : vector<8x32xf32>
    %161 = arith.mulf %152, %109 : vector<8x32xf32>
    %162 = arith.addf %160, %161 : vector<8x32xf32>
    %163 = vector.extract_strided_slice %110 {offsets = [0, 160], sizes = [8, 128], strides = [1, 1]} : vector<8x288xf32> to vector<8x128xf32>
    %164 = vector.extract_strided_slice %132 {offsets = [0, 96], sizes = [8, 128], strides = [1, 1]} : vector<8x224xf32> to vector<8x128xf32>
    %165 = arith.addf %163, %164 : vector<8x128xf32>
    %166 = vector.extract_strided_slice %115 {offsets = [0, 160], sizes = [8, 128], strides = [1, 1]} : vector<8x288xf32> to vector<8x128xf32>
    %167 = arith.addf %165, %166 : vector<8x128xf32>
    %168 = vector.extract_strided_slice %167 {offsets = [0, 0], sizes = [8, 32], strides = [1, 1]} : vector<8x128xf32> to vector<8x32xf32>
    %169 = arith.negf %168 : vector<8x32xf32>
    %170 = math.exp %169 : vector<8x32xf32>
    %cst_64 = arith.constant 1.000000e+00 : f32
    %171 = vector.broadcast %cst_64 : f32 to vector<8x32xf32>
    %172 = arith.addf %171, %170 : vector<8x32xf32>
    %173 = arith.divf %171, %172 : vector<8x32xf32>
    %174 = vector.extract_strided_slice %167 {offsets = [0, 32], sizes = [8, 32], strides = [1, 1]} : vector<8x128xf32> to vector<8x32xf32>
    %175 = arith.negf %174 : vector<8x32xf32>
    %176 = math.exp %175 : vector<8x32xf32>
    %cst_65 = arith.constant 1.000000e+00 : f32
    %177 = vector.broadcast %cst_65 : f32 to vector<8x32xf32>
    %178 = arith.addf %177, %176 : vector<8x32xf32>
    %179 = arith.divf %177, %178 : vector<8x32xf32>
    %180 = vector.extract_strided_slice %167 {offsets = [0, 64], sizes = [8, 32], strides = [1, 1]} : vector<8x128xf32> to vector<8x32xf32>
    %181 = math.tanh %180 : vector<8x32xf32>
    %182 = vector.extract_strided_slice %167 {offsets = [0, 96], sizes = [8, 32], strides = [1, 1]} : vector<8x128xf32> to vector<8x32xf32>
    %183 = arith.negf %182 : vector<8x32xf32>
    %184 = math.exp %183 : vector<8x32xf32>
    %cst_66 = arith.constant 1.000000e+00 : f32
    %185 = vector.broadcast %cst_66 : f32 to vector<8x32xf32>
    %186 = arith.addf %185, %184 : vector<8x32xf32>
    %187 = arith.divf %185, %186 : vector<8x32xf32>
    %188 = arith.mulf %179, %102 : vector<8x32xf32>
    %189 = arith.mulf %173, %181 : vector<8x32xf32>
    %190 = arith.addf %188, %189 : vector<8x32xf32>
    %191 = math.tanh %190 : vector<8x32xf32>
    %192 = arith.mulf %187, %191 : vector<8x32xf32>
    %cst_67 = arith.constant 1.000000e+00 : f32
    %193 = vector.broadcast %cst_67 : f32 to vector<8x32xf32>
    %194 = arith.mulf %193, %162 : vector<8x32xf32>
    %cst_68 = arith.constant 1.000000e+00 : f32
    %195 = vector.broadcast %cst_68 : f32 to vector<8x32xf32>
    %196 = arith.mulf %195, %192 : vector<8x32xf32>
    %197 = arith.addf %194, %196 : vector<8x32xf32>
    %c16 = arith.constant 16 : index
    %c0_69 = arith.constant 0 : index
    %198 = vector.load %arg4[%c16, %c0_69] : memref<64x288xf32, #tpu.memory_space<vmem>>, vector<8x288xf32>
    %c16_70 = arith.constant 16 : index
    %c0_71 = arith.constant 0 : index
    %199 = vector.load %arg1[%c16_70, %c0_71] : memref<64x32xf32, #tpu.memory_space<vmem>>, vector<8x32xf32>
    %c16_72 = arith.constant 16 : index
    %c0_73 = arith.constant 0 : index
    %200 = vector.load %arg5[%c16_72, %c0_73] : memref<64x32xf32, #tpu.memory_space<vmem>>, vector<8x32xf32>
    tpu.vector_store %arg5[%c16_72, %c0_73], %197 {strides = array<i32>} : memref<64x32xf32, #tpu.memory_space<vmem>>, vector<8x32xf32>,
    %c0_74 = arith.constant 0 : index
    %c512_75 = arith.constant 512 : index
    %201 = vector.load %arg2[%c0_74, %c512_75] : memref<40x1536xf32, #tpu.memory_space<vmem>>, vector<32x288xf32>
    %cst_76 = arith.constant dense<0.000000e+00> : vector<8x288xf32>
    %202 = tpu.matmul %197, %201, %cst_76 {dimension_numbers = #tpu.dot_dimension_numbers<[1], [0], [0], [1], [0, 0, 1, 1], [], []>} : vector<8x32xf32>, vector<32x288xf32>, vector<8x288xf32> -> vector<8x288xf32>
    %203 = arith.addf %202, %16 : vector<8x288xf32>
    %204 = vector.extract_strided_slice %198 {offsets = [0, 0], sizes = [8, 64], strides = [1, 1]} : vector<8x288xf32> to vector<8x64xf32>
    %205 = vector.extract_strided_slice %203 {offsets = [0, 0], sizes = [8, 64], strides = [1, 1]} : vector<8x288xf32> to vector<8x64xf32>
    %206 = arith.addf %204, %205 : vector<8x64xf32>
    %c16_77 = arith.constant 16 : index
    %c0_78 = arith.constant 0 : index
    %207 = vector.load %arg6[%c16_77, %c0_78] : memref<64x64xf32, #tpu.memory_space<vmem>>, vector<8x64xf32>
    tpu.vector_store %arg6[%c16_77, %c0_78], %206 {strides = array<i32>} : memref<64x64xf32, #tpu.memory_space<vmem>>, vector<8x64xf32>,
    %208 = vector.extract_strided_slice %206 {offsets = [0, 0], sizes = [8, 32], strides = [1, 1]} : vector<8x64xf32> to vector<8x32xf32>
    %209 = vector.extract_strided_slice %206 {offsets = [0, 32], sizes = [8, 32], strides = [1, 1]} : vector<8x64xf32> to vector<8x32xf32>
    %210 = math.exp %209 : vector<8x32xf32>
    %211 = arith.mulf %210, %199 : vector<8x32xf32>
    %212 = arith.addf %208, %211 : vector<8x32xf32>
    %c0_79 = arith.constant 0 : index
    %c896_80 = arith.constant 896 : index
    %213 = vector.load %arg2[%c0_79, %c896_80] : memref<40x1536xf32, #tpu.memory_space<vmem>>, vector<32x32xf32>
    %cst_81 = arith.constant dense<0.000000e+00> : vector<8x32xf32>
    %214 = tpu.matmul %212, %213, %cst_81 {dimension_numbers = #tpu.dot_dimension_numbers<[1], [0], [0], [1], [0, 0, 1, 1], [], []>} : vector<8x32xf32>, vector<32x32xf32>, vector<8x32xf32> -> vector<8x32xf32>
    %215 = arith.addf %214, %19 : vector<8x32xf32>
    %cst_82 = arith.constant 0.000000e+00 : f32
    %216 = vector.broadcast %cst_82 : f32 to vector<8x32xf32>
    %217 = arith.maximumf %215, %216 : vector<8x32xf32>
    %c16_83 = arith.constant 16 : index
    %c0_84 = arith.constant 0 : index
    %218 = vector.load %arg7[%c16_83, %c0_84] : memref<64x32xf32, #tpu.memory_space<vmem>>, vector<8x32xf32>
    tpu.vector_store %arg7[%c16_83, %c0_84], %217 {strides = array<i32>} : memref<64x32xf32, #tpu.memory_space<vmem>>, vector<8x32xf32>,
    %c0_85 = arith.constant 0 : index
    %c1024_86 = arith.constant 1024 : index
    %219 = vector.load %arg2[%c0_85, %c1024_86] : memref<40x1536xf32, #tpu.memory_space<vmem>>, vector<32x224xf32>
    %cst_87 = arith.constant dense<0.000000e+00> : vector<8x224xf32>
    %220 = tpu.matmul %217, %219, %cst_87 {dimension_numbers = #tpu.dot_dimension_numbers<[1], [0], [0], [1], [0, 0, 1, 1], [], []>} : vector<8x32xf32>, vector<32x224xf32>, vector<8x224xf32> -> vector<8x224xf32>
    %221 = vector.extract_strided_slice %198 {offsets = [0, 64], sizes = [8, 96], strides = [1, 1]} : vector<8x288xf32> to vector<8x96xf32>
    %222 = vector.extract_strided_slice %220 {offsets = [0, 0], sizes = [8, 96], strides = [1, 1]} : vector<8x224xf32> to vector<8x96xf32>
    %223 = arith.addf %221, %222 : vector<8x96xf32>
    %224 = vector.extract_strided_slice %203 {offsets = [0, 64], sizes = [8, 96], strides = [1, 1]} : vector<8x288xf32> to vector<8x96xf32>
    %225 = vector.extract_strided_slice %223 {offsets = [0, 0], sizes = [8, 32], strides = [1, 1]} : vector<8x96xf32> to vector<8x32xf32>
    %226 = vector.extract_strided_slice %224 {offsets = [0, 0], sizes = [8, 32], strides = [1, 1]} : vector<8x96xf32> to vector<8x32xf32>
    %227 = arith.addf %225, %226 : vector<8x32xf32>
    %228 = arith.negf %227 : vector<8x32xf32>
    %229 = math.exp %228 : vector<8x32xf32>
    %cst_88 = arith.constant 1.000000e+00 : f32
    %230 = vector.broadcast %cst_88 : f32 to vector<8x32xf32>
    %231 = arith.addf %230, %229 : vector<8x32xf32>
    %232 = arith.divf %230, %231 : vector<8x32xf32>
    %233 = vector.extract_strided_slice %223 {offsets = [0, 32], sizes = [8, 32], strides = [1, 1]} : vector<8x96xf32> to vector<8x32xf32>
    %234 = vector.extract_strided_slice %224 {offsets = [0, 32], sizes = [8, 32], strides = [1, 1]} : vector<8x96xf32> to vector<8x32xf32>
    %235 = arith.addf %233, %234 : vector<8x32xf32>
    %236 = arith.negf %235 : vector<8x32xf32>
    %237 = math.exp %236 : vector<8x32xf32>
    %cst_89 = arith.constant 1.000000e+00 : f32
    %238 = vector.broadcast %cst_89 : f32 to vector<8x32xf32>
    %239 = arith.addf %238, %237 : vector<8x32xf32>
    %240 = arith.divf %238, %239 : vector<8x32xf32>
    %241 = vector.extract_strided_slice %223 {offsets = [0, 64], sizes = [8, 32], strides = [1, 1]} : vector<8x96xf32> to vector<8x32xf32>
    %242 = vector.extract_strided_slice %224 {offsets = [0, 64], sizes = [8, 32], strides = [1, 1]} : vector<8x96xf32> to vector<8x32xf32>
    %243 = arith.mulf %232, %242 : vector<8x32xf32>
    %244 = arith.addf %241, %243 : vector<8x32xf32>
    %245 = math.tanh %244 : vector<8x32xf32>
    %cst_90 = arith.constant 1.000000e+00 : f32
    %246 = vector.broadcast %cst_90 : f32 to vector<8x32xf32>
    %247 = arith.subf %246, %240 : vector<8x32xf32>
    %248 = arith.mulf %247, %245 : vector<8x32xf32>
    %249 = arith.mulf %240, %197 : vector<8x32xf32>
    %250 = arith.addf %248, %249 : vector<8x32xf32>
    %251 = vector.extract_strided_slice %198 {offsets = [0, 160], sizes = [8, 128], strides = [1, 1]} : vector<8x288xf32> to vector<8x128xf32>
    %252 = vector.extract_strided_slice %220 {offsets = [0, 96], sizes = [8, 128], strides = [1, 1]} : vector<8x224xf32> to vector<8x128xf32>
    %253 = arith.addf %251, %252 : vector<8x128xf32>
    %254 = vector.extract_strided_slice %203 {offsets = [0, 160], sizes = [8, 128], strides = [1, 1]} : vector<8x288xf32> to vector<8x128xf32>
    %255 = arith.addf %253, %254 : vector<8x128xf32>
    %256 = vector.extract_strided_slice %255 {offsets = [0, 0], sizes = [8, 32], strides = [1, 1]} : vector<8x128xf32> to vector<8x32xf32>
    %257 = arith.negf %256 : vector<8x32xf32>
    %258 = math.exp %257 : vector<8x32xf32>
    %cst_91 = arith.constant 1.000000e+00 : f32
    %259 = vector.broadcast %cst_91 : f32 to vector<8x32xf32>
    %260 = arith.addf %259, %258 : vector<8x32xf32>
    %261 = arith.divf %259, %260 : vector<8x32xf32>
    %262 = vector.extract_strided_slice %255 {offsets = [0, 32], sizes = [8, 32], strides = [1, 1]} : vector<8x128xf32> to vector<8x32xf32>
    %263 = arith.negf %262 : vector<8x32xf32>
    %264 = math.exp %263 : vector<8x32xf32>
    %cst_92 = arith.constant 1.000000e+00 : f32
    %265 = vector.broadcast %cst_92 : f32 to vector<8x32xf32>
    %266 = arith.addf %265, %264 : vector<8x32xf32>
    %267 = arith.divf %265, %266 : vector<8x32xf32>
    %268 = vector.extract_strided_slice %255 {offsets = [0, 64], sizes = [8, 32], strides = [1, 1]} : vector<8x128xf32> to vector<8x32xf32>
    %269 = math.tanh %268 : vector<8x32xf32>
    %270 = vector.extract_strided_slice %255 {offsets = [0, 96], sizes = [8, 32], strides = [1, 1]} : vector<8x128xf32> to vector<8x32xf32>
    %271 = arith.negf %270 : vector<8x32xf32>
    %272 = math.exp %271 : vector<8x32xf32>
    %cst_93 = arith.constant 1.000000e+00 : f32
    %273 = vector.broadcast %cst_93 : f32 to vector<8x32xf32>
    %274 = arith.addf %273, %272 : vector<8x32xf32>
    %275 = arith.divf %273, %274 : vector<8x32xf32>
    %276 = arith.mulf %267, %190 : vector<8x32xf32>
    %277 = arith.mulf %261, %269 : vector<8x32xf32>
    %278 = arith.addf %276, %277 : vector<8x32xf32>
    %279 = math.tanh %278 : vector<8x32xf32>
    %280 = arith.mulf %275, %279 : vector<8x32xf32>
    %cst_94 = arith.constant 1.000000e+00 : f32
    %281 = vector.broadcast %cst_94 : f32 to vector<8x32xf32>
    %282 = arith.mulf %281, %250 : vector<8x32xf32>
    %cst_95 = arith.constant 1.000000e+00 : f32
    %283 = vector.broadcast %cst_95 : f32 to vector<8x32xf32>
    %284 = arith.mulf %283, %280 : vector<8x32xf32>
    %285 = arith.addf %282, %284 : vector<8x32xf32>
    %c24 = arith.constant 24 : index
    %c0_96 = arith.constant 0 : index
    %286 = vector.load %arg4[%c24, %c0_96] : memref<64x288xf32, #tpu.memory_space<vmem>>, vector<8x288xf32>
    %c24_97 = arith.constant 24 : index
    %c0_98 = arith.constant 0 : index
    %287 = vector.load %arg1[%c24_97, %c0_98] : memref<64x32xf32, #tpu.memory_space<vmem>>, vector<8x32xf32>
    %c24_99 = arith.constant 24 : index
    %c0_100 = arith.constant 0 : index
    %288 = vector.load %arg5[%c24_99, %c0_100] : memref<64x32xf32, #tpu.memory_space<vmem>>, vector<8x32xf32>
    tpu.vector_store %arg5[%c24_99, %c0_100], %285 {strides = array<i32>} : memref<64x32xf32, #tpu.memory_space<vmem>>, vector<8x32xf32>,
    %c0_101 = arith.constant 0 : index
    %c512_102 = arith.constant 512 : index
    %289 = vector.load %arg2[%c0_101, %c512_102] : memref<40x1536xf32, #tpu.memory_space<vmem>>, vector<32x288xf32>
    %cst_103 = arith.constant dense<0.000000e+00> : vector<8x288xf32>
    %290 = tpu.matmul %285, %289, %cst_103 {dimension_numbers = #tpu.dot_dimension_numbers<[1], [0], [0], [1], [0, 0, 1, 1], [], []>} : vector<8x32xf32>, vector<32x288xf32>, vector<8x288xf32> -> vector<8x288xf32>
    %291 = arith.addf %290, %16 : vector<8x288xf32>
    %292 = vector.extract_strided_slice %286 {offsets = [0, 0], sizes = [8, 64], strides = [1, 1]} : vector<8x288xf32> to vector<8x64xf32>
    %293 = vector.extract_strided_slice %291 {offsets = [0, 0], sizes = [8, 64], strides = [1, 1]} : vector<8x288xf32> to vector<8x64xf32>
    %294 = arith.addf %292, %293 : vector<8x64xf32>
    %c24_104 = arith.constant 24 : index
    %c0_105 = arith.constant 0 : index
    %295 = vector.load %arg6[%c24_104, %c0_105] : memref<64x64xf32, #tpu.memory_space<vmem>>, vector<8x64xf32>
    tpu.vector_store %arg6[%c24_104, %c0_105], %294 {strides = array<i32>} : memref<64x64xf32, #tpu.memory_space<vmem>>, vector<8x64xf32>,
    %296 = vector.extract_strided_slice %294 {offsets = [0, 0], sizes = [8, 32], strides = [1, 1]} : vector<8x64xf32> to vector<8x32xf32>
    %297 = vector.extract_strided_slice %294 {offsets = [0, 32], sizes = [8, 32], strides = [1, 1]} : vector<8x64xf32> to vector<8x32xf32>
    %298 = math.exp %297 : vector<8x32xf32>
    %299 = arith.mulf %298, %287 : vector<8x32xf32>
    %300 = arith.addf %296, %299 : vector<8x32xf32>
    %c0_106 = arith.constant 0 : index
    %c896_107 = arith.constant 896 : index
    %301 = vector.load %arg2[%c0_106, %c896_107] : memref<40x1536xf32, #tpu.memory_space<vmem>>, vector<32x32xf32>
    %cst_108 = arith.constant dense<0.000000e+00> : vector<8x32xf32>
    %302 = tpu.matmul %300, %301, %cst_108 {dimension_numbers = #tpu.dot_dimension_numbers<[1], [0], [0], [1], [0, 0, 1, 1], [], []>} : vector<8x32xf32>, vector<32x32xf32>, vector<8x32xf32> -> vector<8x32xf32>
    %303 = arith.addf %302, %19 : vector<8x32xf32>
    %cst_109 = arith.constant 0.000000e+00 : f32
    %304 = vector.broadcast %cst_109 : f32 to vector<8x32xf32>
    %305 = arith.maximumf %303, %304 : vector<8x32xf32>
    %c24_110 = arith.constant 24 : index
    %c0_111 = arith.constant 0 : index
    %306 = vector.load %arg7[%c24_110, %c0_111] : memref<64x32xf32, #tpu.memory_space<vmem>>, vector<8x32xf32>
    tpu.vector_store %arg7[%c24_110, %c0_111], %305 {strides = array<i32>} : memref<64x32xf32, #tpu.memory_space<vmem>>, vector<8x32xf32>,
    %c0_112 = arith.constant 0 : index
    %c1024_113 = arith.constant 1024 : index
    %307 = vector.load %arg2[%c0_112, %c1024_113] : memref<40x1536xf32, #tpu.memory_space<vmem>>, vector<32x224xf32>
    %cst_114 = arith.constant dense<0.000000e+00> : vector<8x224xf32>
    %308 = tpu.matmul %305, %307, %cst_114 {dimension_numbers = #tpu.dot_dimension_numbers<[1], [0], [0], [1], [0, 0, 1, 1], [], []>} : vector<8x32xf32>, vector<32x224xf32>, vector<8x224xf32> -> vector<8x224xf32>
    %309 = vector.extract_strided_slice %286 {offsets = [0, 64], sizes = [8, 96], strides = [1, 1]} : vector<8x288xf32> to vector<8x96xf32>
    %310 = vector.extract_strided_slice %308 {offsets = [0, 0], sizes = [8, 96], strides = [1, 1]} : vector<8x224xf32> to vector<8x96xf32>
    %311 = arith.addf %309, %310 : vector<8x96xf32>
    %312 = vector.extract_strided_slice %291 {offsets = [0, 64], sizes = [8, 96], strides = [1, 1]} : vector<8x288xf32> to vector<8x96xf32>
    %313 = vector.extract_strided_slice %311 {offsets = [0, 0], sizes = [8, 32], strides = [1, 1]} : vector<8x96xf32> to vector<8x32xf32>
    %314 = vector.extract_strided_slice %312 {offsets = [0, 0], sizes = [8, 32], strides = [1, 1]} : vector<8x96xf32> to vector<8x32xf32>
    %315 = arith.addf %313, %314 : vector<8x32xf32>
    %316 = arith.negf %315 : vector<8x32xf32>
    %317 = math.exp %316 : vector<8x32xf32>
    %cst_115 = arith.constant 1.000000e+00 : f32
    %318 = vector.broadcast %cst_115 : f32 to vector<8x32xf32>
    %319 = arith.addf %318, %317 : vector<8x32xf32>
    %320 = arith.divf %318, %319 : vector<8x32xf32>
    %321 = vector.extract_strided_slice %311 {offsets = [0, 32], sizes = [8, 32], strides = [1, 1]} : vector<8x96xf32> to vector<8x32xf32>
    %322 = vector.extract_strided_slice %312 {offsets = [0, 32], sizes = [8, 32], strides = [1, 1]} : vector<8x96xf32> to vector<8x32xf32>
    %323 = arith.addf %321, %322 : vector<8x32xf32>
    %324 = arith.negf %323 : vector<8x32xf32>
    %325 = math.exp %324 : vector<8x32xf32>
    %cst_116 = arith.constant 1.000000e+00 : f32
    %326 = vector.broadcast %cst_116 : f32 to vector<8x32xf32>
    %327 = arith.addf %326, %325 : vector<8x32xf32>
    %328 = arith.divf %326, %327 : vector<8x32xf32>
    %329 = vector.extract_strided_slice %311 {offsets = [0, 64], sizes = [8, 32], strides = [1, 1]} : vector<8x96xf32> to vector<8x32xf32>
    %330 = vector.extract_strided_slice %312 {offsets = [0, 64], sizes = [8, 32], strides = [1, 1]} : vector<8x96xf32> to vector<8x32xf32>
    %331 = arith.mulf %320, %330 : vector<8x32xf32>
    %332 = arith.addf %329, %331 : vector<8x32xf32>
    %333 = math.tanh %332 : vector<8x32xf32>
    %cst_117 = arith.constant 1.000000e+00 : f32
    %334 = vector.broadcast %cst_117 : f32 to vector<8x32xf32>
    %335 = arith.subf %334, %328 : vector<8x32xf32>
    %336 = arith.mulf %335, %333 : vector<8x32xf32>
    %337 = arith.mulf %328, %285 : vector<8x32xf32>
    %338 = arith.addf %336, %337 : vector<8x32xf32>
    %339 = vector.extract_strided_slice %286 {offsets = [0, 160], sizes = [8, 128], strides = [1, 1]} : vector<8x288xf32> to vector<8x128xf32>
    %340 = vector.extract_strided_slice %308 {offsets = [0, 96], sizes = [8, 128], strides = [1, 1]} : vector<8x224xf32> to vector<8x128xf32>
    %341 = arith.addf %339, %340 : vector<8x128xf32>
    %342 = vector.extract_strided_slice %291 {offsets = [0, 160], sizes = [8, 128], strides = [1, 1]} : vector<8x288xf32> to vector<8x128xf32>
    %343 = arith.addf %341, %342 : vector<8x128xf32>
    %344 = vector.extract_strided_slice %343 {offsets = [0, 0], sizes = [8, 32], strides = [1, 1]} : vector<8x128xf32> to vector<8x32xf32>
    %345 = arith.negf %344 : vector<8x32xf32>
    %346 = math.exp %345 : vector<8x32xf32>
    %cst_118 = arith.constant 1.000000e+00 : f32
    %347 = vector.broadcast %cst_118 : f32 to vector<8x32xf32>
    %348 = arith.addf %347, %346 : vector<8x32xf32>
    %349 = arith.divf %347, %348 : vector<8x32xf32>
    %350 = vector.extract_strided_slice %343 {offsets = [0, 32], sizes = [8, 32], strides = [1, 1]} : vector<8x128xf32> to vector<8x32xf32>
    %351 = arith.negf %350 : vector<8x32xf32>
    %352 = math.exp %351 : vector<8x32xf32>
    %cst_119 = arith.constant 1.000000e+00 : f32
    %353 = vector.broadcast %cst_119 : f32 to vector<8x32xf32>
    %354 = arith.addf %353, %352 : vector<8x32xf32>
    %355 = arith.divf %353, %354 : vector<8x32xf32>
    %356 = vector.extract_strided_slice %343 {offsets = [0, 64], sizes = [8, 32], strides = [1, 1]} : vector<8x128xf32> to vector<8x32xf32>
    %357 = math.tanh %356 : vector<8x32xf32>
    %358 = vector.extract_strided_slice %343 {offsets = [0, 96], sizes = [8, 32], strides = [1, 1]} : vector<8x128xf32> to vector<8x32xf32>
    %359 = arith.negf %358 : vector<8x32xf32>
    %360 = math.exp %359 : vector<8x32xf32>
    %cst_120 = arith.constant 1.000000e+00 : f32
    %361 = vector.broadcast %cst_120 : f32 to vector<8x32xf32>
    %362 = arith.addf %361, %360 : vector<8x32xf32>
    %363 = arith.divf %361, %362 : vector<8x32xf32>
    %364 = arith.mulf %355, %278 : vector<8x32xf32>
    %365 = arith.mulf %349, %357 : vector<8x32xf32>
    %366 = arith.addf %364, %365 : vector<8x32xf32>
    %367 = math.tanh %366 : vector<8x32xf32>
    %368 = arith.mulf %363, %367 : vector<8x32xf32>
    %cst_121 = arith.constant 1.000000e+00 : f32
    %369 = vector.broadcast %cst_121 : f32 to vector<8x32xf32>
    %370 = arith.mulf %369, %338 : vector<8x32xf32>
    %cst_122 = arith.constant 1.000000e+00 : f32
    %371 = vector.broadcast %cst_122 : f32 to vector<8x32xf32>
    %372 = arith.mulf %371, %368 : vector<8x32xf32>
    %373 = arith.addf %370, %372 : vector<8x32xf32>
    %c32_123 = arith.constant 32 : index
    %c0_124 = arith.constant 0 : index
    %374 = vector.load %arg4[%c32_123, %c0_124] : memref<64x288xf32, #tpu.memory_space<vmem>>, vector<8x288xf32>
    %c32_125 = arith.constant 32 : index
    %c0_126 = arith.constant 0 : index
    %375 = vector.load %arg1[%c32_125, %c0_126] : memref<64x32xf32, #tpu.memory_space<vmem>>, vector<8x32xf32>
    %c32_127 = arith.constant 32 : index
    %c0_128 = arith.constant 0 : index
    %376 = vector.load %arg5[%c32_127, %c0_128] : memref<64x32xf32, #tpu.memory_space<vmem>>, vector<8x32xf32>
    tpu.vector_store %arg5[%c32_127, %c0_128], %373 {strides = array<i32>} : memref<64x32xf32, #tpu.memory_space<vmem>>, vector<8x32xf32>,
    %c0_129 = arith.constant 0 : index
    %c512_130 = arith.constant 512 : index
    %377 = vector.load %arg2[%c0_129, %c512_130] : memref<40x1536xf32, #tpu.memory_space<vmem>>, vector<32x288xf32>
    %cst_131 = arith.constant dense<0.000000e+00> : vector<8x288xf32>
    %378 = tpu.matmul %373, %377, %cst_131 {dimension_numbers = #tpu.dot_dimension_numbers<[1], [0], [0], [1], [0, 0, 1, 1], [], []>} : vector<8x32xf32>, vector<32x288xf32>, vector<8x288xf32> -> vector<8x288xf32>
    %379 = arith.addf %378, %16 : vector<8x288xf32>
    %380 = vector.extract_strided_slice %374 {offsets = [0, 0], sizes = [8, 64], strides = [1, 1]} : vector<8x288xf32> to vector<8x64xf32>
    %381 = vector.extract_strided_slice %379 {offsets = [0, 0], sizes = [8, 64], strides = [1, 1]} : vector<8x288xf32> to vector<8x64xf32>
    %382 = arith.addf %380, %381 : vector<8x64xf32>
    %c32_132 = arith.constant 32 : index
    %c0_133 = arith.constant 0 : index
    %383 = vector.load %arg6[%c32_132, %c0_133] : memref<64x64xf32, #tpu.memory_space<vmem>>, vector<8x64xf32>
    tpu.vector_store %arg6[%c32_132, %c0_133], %382 {strides = array<i32>} : memref<64x64xf32, #tpu.memory_space<vmem>>, vector<8x64xf32>,
    %384 = vector.extract_strided_slice %382 {offsets = [0, 0], sizes = [8, 32], strides = [1, 1]} : vector<8x64xf32> to vector<8x32xf32>
    %385 = vector.extract_strided_slice %382 {offsets = [0, 32], sizes = [8, 32], strides = [1, 1]} : vector<8x64xf32> to vector<8x32xf32>
    %386 = math.exp %385 : vector<8x32xf32>
    %387 = arith.mulf %386, %375 : vector<8x32xf32>
    %388 = arith.addf %384, %387 : vector<8x32xf32>
    %c0_134 = arith.constant 0 : index
    %c896_135 = arith.constant 896 : index
    %389 = vector.load %arg2[%c0_134, %c896_135] : memref<40x1536xf32, #tpu.memory_space<vmem>>, vector<32x32xf32>
    %cst_136 = arith.constant dense<0.000000e+00> : vector<8x32xf32>
    %390 = tpu.matmul %388, %389, %cst_136 {dimension_numbers = #tpu.dot_dimension_numbers<[1], [0], [0], [1], [0, 0, 1, 1], [], []>} : vector<8x32xf32>, vector<32x32xf32>, vector<8x32xf32> -> vector<8x32xf32>
    %391 = arith.addf %390, %19 : vector<8x32xf32>
    %cst_137 = arith.constant 0.000000e+00 : f32
    %392 = vector.broadcast %cst_137 : f32 to vector<8x32xf32>
    %393 = arith.maximumf %391, %392 : vector<8x32xf32>
    %c32_138 = arith.constant 32 : index
    %c0_139 = arith.constant 0 : index
    %394 = vector.load %arg7[%c32_138, %c0_139] : memref<64x32xf32, #tpu.memory_space<vmem>>, vector<8x32xf32>
    tpu.vector_store %arg7[%c32_138, %c0_139], %393 {strides = array<i32>} : memref<64x32xf32, #tpu.memory_space<vmem>>, vector<8x32xf32>,
    %c0_140 = arith.constant 0 : index
    %c1024_141 = arith.constant 1024 : index
    %395 = vector.load %arg2[%c0_140, %c1024_141] : memref<40x1536xf32, #tpu.memory_space<vmem>>, vector<32x224xf32>
    %cst_142 = arith.constant dense<0.000000e+00> : vector<8x224xf32>
    %396 = tpu.matmul %393, %395, %cst_142 {dimension_numbers = #tpu.dot_dimension_numbers<[1], [0], [0], [1], [0, 0, 1, 1], [], []>} : vector<8x32xf32>, vector<32x224xf32>, vector<8x224xf32> -> vector<8x224xf32>
    %397 = vector.extract_strided_slice %374 {offsets = [0, 64], sizes = [8, 96], strides = [1, 1]} : vector<8x288xf32> to vector<8x96xf32>
    %398 = vector.extract_strided_slice %396 {offsets = [0, 0], sizes = [8, 96], strides = [1, 1]} : vector<8x224xf32> to vector<8x96xf32>
    %399 = arith.addf %397, %398 : vector<8x96xf32>
    %400 = vector.extract_strided_slice %379 {offsets = [0, 64], sizes = [8, 96], strides = [1, 1]} : vector<8x288xf32> to vector<8x96xf32>
    %401 = vector.extract_strided_slice %399 {offsets = [0, 0], sizes = [8, 32], strides = [1, 1]} : vector<8x96xf32> to vector<8x32xf32>
    %402 = vector.extract_strided_slice %400 {offsets = [0, 0], sizes = [8, 32], strides = [1, 1]} : vector<8x96xf32> to vector<8x32xf32>
    %403 = arith.addf %401, %402 : vector<8x32xf32>
    %404 = arith.negf %403 : vector<8x32xf32>
    %405 = math.exp %404 : vector<8x32xf32>
    %cst_143 = arith.constant 1.000000e+00 : f32
    %406 = vector.broadcast %cst_143 : f32 to vector<8x32xf32>
    %407 = arith.addf %406, %405 : vector<8x32xf32>
    %408 = arith.divf %406, %407 : vector<8x32xf32>
    %409 = vector.extract_strided_slice %399 {offsets = [0, 32], sizes = [8, 32], strides = [1, 1]} : vector<8x96xf32> to vector<8x32xf32>
    %410 = vector.extract_strided_slice %400 {offsets = [0, 32], sizes = [8, 32], strides = [1, 1]} : vector<8x96xf32> to vector<8x32xf32>
    %411 = arith.addf %409, %410 : vector<8x32xf32>
    %412 = arith.negf %411 : vector<8x32xf32>
    %413 = math.exp %412 : vector<8x32xf32>
    %cst_144 = arith.constant 1.000000e+00 : f32
    %414 = vector.broadcast %cst_144 : f32 to vector<8x32xf32>
    %415 = arith.addf %414, %413 : vector<8x32xf32>
    %416 = arith.divf %414, %415 : vector<8x32xf32>
    %417 = vector.extract_strided_slice %399 {offsets = [0, 64], sizes = [8, 32], strides = [1, 1]} : vector<8x96xf32> to vector<8x32xf32>
    %418 = vector.extract_strided_slice %400 {offsets = [0, 64], sizes = [8, 32], strides = [1, 1]} : vector<8x96xf32> to vector<8x32xf32>
    %419 = arith.mulf %408, %418 : vector<8x32xf32>
    %420 = arith.addf %417, %419 : vector<8x32xf32>
    %421 = math.tanh %420 : vector<8x32xf32>
    %cst_145 = arith.constant 1.000000e+00 : f32
    %422 = vector.broadcast %cst_145 : f32 to vector<8x32xf32>
    %423 = arith.subf %422, %416 : vector<8x32xf32>
    %424 = arith.mulf %423, %421 : vector<8x32xf32>
    %425 = arith.mulf %416, %373 : vector<8x32xf32>
    %426 = arith.addf %424, %425 : vector<8x32xf32>
    %427 = vector.extract_strided_slice %374 {offsets = [0, 160], sizes = [8, 128], strides = [1, 1]} : vector<8x288xf32> to vector<8x128xf32>
    %428 = vector.extract_strided_slice %396 {offsets = [0, 96], sizes = [8, 128], strides = [1, 1]} : vector<8x224xf32> to vector<8x128xf32>
    %429 = arith.addf %427, %428 : vector<8x128xf32>
    %430 = vector.extract_strided_slice %379 {offsets = [0, 160], sizes = [8, 128], strides = [1, 1]} : vector<8x288xf32> to vector<8x128xf32>
    %431 = arith.addf %429, %430 : vector<8x128xf32>
    %432 = vector.extract_strided_slice %431 {offsets = [0, 0], sizes = [8, 32], strides = [1, 1]} : vector<8x128xf32> to vector<8x32xf32>
    %433 = arith.negf %432 : vector<8x32xf32>
    %434 = math.exp %433 : vector<8x32xf32>
    %cst_146 = arith.constant 1.000000e+00 : f32
    %435 = vector.broadcast %cst_146 : f32 to vector<8x32xf32>
    %436 = arith.addf %435, %434 : vector<8x32xf32>
    %437 = arith.divf %435, %436 : vector<8x32xf32>
    %438 = vector.extract_strided_slice %431 {offsets = [0, 32], sizes = [8, 32], strides = [1, 1]} : vector<8x128xf32> to vector<8x32xf32>
    %439 = arith.negf %438 : vector<8x32xf32>
    %440 = math.exp %439 : vector<8x32xf32>
    %cst_147 = arith.constant 1.000000e+00 : f32
    %441 = vector.broadcast %cst_147 : f32 to vector<8x32xf32>
    %442 = arith.addf %441, %440 : vector<8x32xf32>
    %443 = arith.divf %441, %442 : vector<8x32xf32>
    %444 = vector.extract_strided_slice %431 {offsets = [0, 64], sizes = [8, 32], strides = [1, 1]} : vector<8x128xf32> to vector<8x32xf32>
    %445 = math.tanh %444 : vector<8x32xf32>
    %446 = vector.extract_strided_slice %431 {offsets = [0, 96], sizes = [8, 32], strides = [1, 1]} : vector<8x128xf32> to vector<8x32xf32>
    %447 = arith.negf %446 : vector<8x32xf32>
    %448 = math.exp %447 : vector<8x32xf32>
    %cst_148 = arith.constant 1.000000e+00 : f32
    %449 = vector.broadcast %cst_148 : f32 to vector<8x32xf32>
    %450 = arith.addf %449, %448 : vector<8x32xf32>
    %451 = arith.divf %449, %450 : vector<8x32xf32>
    %452 = arith.mulf %443, %366 : vector<8x32xf32>
    %453 = arith.mulf %437, %445 : vector<8x32xf32>
    %454 = arith.addf %452, %453 : vector<8x32xf32>
    %455 = math.tanh %454 : vector<8x32xf32>
    %456 = arith.mulf %451, %455 : vector<8x32xf32>
    %cst_149 = arith.constant 1.000000e+00 : f32
    %457 = vector.broadcast %cst_149 : f32 to vector<8x32xf32>
    %458 = arith.mulf %457, %426 : vector<8x32xf32>
    %cst_150 = arith.constant 1.000000e+00 : f32
    %459 = vector.broadcast %cst_150 : f32 to vector<8x32xf32>
    %460 = arith.mulf %459, %456 : vector<8x32xf32>
    %461 = arith.addf %458, %460 : vector<8x32xf32>
    %c40 = arith.constant 40 : index
    %c0_151 = arith.constant 0 : index
    %462 = vector.load %arg4[%c40, %c0_151] : memref<64x288xf32, #tpu.memory_space<vmem>>, vector<8x288xf32>
    %c40_152 = arith.constant 40 : index
    %c0_153 = arith.constant 0 : index
    %463 = vector.load %arg1[%c40_152, %c0_153] : memref<64x32xf32, #tpu.memory_space<vmem>>, vector<8x32xf32>
    %c40_154 = arith.constant 40 : index
    %c0_155 = arith.constant 0 : index
    %464 = vector.load %arg5[%c40_154, %c0_155] : memref<64x32xf32, #tpu.memory_space<vmem>>, vector<8x32xf32>
    tpu.vector_store %arg5[%c40_154, %c0_155], %461 {strides = array<i32>} : memref<64x32xf32, #tpu.memory_space<vmem>>, vector<8x32xf32>,
    %c0_156 = arith.constant 0 : index
    %c512_157 = arith.constant 512 : index
    %465 = vector.load %arg2[%c0_156, %c512_157] : memref<40x1536xf32, #tpu.memory_space<vmem>>, vector<32x288xf32>
    %cst_158 = arith.constant dense<0.000000e+00> : vector<8x288xf32>
    %466 = tpu.matmul %461, %465, %cst_158 {dimension_numbers = #tpu.dot_dimension_numbers<[1], [0], [0], [1], [0, 0, 1, 1], [], []>} : vector<8x32xf32>, vector<32x288xf32>, vector<8x288xf32> -> vector<8x288xf32>
    %467 = arith.addf %466, %16 : vector<8x288xf32>
    %468 = vector.extract_strided_slice %462 {offsets = [0, 0], sizes = [8, 64], strides = [1, 1]} : vector<8x288xf32> to vector<8x64xf32>
    %469 = vector.extract_strided_slice %467 {offsets = [0, 0], sizes = [8, 64], strides = [1, 1]} : vector<8x288xf32> to vector<8x64xf32>
    %470 = arith.addf %468, %469 : vector<8x64xf32>
    %c40_159 = arith.constant 40 : index
    %c0_160 = arith.constant 0 : index
    %471 = vector.load %arg6[%c40_159, %c0_160] : memref<64x64xf32, #tpu.memory_space<vmem>>, vector<8x64xf32>
    tpu.vector_store %arg6[%c40_159, %c0_160], %470 {strides = array<i32>} : memref<64x64xf32, #tpu.memory_space<vmem>>, vector<8x64xf32>,
    %472 = vector.extract_strided_slice %470 {offsets = [0, 0], sizes = [8, 32], strides = [1, 1]} : vector<8x64xf32> to vector<8x32xf32>
    %473 = vector.extract_strided_slice %470 {offsets = [0, 32], sizes = [8, 32], strides = [1, 1]} : vector<8x64xf32> to vector<8x32xf32>
    %474 = math.exp %473 : vector<8x32xf32>
    %475 = arith.mulf %474, %463 : vector<8x32xf32>
    %476 = arith.addf %472, %475 : vector<8x32xf32>
    %c0_161 = arith.constant 0 : index
    %c896_162 = arith.constant 896 : index
    %477 = vector.load %arg2[%c0_161, %c896_162] : memref<40x1536xf32, #tpu.memory_space<vmem>>, vector<32x32xf32>
    %cst_163 = arith.constant dense<0.000000e+00> : vector<8x32xf32>
    %478 = tpu.matmul %476, %477, %cst_163 {dimension_numbers = #tpu.dot_dimension_numbers<[1], [0], [0], [1], [0, 0, 1, 1], [], []>} : vector<8x32xf32>, vector<32x32xf32>, vector<8x32xf32> -> vector<8x32xf32>
    %479 = arith.addf %478, %19 : vector<8x32xf32>
    %cst_164 = arith.constant 0.000000e+00 : f32
    %480 = vector.broadcast %cst_164 : f32 to vector<8x32xf32>
    %481 = arith.maximumf %479, %480 : vector<8x32xf32>
    %c40_165 = arith.constant 40 : index
    %c0_166 = arith.constant 0 : index
    %482 = vector.load %arg7[%c40_165, %c0_166] : memref<64x32xf32, #tpu.memory_space<vmem>>, vector<8x32xf32>
    tpu.vector_store %arg7[%c40_165, %c0_166], %481 {strides = array<i32>} : memref<64x32xf32, #tpu.memory_space<vmem>>, vector<8x32xf32>,
    %c0_167 = arith.constant 0 : index
    %c1024_168 = arith.constant 1024 : index
    %483 = vector.load %arg2[%c0_167, %c1024_168] : memref<40x1536xf32, #tpu.memory_space<vmem>>, vector<32x224xf32>
    %cst_169 = arith.constant dense<0.000000e+00> : vector<8x224xf32>
    %484 = tpu.matmul %481, %483, %cst_169 {dimension_numbers = #tpu.dot_dimension_numbers<[1], [0], [0], [1], [0, 0, 1, 1], [], []>} : vector<8x32xf32>, vector<32x224xf32>, vector<8x224xf32> -> vector<8x224xf32>
    %485 = vector.extract_strided_slice %462 {offsets = [0, 64], sizes = [8, 96], strides = [1, 1]} : vector<8x288xf32> to vector<8x96xf32>
    %486 = vector.extract_strided_slice %484 {offsets = [0, 0], sizes = [8, 96], strides = [1, 1]} : vector<8x224xf32> to vector<8x96xf32>
    %487 = arith.addf %485, %486 : vector<8x96xf32>
    %488 = vector.extract_strided_slice %467 {offsets = [0, 64], sizes = [8, 96], strides = [1, 1]} : vector<8x288xf32> to vector<8x96xf32>
    %489 = vector.extract_strided_slice %487 {offsets = [0, 0], sizes = [8, 32], strides = [1, 1]} : vector<8x96xf32> to vector<8x32xf32>
    %490 = vector.extract_strided_slice %488 {offsets = [0, 0], sizes = [8, 32], strides = [1, 1]} : vector<8x96xf32> to vector<8x32xf32>
    %491 = arith.addf %489, %490 : vector<8x32xf32>
    %492 = arith.negf %491 : vector<8x32xf32>
    %493 = math.exp %492 : vector<8x32xf32>
    %cst_170 = arith.constant 1.000000e+00 : f32
    %494 = vector.broadcast %cst_170 : f32 to vector<8x32xf32>
    %495 = arith.addf %494, %493 : vector<8x32xf32>
    %496 = arith.divf %494, %495 : vector<8x32xf32>
    %497 = vector.extract_strided_slice %487 {offsets = [0, 32], sizes = [8, 32], strides = [1, 1]} : vector<8x96xf32> to vector<8x32xf32>
    %498 = vector.extract_strided_slice %488 {offsets = [0, 32], sizes = [8, 32], strides = [1, 1]} : vector<8x96xf32> to vector<8x32xf32>
    %499 = arith.addf %497, %498 : vector<8x32xf32>
    %500 = arith.negf %499 : vector<8x32xf32>
    %501 = math.exp %500 : vector<8x32xf32>
    %cst_171 = arith.constant 1.000000e+00 : f32
    %502 = vector.broadcast %cst_171 : f32 to vector<8x32xf32>
    %503 = arith.addf %502, %501 : vector<8x32xf32>
    %504 = arith.divf %502, %503 : vector<8x32xf32>
    %505 = vector.extract_strided_slice %487 {offsets = [0, 64], sizes = [8, 32], strides = [1, 1]} : vector<8x96xf32> to vector<8x32xf32>
    %506 = vector.extract_strided_slice %488 {offsets = [0, 64], sizes = [8, 32], strides = [1, 1]} : vector<8x96xf32> to vector<8x32xf32>
    %507 = arith.mulf %496, %506 : vector<8x32xf32>
    %508 = arith.addf %505, %507 : vector<8x32xf32>
    %509 = math.tanh %508 : vector<8x32xf32>
    %cst_172 = arith.constant 1.000000e+00 : f32
    %510 = vector.broadcast %cst_172 : f32 to vector<8x32xf32>
    %511 = arith.subf %510, %504 : vector<8x32xf32>
    %512 = arith.mulf %511, %509 : vector<8x32xf32>
    %513 = arith.mulf %504, %461 : vector<8x32xf32>
    %514 = arith.addf %512, %513 : vector<8x32xf32>
    %515 = vector.extract_strided_slice %462 {offsets = [0, 160], sizes = [8, 128], strides = [1, 1]} : vector<8x288xf32> to vector<8x128xf32>
    %516 = vector.extract_strided_slice %484 {offsets = [0, 96], sizes = [8, 128], strides = [1, 1]} : vector<8x224xf32> to vector<8x128xf32>
    %517 = arith.addf %515, %516 : vector<8x128xf32>
    %518 = vector.extract_strided_slice %467 {offsets = [0, 160], sizes = [8, 128], strides = [1, 1]} : vector<8x288xf32> to vector<8x128xf32>
    %519 = arith.addf %517, %518 : vector<8x128xf32>
    %520 = vector.extract_strided_slice %519 {offsets = [0, 0], sizes = [8, 32], strides = [1, 1]} : vector<8x128xf32> to vector<8x32xf32>
    %521 = arith.negf %520 : vector<8x32xf32>
    %522 = math.exp %521 : vector<8x32xf32>
    %cst_173 = arith.constant 1.000000e+00 : f32
    %523 = vector.broadcast %cst_173 : f32 to vector<8x32xf32>
    %524 = arith.addf %523, %522 : vector<8x32xf32>
    %525 = arith.divf %523, %524 : vector<8x32xf32>
    %526 = vector.extract_strided_slice %519 {offsets = [0, 32], sizes = [8, 32], strides = [1, 1]} : vector<8x128xf32> to vector<8x32xf32>
    %527 = arith.negf %526 : vector<8x32xf32>
    %528 = math.exp %527 : vector<8x32xf32>
    %cst_174 = arith.constant 1.000000e+00 : f32
    %529 = vector.broadcast %cst_174 : f32 to vector<8x32xf32>
    %530 = arith.addf %529, %528 : vector<8x32xf32>
    %531 = arith.divf %529, %530 : vector<8x32xf32>
    %532 = vector.extract_strided_slice %519 {offsets = [0, 64], sizes = [8, 32], strides = [1, 1]} : vector<8x128xf32> to vector<8x32xf32>
    %533 = math.tanh %532 : vector<8x32xf32>
    %534 = vector.extract_strided_slice %519 {offsets = [0, 96], sizes = [8, 32], strides = [1, 1]} : vector<8x128xf32> to vector<8x32xf32>
    %535 = arith.negf %534 : vector<8x32xf32>
    %536 = math.exp %535 : vector<8x32xf32>
    %cst_175 = arith.constant 1.000000e+00 : f32
    %537 = vector.broadcast %cst_175 : f32 to vector<8x32xf32>
    %538 = arith.addf %537, %536 : vector<8x32xf32>
    %539 = arith.divf %537, %538 : vector<8x32xf32>
    %540 = arith.mulf %531, %454 : vector<8x32xf32>
    %541 = arith.mulf %525, %533 : vector<8x32xf32>
    %542 = arith.addf %540, %541 : vector<8x32xf32>
    %543 = math.tanh %542 : vector<8x32xf32>
    %544 = arith.mulf %539, %543 : vector<8x32xf32>
    %cst_176 = arith.constant 1.000000e+00 : f32
    %545 = vector.broadcast %cst_176 : f32 to vector<8x32xf32>
    %546 = arith.mulf %545, %514 : vector<8x32xf32>
    %cst_177 = arith.constant 1.000000e+00 : f32
    %547 = vector.broadcast %cst_177 : f32 to vector<8x32xf32>
    %548 = arith.mulf %547, %544 : vector<8x32xf32>
    %549 = arith.addf %546, %548 : vector<8x32xf32>
    %c48 = arith.constant 48 : index
    %c0_178 = arith.constant 0 : index
    %550 = vector.load %arg4[%c48, %c0_178] : memref<64x288xf32, #tpu.memory_space<vmem>>, vector<8x288xf32>
    %c48_179 = arith.constant 48 : index
    %c0_180 = arith.constant 0 : index
    %551 = vector.load %arg1[%c48_179, %c0_180] : memref<64x32xf32, #tpu.memory_space<vmem>>, vector<8x32xf32>
    %c48_181 = arith.constant 48 : index
    %c0_182 = arith.constant 0 : index
    %552 = vector.load %arg5[%c48_181, %c0_182] : memref<64x32xf32, #tpu.memory_space<vmem>>, vector<8x32xf32>
    tpu.vector_store %arg5[%c48_181, %c0_182], %549 {strides = array<i32>} : memref<64x32xf32, #tpu.memory_space<vmem>>, vector<8x32xf32>,
    %c0_183 = arith.constant 0 : index
    %c512_184 = arith.constant 512 : index
    %553 = vector.load %arg2[%c0_183, %c512_184] : memref<40x1536xf32, #tpu.memory_space<vmem>>, vector<32x288xf32>
    %cst_185 = arith.constant dense<0.000000e+00> : vector<8x288xf32>
    %554 = tpu.matmul %549, %553, %cst_185 {dimension_numbers = #tpu.dot_dimension_numbers<[1], [0], [0], [1], [0, 0, 1, 1], [], []>} : vector<8x32xf32>, vector<32x288xf32>, vector<8x288xf32> -> vector<8x288xf32>
    %555 = arith.addf %554, %16 : vector<8x288xf32>
    %556 = vector.extract_strided_slice %550 {offsets = [0, 0], sizes = [8, 64], strides = [1, 1]} : vector<8x288xf32> to vector<8x64xf32>
    %557 = vector.extract_strided_slice %555 {offsets = [0, 0], sizes = [8, 64], strides = [1, 1]} : vector<8x288xf32> to vector<8x64xf32>
    %558 = arith.addf %556, %557 : vector<8x64xf32>
    %c48_186 = arith.constant 48 : index
    %c0_187 = arith.constant 0 : index
    %559 = vector.load %arg6[%c48_186, %c0_187] : memref<64x64xf32, #tpu.memory_space<vmem>>, vector<8x64xf32>
    tpu.vector_store %arg6[%c48_186, %c0_187], %558 {strides = array<i32>} : memref<64x64xf32, #tpu.memory_space<vmem>>, vector<8x64xf32>,
    %560 = vector.extract_strided_slice %558 {offsets = [0, 0], sizes = [8, 32], strides = [1, 1]} : vector<8x64xf32> to vector<8x32xf32>
    %561 = vector.extract_strided_slice %558 {offsets = [0, 32], sizes = [8, 32], strides = [1, 1]} : vector<8x64xf32> to vector<8x32xf32>
    %562 = math.exp %561 : vector<8x32xf32>
    %563 = arith.mulf %562, %551 : vector<8x32xf32>
    %564 = arith.addf %560, %563 : vector<8x32xf32>
    %c0_188 = arith.constant 0 : index
    %c896_189 = arith.constant 896 : index
    %565 = vector.load %arg2[%c0_188, %c896_189] : memref<40x1536xf32, #tpu.memory_space<vmem>>, vector<32x32xf32>
    %cst_190 = arith.constant dense<0.000000e+00> : vector<8x32xf32>
    %566 = tpu.matmul %564, %565, %cst_190 {dimension_numbers = #tpu.dot_dimension_numbers<[1], [0], [0], [1], [0, 0, 1, 1], [], []>} : vector<8x32xf32>, vector<32x32xf32>, vector<8x32xf32> -> vector<8x32xf32>
    %567 = arith.addf %566, %19 : vector<8x32xf32>
    %cst_191 = arith.constant 0.000000e+00 : f32
    %568 = vector.broadcast %cst_191 : f32 to vector<8x32xf32>
    %569 = arith.maximumf %567, %568 : vector<8x32xf32>
    %c48_192 = arith.constant 48 : index
    %c0_193 = arith.constant 0 : index
    %570 = vector.load %arg7[%c48_192, %c0_193] : memref<64x32xf32, #tpu.memory_space<vmem>>, vector<8x32xf32>
    tpu.vector_store %arg7[%c48_192, %c0_193], %569 {strides = array<i32>} : memref<64x32xf32, #tpu.memory_space<vmem>>, vector<8x32xf32>,
    %c0_194 = arith.constant 0 : index
    %c1024_195 = arith.constant 1024 : index
    %571 = vector.load %arg2[%c0_194, %c1024_195] : memref<40x1536xf32, #tpu.memory_space<vmem>>, vector<32x224xf32>
    %cst_196 = arith.constant dense<0.000000e+00> : vector<8x224xf32>
    %572 = tpu.matmul %569, %571, %cst_196 {dimension_numbers = #tpu.dot_dimension_numbers<[1], [0], [0], [1], [0, 0, 1, 1], [], []>} : vector<8x32xf32>, vector<32x224xf32>, vector<8x224xf32> -> vector<8x224xf32>
    %573 = vector.extract_strided_slice %550 {offsets = [0, 64], sizes = [8, 96], strides = [1, 1]} : vector<8x288xf32> to vector<8x96xf32>
    %574 = vector.extract_strided_slice %572 {offsets = [0, 0], sizes = [8, 96], strides = [1, 1]} : vector<8x224xf32> to vector<8x96xf32>
    %575 = arith.addf %573, %574 : vector<8x96xf32>
    %576 = vector.extract_strided_slice %555 {offsets = [0, 64], sizes = [8, 96], strides = [1, 1]} : vector<8x288xf32> to vector<8x96xf32>
    %577 = vector.extract_strided_slice %575 {offsets = [0, 0], sizes = [8, 32], strides = [1, 1]} : vector<8x96xf32> to vector<8x32xf32>
    %578 = vector.extract_strided_slice %576 {offsets = [0, 0], sizes = [8, 32], strides = [1, 1]} : vector<8x96xf32> to vector<8x32xf32>
    %579 = arith.addf %577, %578 : vector<8x32xf32>
    %580 = arith.negf %579 : vector<8x32xf32>
    %581 = math.exp %580 : vector<8x32xf32>
    %cst_197 = arith.constant 1.000000e+00 : f32
    %582 = vector.broadcast %cst_197 : f32 to vector<8x32xf32>
    %583 = arith.addf %582, %581 : vector<8x32xf32>
    %584 = arith.divf %582, %583 : vector<8x32xf32>
    %585 = vector.extract_strided_slice %575 {offsets = [0, 32], sizes = [8, 32], strides = [1, 1]} : vector<8x96xf32> to vector<8x32xf32>
    %586 = vector.extract_strided_slice %576 {offsets = [0, 32], sizes = [8, 32], strides = [1, 1]} : vector<8x96xf32> to vector<8x32xf32>
    %587 = arith.addf %585, %586 : vector<8x32xf32>
    %588 = arith.negf %587 : vector<8x32xf32>
    %589 = math.exp %588 : vector<8x32xf32>
    %cst_198 = arith.constant 1.000000e+00 : f32
    %590 = vector.broadcast %cst_198 : f32 to vector<8x32xf32>
    %591 = arith.addf %590, %589 : vector<8x32xf32>
    %592 = arith.divf %590, %591 : vector<8x32xf32>
    %593 = vector.extract_strided_slice %575 {offsets = [0, 64], sizes = [8, 32], strides = [1, 1]} : vector<8x96xf32> to vector<8x32xf32>
    %594 = vector.extract_strided_slice %576 {offsets = [0, 64], sizes = [8, 32], strides = [1, 1]} : vector<8x96xf32> to vector<8x32xf32>
    %595 = arith.mulf %584, %594 : vector<8x32xf32>
    %596 = arith.addf %593, %595 : vector<8x32xf32>
    %597 = math.tanh %596 : vector<8x32xf32>
    %cst_199 = arith.constant 1.000000e+00 : f32
    %598 = vector.broadcast %cst_199 : f32 to vector<8x32xf32>
    %599 = arith.subf %598, %592 : vector<8x32xf32>
    %600 = arith.mulf %599, %597 : vector<8x32xf32>
    %601 = arith.mulf %592, %549 : vector<8x32xf32>
    %602 = arith.addf %600, %601 : vector<8x32xf32>
    %603 = vector.extract_strided_slice %550 {offsets = [0, 160], sizes = [8, 128], strides = [1, 1]} : vector<8x288xf32> to vector<8x128xf32>
    %604 = vector.extract_strided_slice %572 {offsets = [0, 96], sizes = [8, 128], strides = [1, 1]} : vector<8x224xf32> to vector<8x128xf32>
    %605 = arith.addf %603, %604 : vector<8x128xf32>
    %606 = vector.extract_strided_slice %555 {offsets = [0, 160], sizes = [8, 128], strides = [1, 1]} : vector<8x288xf32> to vector<8x128xf32>
    %607 = arith.addf %605, %606 : vector<8x128xf32>
    %608 = vector.extract_strided_slice %607 {offsets = [0, 0], sizes = [8, 32], strides = [1, 1]} : vector<8x128xf32> to vector<8x32xf32>
    %609 = arith.negf %608 : vector<8x32xf32>
    %610 = math.exp %609 : vector<8x32xf32>
    %cst_200 = arith.constant 1.000000e+00 : f32
    %611 = vector.broadcast %cst_200 : f32 to vector<8x32xf32>
    %612 = arith.addf %611, %610 : vector<8x32xf32>
    %613 = arith.divf %611, %612 : vector<8x32xf32>
    %614 = vector.extract_strided_slice %607 {offsets = [0, 32], sizes = [8, 32], strides = [1, 1]} : vector<8x128xf32> to vector<8x32xf32>
    %615 = arith.negf %614 : vector<8x32xf32>
    %616 = math.exp %615 : vector<8x32xf32>
    %cst_201 = arith.constant 1.000000e+00 : f32
    %617 = vector.broadcast %cst_201 : f32 to vector<8x32xf32>
    %618 = arith.addf %617, %616 : vector<8x32xf32>
    %619 = arith.divf %617, %618 : vector<8x32xf32>
    %620 = vector.extract_strided_slice %607 {offsets = [0, 64], sizes = [8, 32], strides = [1, 1]} : vector<8x128xf32> to vector<8x32xf32>
    %621 = math.tanh %620 : vector<8x32xf32>
    %622 = vector.extract_strided_slice %607 {offsets = [0, 96], sizes = [8, 32], strides = [1, 1]} : vector<8x128xf32> to vector<8x32xf32>
    %623 = arith.negf %622 : vector<8x32xf32>
    %624 = math.exp %623 : vector<8x32xf32>
    %cst_202 = arith.constant 1.000000e+00 : f32
    %625 = vector.broadcast %cst_202 : f32 to vector<8x32xf32>
    %626 = arith.addf %625, %624 : vector<8x32xf32>
    %627 = arith.divf %625, %626 : vector<8x32xf32>
    %628 = arith.mulf %619, %542 : vector<8x32xf32>
    %629 = arith.mulf %613, %621 : vector<8x32xf32>
    %630 = arith.addf %628, %629 : vector<8x32xf32>
    %631 = math.tanh %630 : vector<8x32xf32>
    %632 = arith.mulf %627, %631 : vector<8x32xf32>
    %cst_203 = arith.constant 1.000000e+00 : f32
    %633 = vector.broadcast %cst_203 : f32 to vector<8x32xf32>
    %634 = arith.mulf %633, %602 : vector<8x32xf32>
    %cst_204 = arith.constant 1.000000e+00 : f32
    %635 = vector.broadcast %cst_204 : f32 to vector<8x32xf32>
    %636 = arith.mulf %635, %632 : vector<8x32xf32>
    %637 = arith.addf %634, %636 : vector<8x32xf32>
    %c56 = arith.constant 56 : index
    %c0_205 = arith.constant 0 : index
    %638 = vector.load %arg4[%c56, %c0_205] : memref<64x288xf32, #tpu.memory_space<vmem>>, vector<8x288xf32>
    %c56_206 = arith.constant 56 : index
    %c0_207 = arith.constant 0 : index
    %639 = vector.load %arg1[%c56_206, %c0_207] : memref<64x32xf32, #tpu.memory_space<vmem>>, vector<8x32xf32>
    %c56_208 = arith.constant 56 : index
    %c0_209 = arith.constant 0 : index
    %640 = vector.load %arg5[%c56_208, %c0_209] : memref<64x32xf32, #tpu.memory_space<vmem>>, vector<8x32xf32>
    tpu.vector_store %arg5[%c56_208, %c0_209], %637 {strides = array<i32>} : memref<64x32xf32, #tpu.memory_space<vmem>>, vector<8x32xf32>,
    %c0_210 = arith.constant 0 : index
    %c512_211 = arith.constant 512 : index
    %641 = vector.load %arg2[%c0_210, %c512_211] : memref<40x1536xf32, #tpu.memory_space<vmem>>, vector<32x288xf32>
    %cst_212 = arith.constant dense<0.000000e+00> : vector<8x288xf32>
    %642 = tpu.matmul %637, %641, %cst_212 {dimension_numbers = #tpu.dot_dimension_numbers<[1], [0], [0], [1], [0, 0, 1, 1], [], []>} : vector<8x32xf32>, vector<32x288xf32>, vector<8x288xf32> -> vector<8x288xf32>
    %643 = arith.addf %642, %16 : vector<8x288xf32>
    %644 = vector.extract_strided_slice %638 {offsets = [0, 0], sizes = [8, 64], strides = [1, 1]} : vector<8x288xf32> to vector<8x64xf32>
    %645 = vector.extract_strided_slice %643 {offsets = [0, 0], sizes = [8, 64], strides = [1, 1]} : vector<8x288xf32> to vector<8x64xf32>
    %646 = arith.addf %644, %645 : vector<8x64xf32>
    %c56_213 = arith.constant 56 : index
    %c0_214 = arith.constant 0 : index
    %647 = vector.load %arg6[%c56_213, %c0_214] : memref<64x64xf32, #tpu.memory_space<vmem>>, vector<8x64xf32>
    tpu.vector_store %arg6[%c56_213, %c0_214], %646 {strides = array<i32>} : memref<64x64xf32, #tpu.memory_space<vmem>>, vector<8x64xf32>,
    %648 = vector.extract_strided_slice %646 {offsets = [0, 0], sizes = [8, 32], strides = [1, 1]} : vector<8x64xf32> to vector<8x32xf32>
    %649 = vector.extract_strided_slice %646 {offsets = [0, 32], sizes = [8, 32], strides = [1, 1]} : vector<8x64xf32> to vector<8x32xf32>
    %650 = math.exp %649 : vector<8x32xf32>
    %651 = arith.mulf %650, %639 : vector<8x32xf32>
    %652 = arith.addf %648, %651 : vector<8x32xf32>
    %c0_215 = arith.constant 0 : index
    %c896_216 = arith.constant 896 : index
    %653 = vector.load %arg2[%c0_215, %c896_216] : memref<40x1536xf32, #tpu.memory_space<vmem>>, vector<32x32xf32>
    %cst_217 = arith.constant dense<0.000000e+00> : vector<8x32xf32>
    %654 = tpu.matmul %652, %653, %cst_217 {dimension_numbers = #tpu.dot_dimension_numbers<[1], [0], [0], [1], [0, 0, 1, 1], [], []>} : vector<8x32xf32>, vector<32x32xf32>, vector<8x32xf32> -> vector<8x32xf32>
    %655 = arith.addf %654, %19 : vector<8x32xf32>
    %cst_218 = arith.constant 0.000000e+00 : f32
    %656 = vector.broadcast %cst_218 : f32 to vector<8x32xf32>
    %657 = arith.maximumf %655, %656 : vector<8x32xf32>
    %c56_219 = arith.constant 56 : index
    %c0_220 = arith.constant 0 : index
    %658 = vector.load %arg7[%c56_219, %c0_220] : memref<64x32xf32, #tpu.memory_space<vmem>>, vector<8x32xf32>
    tpu.vector_store %arg7[%c56_219, %c0_220], %657 {strides = array<i32>} : memref<64x32xf32, #tpu.memory_space<vmem>>, vector<8x32xf32>,
    %c0_221 = arith.constant 0 : index
    %c0_222 = arith.constant 0 : index
    %659 = vector.load %arg5[%c0_221, %c0_222] : memref<64x32xf32, #tpu.memory_space<vmem>>, vector<64x32xf32>
    %c0_223 = arith.constant 0 : index
    %c0_224 = arith.constant 0 : index
    %660 = vector.load %arg7[%c0_223, %c0_224] : memref<64x32xf32, #tpu.memory_space<vmem>>, vector<64x32xf32>
    %c0_225 = arith.constant 0 : index
    %c0_226 = arith.constant 0 : index
    %661 = vector.load %arg6[%c0_225, %c0_226] : memref<64x64xf32, #tpu.memory_space<vmem>>, vector<64x64xf32>
    %c0_227 = arith.constant 0 : index
    %c1280 = arith.constant 1280 : index
    %662 = vector.load %arg2[%c0_227, %c1280] : memref<40x1536xf32, #tpu.memory_space<vmem>>, vector<32x80xf32>
    %cst_228 = arith.constant dense<0.000000e+00> : vector<64x80xf32>
    %663 = tpu.matmul %659, %662, %cst_228 {dimension_numbers = #tpu.dot_dimension_numbers<[1], [0], [0], [1], [0, 0, 1, 1], [], []>} : vector<64x32xf32>, vector<32x80xf32>, vector<64x80xf32> -> vector<64x80xf32>
    %c32_229 = arith.constant 32 : index
    %c1280_230 = arith.constant 1280 : index
    %664 = vector.load %arg2[%c32_229, %c1280_230] : memref<40x1536xf32, #tpu.memory_space<vmem>>, vector<1x80xf32>
    %665 = vector.broadcast %664 : vector<1x80xf32> to vector<64x80xf32>
    %666 = arith.addf %663, %665 : vector<64x80xf32>
    %667 = vector.extract_strided_slice %666 {offsets = [0, 0], sizes = [64, 32], strides = [1, 1]} : vector<64x80xf32> to vector<64x32xf32>
    %668 = vector.extract_strided_slice %666 {offsets = [0, 32], sizes = [64, 32], strides = [1, 1]} : vector<64x80xf32> to vector<64x32xf32>
    %669 = vector.extract_strided_slice %666 {offsets = [0, 64], sizes = [64, 16], strides = [1, 1]} : vector<64x80xf32> to vector<64x16xf32>
    %c0_231 = arith.constant 0 : index
    %c1408 = arith.constant 1408 : index
    %670 = vector.load %arg2[%c0_231, %c1408] : memref<40x1536xf32, #tpu.memory_space<vmem>>, vector<32x16xf32>
    %cst_232 = arith.constant dense<0.000000e+00> : vector<64x16xf32>
    %671 = tpu.matmul %660, %670, %cst_232 {dimension_numbers = #tpu.dot_dimension_numbers<[1], [0], [0], [1], [0, 0, 1, 1], [], []>} : vector<64x32xf32>, vector<32x16xf32>, vector<64x16xf32> -> vector<64x16xf32>
    %672 = arith.addf %669, %671 : vector<64x16xf32>
    %673 = vector.extract_strided_slice %661 {offsets = [0, 0], sizes = [64, 32], strides = [1, 1]} : vector<64x64xf32> to vector<64x32xf32>
    %674 = vector.extract_strided_slice %661 {offsets = [0, 32], sizes = [64, 32], strides = [1, 1]} : vector<64x64xf32> to vector<64x32xf32>
    %675 = tpu.iota {dimensions = array<i32: 0>} : vector<8x1xi32>
    %c2_i32 = arith.constant 2 : i32
    %676 = vector.broadcast %c2_i32 : i32 to vector<8x1xi32>
    %677 = arith.cmpi slt, %675, %676 : vector<8x1xi32>
    %678 = arith.extui %677 : vector<8x1xi1> to vector<8x1xi32>
    %679 = arith.sitofp %678 : vector<8x1xi32> to vector<8x1xf32>
    %680 = tpu.concatenate %679, %679, %679, %679, %679, %679, %679, %679 in 0 : vector<8x1xf32>, vector<8x1xf32>, vector<8x1xf32>, vector<8x1xf32>, vector<8x1xf32>, vector<8x1xf32>, vector<8x1xf32>, vector<8x1xf32> -> vector<64x1xf32>
    %681 = arith.subf %673, %667 : vector<64x32xf32>
    %cst_233 = arith.constant 2.000000e+00 : f32
    %682 = vector.broadcast %cst_233 : f32 to vector<64x32xf32>
    %683 = arith.mulf %682, %674 : vector<64x32xf32>
    %684 = math.exp %683 : vector<64x32xf32>
    %cst_234 = arith.constant -2.000000e+00 : f32
    %685 = vector.broadcast %cst_234 : f32 to vector<64x32xf32>
    %686 = arith.mulf %685, %668 : vector<64x32xf32>
    %687 = math.exp %686 : vector<64x32xf32>
    %cst_235 = arith.constant 2.000000e+00 : f32
    %688 = vector.broadcast %cst_235 : f32 to vector<64x32xf32>
    %689 = arith.mulf %688, %668 : vector<64x32xf32>
    %cst_236 = arith.constant 2.000000e+00 : f32
    %690 = vector.broadcast %cst_236 : f32 to vector<64x32xf32>
    %691 = arith.mulf %690, %674 : vector<64x32xf32>
    %692 = arith.subf %689, %691 : vector<64x32xf32>
    %693 = arith.mulf %681, %681 : vector<64x32xf32>
    %694 = arith.addf %684, %693 : vector<64x32xf32>
    %695 = arith.mulf %694, %687 : vector<64x32xf32>
    %696 = arith.addf %692, %695 : vector<64x32xf32>
    %697 = vector.broadcast %680 : vector<64x1xf32> to vector<64x32xf32>
    %698 = arith.mulf %696, %697 : vector<64x32xf32>
    %c0_237 = arith.constant 0 : index
    %c0_238 = arith.constant 0 : index
    %699 = vector.load %arg0[%c0_237, %c0_238] : memref<64x16xf32, #tpu.memory_space<vmem>>, vector<64x16xf32>
    %cst_239 = arith.constant 0.000000e+00 : f32
    %700 = vector.broadcast %cst_239 : f32 to vector<64x16xf32>
    %701 = arith.maximumf %672, %700 : vector<64x16xf32>
    %702 = math.absf %672 : vector<64x16xf32>
    %cst_240 = arith.constant 0.000000e+00 : f32
    %703 = vector.broadcast %cst_240 : f32 to vector<64x16xf32>
    %704 = arith.subf %703, %702 : vector<64x16xf32>
    %705 = math.exp %704 : vector<64x16xf32>
    %cst_241 = arith.constant 1.000000e+00 : f32
    %706 = vector.broadcast %cst_241 : f32 to vector<64x16xf32>
    %707 = arith.addf %706, %705 : vector<64x16xf32>
    %708 = math.log %707 : vector<64x16xf32>
    %709 = arith.addf %701, %708 : vector<64x16xf32>
    %710 = arith.subf %672, %709 : vector<64x16xf32>
    %cst_242 = arith.constant -1.000000e+02 : f32
    %711 = vector.broadcast %cst_242 : f32 to vector<64x16xf32>
    %712 = arith.maximumf %710, %711 : vector<64x16xf32>
    %cst_243 = arith.constant 0.000000e+00 : f32
    %713 = vector.broadcast %cst_243 : f32 to vector<64x16xf32>
    %714 = arith.subf %713, %709 : vector<64x16xf32>
    %cst_244 = arith.constant -1.000000e+02 : f32
    %715 = vector.broadcast %cst_244 : f32 to vector<64x16xf32>
    %716 = arith.maximumf %714, %715 : vector<64x16xf32>
    %717 = arith.mulf %699, %712 : vector<64x16xf32>
    %cst_245 = arith.constant 1.000000e+00 : f32
    %718 = vector.broadcast %cst_245 : f32 to vector<64x16xf32>
    %719 = arith.subf %718, %699 : vector<64x16xf32>
    %720 = arith.mulf %719, %716 : vector<64x16xf32>
    %721 = arith.addf %717, %720 : vector<64x16xf32>
    %cst_246 = arith.constant 0.000000e+00 : f32
    %722 = vector.broadcast %cst_246 : f32 to vector<64x16xf32>
    %723 = arith.subf %722, %721 : vector<64x16xf32>
    %724 = vector.broadcast %680 : vector<64x1xf32> to vector<64x16xf32>
    %725 = arith.mulf %723, %724 : vector<64x16xf32>
    %cst_247 = arith.constant dense<0.000000e+00> : vector<64xf32>
    %726 = vector.multi_reduction <add>, %698, %cst_247 [1] : vector<64x32xf32> to vector<64xf32>
    %727 = vector.shape_cast %726 : vector<64xf32> to vector<64x1xf32>
    %cst_248 = arith.constant dense<0.000000e+00> : vector<1xf32>
    %728 = vector.multi_reduction <add>, %727, %cst_248 [0] : vector<64x1xf32> to vector<1xf32>
    %729 = vector.shape_cast %728 : vector<1xf32> to vector<1x1xf32>
    %cst_249 = arith.constant dense<0.000000e+00> : vector<64xf32>
    %730 = vector.multi_reduction <add>, %725, %cst_249 [1] : vector<64x16xf32> to vector<64xf32>
    %731 = vector.shape_cast %730 : vector<64xf32> to vector<64x1xf32>
    %cst_250 = arith.constant dense<0.000000e+00> : vector<1xf32>
    %732 = vector.multi_reduction <add>, %731, %cst_250 [0] : vector<64x1xf32> to vector<1xf32>
    %733 = vector.shape_cast %732 : vector<1xf32> to vector<1x1xf32>
    %cst_251 = arith.constant 5.120000e+02 : f32
    %734 = vector.broadcast %cst_251 : f32 to vector<1x1xf32>
    %735 = arith.subf %729, %734 : vector<1x1xf32>
    %cst_252 = arith.constant 5.000000e-01 : f32
    %736 = vector.broadcast %cst_252 : f32 to vector<1x1xf32>
    %737 = arith.mulf %736, %735 : vector<1x1xf32>
    %cst_253 = arith.constant 8.000000e+01 : f32
    %738 = vector.broadcast %cst_253 : f32 to vector<1x1xf32>
    %739 = arith.divf %733, %738 : vector<1x1xf32>
    %cst_254 = arith.constant 8.000000e+01 : f32
    %740 = vector.broadcast %cst_254 : f32 to vector<1x1xf32>
    %741 = arith.divf %737, %740 : vector<1x1xf32>
    %cst_255 = arith.constant 1.000000e+00 : f32
    %742 = vector.broadcast %cst_255 : f32 to vector<1x1xf32>
    %743 = arith.mulf %742, %741 : vector<1x1xf32>
    %744 = arith.addf %739, %743 : vector<1x1xf32>
    %745 = tpu.concatenate %744, %739, %741 in 1 : vector<1x1xf32>, vector<1x1xf32>, vector<1x1xf32> -> vector<1x3xf32>
    %c0_256 = arith.constant 0 : index
    %c0_257 = arith.constant 0 : index
    %746 = vector.load %arg3[%c0_256, %c0_257] : memref<1x3xf32, #tpu.memory_space<vmem>>, vector<1x3xf32>
    tpu.vector_store %arg3[%c0_256, %c0_257], %745 {strides = array<i32>} : memref<1x3xf32, #tpu.memory_space<vmem>>, vector<1x3xf32>,
    return
  }
}

</mosaic_0001>

<llo_original>
// kernel: tpu_custom_call.1
$region0: #{tpu_custom_call.1}
  #allocation0 [shape = 'u32[]', space=smem, size = 0x4, offset = 0x4, fixed_abs, tag = 'smem constant byte address 0x4 - core index']
  #allocation1 [shape = 'u32[144,128]{1,0:T(1,128)}', space=vmem, size = 0x12000, scoped, tag = 'internal scratch']
  #allocation2 [shape = 'f32[64,288]{1,0:T(8,128)}', space=vmem, size = 0x18000, scoped, tag = 'scratch operand']
  #allocation3 [shape = 'f32[64,32]{1,0:T(8,128)}', space=vmem, size = 0x8000, scoped, tag = 'scratch operand']
  #allocation4 [shape = 'f32[64,64]{1,0:T(8,128)}', space=vmem, size = 0x8000, scoped, tag = 'scratch operand']
  #allocation5 [shape = 'f32[64,32]{1,0:T(8,128)}', space=vmem, size = 0x8000, scoped, tag = 'scratch operand']
  %s0 = inlined_call_operand.vmem [shape: f32[64,16], index: 0, kind: input, shape index: {}]
  %s1 = inlined_call_operand.vmem [shape: f32[64,32], index: 1, kind: input, shape index: {}]
  %s2 = inlined_call_operand.hbm [shape: f32[40,1536], index: 2, kind: input, shape index: {}]
  %s3 = inlined_call_operand.hbm [shape: f32[1,3], index: 3, kind: output, shape index: {}]
  %s4 = sld [smem:[#allocation0]]
  $region26: #{tpu_custom_call.1} parent=0
    _
  %s6 = ssub.s32 1, %s4
  %s7 = scalar_select 0, %s6, %s4
  $region1: #{tpu_custom_call.1} parent=0
    #allocation6 [shape = 'u8[245760]{0}', space=vmem, size = 0x3c000, scoped, tag = 'input window, operand 2, single buffered']
    #allocation7 [shape = 's32[1]{0}', space=sflag, size = 0x4, scoped, tag = 'scoped memory for tpu_custom_call.1']
    #allocation8 [shape = 's32[1]{0}', space=sflag, size = 0x4, scoped, tag = 'scoped memory for tpu_custom_call.1']
    #allocation9 [shape = 'u8[512]{0}', space=vmem, size = 0x400, scoped, tag = 'output window, operand 0, single buffered']
    %8 = vsyncpa [#allocation7], 0
    %9 = vsyncpa [#allocation8], 0
    // Predicated region
    $region2: #{tpu_custom_call.1} parent=1 // pred_check
      _
    $region3: #{tpu_custom_call.1} parent=1 // pred_check_branch
      %11 = sbr.rel (0) target = $region5
    $region4: #{tpu_custom_call.1} parent=1 // pred_region
      _
    $region5: #{tpu_custom_call.1} parent=1 // pred_fallthru
      _
    // Predicated region
    $region6: #{tpu_custom_call.1} parent=1 // pred_check
      _
    $region7: #{tpu_custom_call.1} parent=1 // pred_check_branch
      %13 = sbr.rel (0) target = $region9
    $region8: #{tpu_custom_call.1} parent=1 // pred_region
      _
    $region9: #{tpu_custom_call.1} parent=1 // pred_fallthru
      _
    // Predicated region
    $region10: #{tpu_custom_call.1} parent=1 // pred_check
      _
    $region11: #{tpu_custom_call.1} parent=1 // pred_check_branch
      %15 = sbr.rel (0) target = $region13
    $region12: #{tpu_custom_call.1} parent=1 // pred_region
      %s17 = ssub.s32 7680, 7680
      %18 = vsyncadd [#allocation7], %s17
      %s19 = sshll.u32 [#allocation6], 4
      %s20 = int_to_ptr.vmem [resolvable:$true] %s19
      %25 = dma.hbm_to_vmem [thread:$0]  %s2, 7680, %s20, [#allocation7], 1536, 1536, 96
    $region13: #{tpu_custom_call.1} parent=1 // pred_fallthru
      _
    // Predicated region
    $region14: #{tpu_custom_call.1} parent=1 // pred_check
      _
    $region15: #{tpu_custom_call.1} parent=1 // pred_check_branch
      %27 = sbr.rel (0) target = $region17
    $region16: #{tpu_custom_call.1} parent=1 // pred_region
      %28 = dma.done [#allocation7], 7680
    $region17: #{tpu_custom_call.1} parent=1 // pred_fallthru
      _
    %v29 = vld [vmem:[%s0] sm:$0xff]
    %v30 = vld [vmem:[%s0 + $0x8] sm:$0xff]
    %v31 = vld [vmem:[%s0 + $0x10] sm:$0xff]
    %v32 = vld [vmem:[%s0 + $0x18] sm:$0xff]
    %v33 = vld [vmem:[%s0 + $0x20] sm:$0xff]
    %v34 = vld [vmem:[%s0 + $0x28] sm:$0xff]
    %v35 = vld [vmem:[%s0 + $0x30] sm:$0xff]
    %v36 = vld [vmem:[%s0 + $0x38] sm:$0xff]
    %v37 = vld [vmem:[#allocation6] sm:$0xff]
    %v38 = vld [vmem:[#allocation6 + $0x60] sm:$0xff]
    %v39 = vld [vmem:[#allocation6 + $0x180] ss:$0 sm:$0xff]
    %vm40 = vcmask 130048
    %v42 = vsel %vm40, %v29, 0
    %v45 = vsel %vm40, %v30, 0
    %v48 = vsel %vm40, %v31, 0
    %v51 = vsel %vm40, %v32, 0
    %v54 = vsel %vm40, %v33, 0
    %v57 = vsel %vm40, %v34, 0
    %v60 = vsel %vm40, %v35, 0
    %v63 = vsel %vm40, %v36, 0
    %65 = vmatprep.subr.mxu0 0.0
    %66 = vmatpush1.msra.mxu0 %v37
    %67 = vmatprep.subr.mxu0 0.0
    %68 = vmatpush1.msra.mxu0 %v38
    %69 = vmatprep.subr.mxu0 0.0
    %70 = vmatpush1.msra.mxu0 0.0
    %71 = vmatprep.subr.mxu0 0.0
    %72 = vmatpush1.msra.mxu0 0.0
    %73 = vmatprep.subr.mxu0 0.0
    %74 = vmatpush1.msra.mxu0 0.0
    %75 = vmatprep.subr.mxu0 0.0
    %76 = vmatpush1.msra.mxu0 0.0
    %77 = vmatprep.subr.mxu0 0.0
    %78 = vmatpush1.msra.mxu0 0.0
    %79 = vmatprep.subr.mxu0 0.0
    %80 = vmatpush1.msra.mxu0 0.0
    %81 = vmatprep.subr.mxu0 0.0
    %82 = vmatpush1.msra.mxu0 0.0
    %83 = vmatprep.subr.mxu0 0.0
    %84 = vmatpush1.msra.mxu0 0.0
    %85 = vmatprep.subr.mxu0 0.0
    %86 = vmatpush1.msra.mxu0 0.0
    %87 = vmatprep.subr.mxu0 0.0
    %88 = vmatpush1.msra.mxu0 0.0
    %89 = vmatprep.subr.mxu0 0.0
    %90 = vmatpush1.msra.mxu0 0.0
    %91 = vmatprep.subr.mxu0 0.0
    %92 = vmatpush1.msra.mxu0 0.0
    %93 = vmatprep.subr.mxu0 0.0
    %94 = vmatpush1.msra.mxu0 0.0
    %95 = vmatprep.subr.mxu0 0.0
    %96 = vmatpush1.msra.mxu0 0.0
    %97 = vmatprep.subr.mxu0 0.0
    %98 = vmatpush1.msra.mxu0 0.0
    %99 = vmatprep.subr.mxu0 0.0
    %100 = vmatpush1.msra.mxu0 0.0
    %101 = vmatprep.subr.mxu0 0.0
    %102 = vmatpush1.msra.mxu0 0.0
    %103 = vmatprep.subr.mxu0 0.0
    %104 = vmatpush1.msra.mxu0 0.0
    %105 = vmatprep.subr.mxu0 0.0
    %106 = vmatpush1.msra.mxu0 0.0
    %107 = vmatprep.subr.mxu0 0.0
    %108 = vmatpush1.msra.mxu0 0.0
    %109 = vmatprep.subr.mxu0 0.0
    %110 = vmatpush1.msra.mxu0 0.0
    %111 = vmatprep.subr.mxu0 0.0
    %112 = vmatpush1.msra.mxu0 0.0
    %113 = vmatprep.subr.mxu0 0.0
    %114 = vmatpush1.msra.mxu0 0.0
    %115 = vmatprep.subr.mxu0 0.0
    %116 = vmatpush1.msra.mxu0 0.0
    %117 = vmatprep.subr.mxu0 0.0
    %118 = vmatpush1.msra.mxu0 0.0
    %119 = vmatprep.subr.mxu0 0.0
    %120 = vmatpush1.msra.mxu0 0.0
    %121 = vmatprep.subr.mxu0 0.0
    %122 = vmatpush1.msra.mxu0 0.0
    %123 = vmatprep.subr.mxu0 0.0
    %124 = vmatpush1.msra.mxu0 0.0
    %125 = vmatprep.subr.mxu0 0.0
    %126 = vmatpush1.msra.mxu0 0.0
    %127 = vmatprep.subr.mxu0 0.0
    %128 = vmatpush1.msra.mxu0 0.0
    %129 = vmatprep.mubr.f32.mxu0 0.0
    %130 = vmatmul.mubr.f32.gmra.mrb[0].mxu0 %v42
    %v131 = vpop.f32.mrb[0].mxu0
    %v132 = vadd.f32 %v39, %v131
    %v133 = vpop.f32.mrb[0].mxu0
    %134 = vmatprep.mubr.f32.mxu0 0.0
    %135 = vmatmul.mubr.f32.gmra.mrb[0].mxu0 %v45
    %v136 = vpop.f32.mrb[0].mxu0
    %v137 = vadd.f32 %v39, %v136
    %v138 = vpop.f32.mrb[0].mxu0
    %139 = vmatprep.mubr.f32.mxu0 0.0
    %140 = vmatmul.mubr.f32.gmra.mrb[0].mxu0 %v48
    %v141 = vpop.f32.mrb[0].mxu0
    %v142 = vadd.f32 %v39, %v141
    %v143 = vpop.f32.mrb[0].mxu0
    %144 = vmatprep.mubr.f32.mxu0 0.0
    %145 = vmatmul.mubr.f32.gmra.mrb[0].mxu0 %v51
    %v146 = vpop.f32.mrb[0].mxu0
    %v147 = vadd.f32 %v39, %v146
    %v148 = vpop.f32.mrb[0].mxu0
    %149 = vmatprep.mubr.f32.mxu0 0.0
    %150 = vmatmul.mubr.f32.gmra.mrb[0].mxu0 %v54
    %v151 = vpop.f32.mrb[0].mxu0
    %v152 = vadd.f32 %v39, %v151
    %v153 = vpop.f32.mrb[0].mxu0
    %154 = vmatprep.mubr.f32.mxu0 0.0
    %155 = vmatmul.mubr.f32.gmra.mrb[0].mxu0 %v57
    %v156 = vpop.f32.mrb[0].mxu0
    %v157 = vadd.f32 %v39, %v156
    %v158 = vpop.f32.mrb[0].mxu0
    %159 = vmatprep.mubr.f32.mxu0 0.0
    %160 = vmatmul.mubr.f32.gmra.mrb[0].mxu0 %v60
    %v161 = vpop.f32.mrb[0].mxu0
    %v162 = vadd.f32 %v39, %v161
    %v163 = vpop.f32.mrb[0].mxu0
    %164 = vmatprep.mubr.f32.mxu0 0.0
    %165 = vmatmul.mubr.f32.gmra.mrb[0].mxu0 %v63
    %v166 = vpop.f32.mrb[0].mxu0
    %v167 = vadd.f32 %v39, %v166
    %v168 = vpop.f32.mrb[0].mxu0
    %169 = vdwg.mxu0
    %v170 = vmax.f32 %v132, 0.0
    %v171 = vmax.f32 %v137, 0.0
    %v172 = vmax.f32 %v142, 0.0
    %v173 = vmax.f32 %v147, 0.0
    %v174 = vmax.f32 %v152, 0.0
    %v175 = vmax.f32 %v157, 0.0
    %v176 = vmax.f32 %v162, 0.0
    %v177 = vmax.f32 %v167, 0.0
    %v178 = vld [vmem:[#allocation6 + $0x8] sm:$0xff]
    %v179 = vld [vmem:[#allocation6 + $0x10] sm:$0xff]
    %v180 = vld [vmem:[#allocation6 + $0x18] sm:$0xff]
    %v181 = vld [vmem:[#allocation6 + $0x68] sm:$0xff]
    %v182 = vld [vmem:[#allocation6 + $0x70] sm:$0xff]
    %v183 = vld [vmem:[#allocation6 + $0x78] sm:$0xff]
    %v184 = vld [vmem:[#allocation6 + $0xc8] sm:$0xff]
    %v185 = vld [vmem:[#allocation6 + $0xd0] sm:$0xff]
    %v186 = vld [vmem:[#allocation6 + $0xd8] sm:$0xff]
    %v187 = vld [vmem:[#allocation6 + $0x128] sm:$0xff]
    %v188 = vld [vmem:[#allocation6 + $0x130] sm:$0xff]
    %v189 = vld [vmem:[#allocation6 + $0x138] sm:$0xff]
    %s190 = scalar_lea.vmem [#allocation6], 392
    %v191 = vld [vmem:[%s190] ss:$8 sm:$0x7]
    %v193 = vlaneseq
    %v194 = vshrl.u32 %v193, 7
    %v195 = vsub.s32 0, %v194
    %v196 = vrot.slane %v191, %v195
    %v197 = vlaneseq
    %v198 = vshrl.u32 %v197, 7
    %v199 = vsub.s32 1, %v198
    %v200 = vrot.slane %v191, %v199
    %v201 = vlaneseq
    %v202 = vshrl.u32 %v201, 7
    %v203 = vsub.s32 2, %v202
    %v204 = vrot.slane %v191, %v203
    %vm208 = vcmask 261120
    %v210 = vsel %vm208, %v170, 0
    %v213 = vsel %vm208, %v171, 0
    %v216 = vsel %vm208, %v172, 0
    %v219 = vsel %vm208, %v173, 0
    %v222 = vsel %vm208, %v174, 0
    %v225 = vsel %vm208, %v175, 0
    %v228 = vsel %vm208, %v176, 0
    %v231 = vsel %vm208, %v177, 0
    %233 = vmatprep.subr.mxu0 %v179
    %234 = vmatpush1.msra.mxu0 %v178
    %235 = vmatprep.subr.mxu0 %v182
    %236 = vmatpush1.msra.mxu0 %v181
    %237 = vmatprep.subr.mxu0 %v185
    %238 = vmatpush1.msra.mxu0 %v184
    %239 = vmatprep.subr.mxu0 %v188
    %240 = vmatpush1.msra.mxu0 %v187
    %241 = vmatprep.subr.mxu0 0.0
    %242 = vmatpush1.msra.mxu0 0.0
    %243 = vmatprep.subr.mxu0 0.0
    %244 = vmatpush1.msra.mxu0 0.0
    %245 = vmatprep.subr.mxu0 0.0
    %246 = vmatpush1.msra.mxu0 0.0
    %247 = vmatprep.subr.mxu0 0.0
    %248 = vmatpush1.msra.mxu0 0.0
    %249 = vmatprep.subr.mxu0 0.0
    %250 = vmatpush1.msra.mxu0 0.0
    %251 = vmatprep.subr.mxu0 0.0
    %252 = vmatpush1.msra.mxu0 0.0
    %253 = vmatprep.subr.mxu0 0.0
    %254 = vmatpush1.msra.mxu0 0.0
    %255 = vmatprep.subr.mxu0 0.0
    %256 = vmatpush1.msra.mxu0 0.0
    %257 = vmatprep.subr.mxu0 0.0
    %258 = vmatpush1.msra.mxu0 0.0
    %259 = vmatprep.subr.mxu0 0.0
    %260 = vmatpush1.msra.mxu0 0.0
    %261 = vmatprep.subr.mxu0 0.0
    %262 = vmatpush1.msra.mxu0 0.0
    %263 = vmatprep.subr.mxu0 0.0
    %264 = vmatpush1.msra.mxu0 0.0
    %265 = vmatprep.subr.mxu0 0.0
    %266 = vmatpush1.msra.mxu0 0.0
    %267 = vmatprep.subr.mxu0 0.0
    %268 = vmatpush1.msra.mxu0 0.0
    %269 = vmatprep.subr.mxu0 0.0
    %270 = vmatpush1.msra.mxu0 0.0
    %271 = vmatprep.subr.mxu0 0.0
    %272 = vmatpush1.msra.mxu0 0.0
    %273 = vmatprep.subr.mxu0 0.0
    %274 = vmatpush1.msra.mxu0 0.0
    %275 = vmatprep.subr.mxu0 0.0
    %276 = vmatpush1.msra.mxu0 0.0
    %277 = vmatprep.subr.mxu0 0.0
    %278 = vmatpush1.msra.mxu0 0.0
    %279 = vmatprep.subr.mxu0 0.0
    %280 = vmatpush1.msra.mxu0 0.0
    %281 = vmatprep.subr.mxu0 0.0
    %282 = vmatpush1.msra.mxu0 0.0
    %283 = vmatprep.subr.mxu0 0.0
    %284 = vmatpush1.msra.mxu0 0.0
    %285 = vmatprep.subr.mxu0 0.0
    %286 = vmatpush1.msra.mxu0 0.0
    %287 = vmatprep.subr.mxu0 0.0
    %288 = vmatpush1.msra.mxu0 0.0
    %289 = vmatprep.subr.mxu0 0.0
    %290 = vmatpush1.msra.mxu0 0.0
    %291 = vmatprep.subr.mxu0 0.0
    %292 = vmatpush1.msra.mxu0 0.0
    %293 = vmatprep.subr.mxu0 0.0
    %294 = vmatpush1.msra.mxu0 0.0
    %295 = vmatprep.subr.mxu0 0.0
    %296 = vmatpush1.msra.mxu0 0.0
    %297 = vmatprep.mubr.f32.mxu0 0.0
    %298 = vmatmul.mubr.f32.gmra.mrb[0].mxu0 %v210
    %v299 = vpop.f32.mrb[0].mxu0
    %v300 = vadd.f32 %v196, %v299
    %v301 = vpop.f32.mrb[0].mxu0
    %v302 = vadd.f32 %v200, %v301
    %303 = vmatprep.mubr.f32.mxu0 0.0
    %304 = vmatmul.mubr.f32.gmra.mrb[0].mxu0 %v213
    %v305 = vpop.f32.mrb[0].mxu0
    %v306 = vadd.f32 %v196, %v305
    %v307 = vpop.f32.mrb[0].mxu0
    %v308 = vadd.f32 %v200, %v307
    %309 = vmatprep.mubr.f32.mxu0 0.0
    %310 = vmatmul.mubr.f32.gmra.mrb[0].mxu0 %v216
    %v311 = vpop.f32.mrb[0].mxu0
    %v312 = vadd.f32 %v196, %v311
    %v313 = vpop.f32.mrb[0].mxu0
    %v314 = vadd.f32 %v200, %v313
    %315 = vmatprep.mubr.f32.mxu0 0.0
    %316 = vmatmul.mubr.f32.gmra.mrb[0].mxu0 %v219
    %v317 = vpop.f32.mrb[0].mxu0
    %v318 = vadd.f32 %v196, %v317
    %v319 = vpop.f32.mrb[0].mxu0
    %v320 = vadd.f32 %v200, %v319
    %321 = vmatprep.mubr.f32.mxu0 0.0
    %322 = vmatmul.mubr.f32.gmra.mrb[0].mxu0 %v222
    %v323 = vpop.f32.mrb[0].mxu0
    %v324 = vadd.f32 %v196, %v323
    %v325 = vpop.f32.mrb[0].mxu0
    %v326 = vadd.f32 %v200, %v325
    %327 = vmatprep.mubr.f32.mxu0 0.0
    %328 = vmatmul.mubr.f32.gmra.mrb[0].mxu0 %v225
    %v329 = vpop.f32.mrb[0].mxu0
    %v330 = vadd.f32 %v196, %v329
    %v331 = vpop.f32.mrb[0].mxu0
    %v332 = vadd.f32 %v200, %v331
    %333 = vmatprep.mubr.f32.mxu0 0.0
    %334 = vmatmul.mubr.f32.gmra.mrb[0].mxu0 %v228
    %v335 = vpop.f32.mrb[0].mxu0
    %v336 = vadd.f32 %v196, %v335
    %v337 = vpop.f32.mrb[0].mxu0
    %v338 = vadd.f32 %v200, %v337
    %339 = vmatprep.mubr.f32.mxu0 0.0
    %340 = vmatmul.mubr.f32.gmra.mrb[0].mxu0 %v231
    %v341 = vpop.f32.mrb[0].mxu0
    %v342 = vadd.f32 %v196, %v341
    %v343 = vpop.f32.mrb[0].mxu0
    %v344 = vadd.f32 %v200, %v343
    %345 = vdwg.mxu0
    %346 = vmatprep.subr.mxu0 0.0
    %347 = vmatpush1.msra.mxu0 %v180
    %348 = vmatprep.subr.mxu0 0.0
    %349 = vmatpush1.msra.mxu0 %v183
    %350 = vmatprep.subr.mxu0 0.0
    %351 = vmatpush1.msra.mxu0 %v186
    %352 = vmatprep.subr.mxu0 0.0
    %353 = vmatpush1.msra.mxu0 %v189
    %354 = vmatprep.subr.mxu0 0.0
    %355 = vmatpush1.msra.mxu0 0.0
    %356 = vmatprep.subr.mxu0 0.0
    %357 = vmatpush1.msra.mxu0 0.0
    %358 = vmatprep.subr.mxu0 0.0
    %359 = vmatpush1.msra.mxu0 0.0
    %360 = vmatprep.subr.mxu0 0.0
    %361 = vmatpush1.msra.mxu0 0.0
    %362 = vmatprep.subr.mxu0 0.0
    %363 = vmatpush1.msra.mxu0 0.0
    %364 = vmatprep.subr.mxu0 0.0
    %365 = vmatpush1.msra.mxu0 0.0
    %366 = vmatprep.subr.mxu0 0.0
    %367 = vmatpush1.msra.mxu0 0.0
    %368 = vmatprep.subr.mxu0 0.0
    %369 = vmatpush1.msra.mxu0 0.0
    %370 = vmatprep.subr.mxu0 0.0
    %371 = vmatpush1.msra.mxu0 0.0
    %372 = vmatprep.subr.mxu0 0.0
    %373 = vmatpush1.msra.mxu0 0.0
    %374 = vmatprep.subr.mxu0 0.0
    %375 = vmatpush1.msra.mxu0 0.0
    %376 = vmatprep.subr.mxu0 0.0
    %377 = vmatpush1.msra.mxu0 0.0
    %378 = vmatprep.subr.mxu0 0.0
    %379 = vmatpush1.msra.mxu0 0.0
    %380 = vmatprep.subr.mxu0 0.0
    %381 = vmatpush1.msra.mxu0 0.0
    %382 = vmatprep.subr.mxu0 0.0
    %383 = vmatpush1.msra.mxu0 0.0
    %384 = vmatprep.subr.mxu0 0.0
    %385 = vmatpush1.msra.mxu0 0.0
    %386 = vmatprep.subr.mxu0 0.0
    %387 = vmatpush1.msra.mxu0 0.0
    %388 = vmatprep.subr.mxu0 0.0
    %389 = vmatpush1.msra.mxu0 0.0
    %390 = vmatprep.subr.mxu0 0.0
    %391 = vmatpush1.msra.mxu0 0.0
    %392 = vmatprep.subr.mxu0 0.0
    %393 = vmatpush1.msra.mxu0 0.0
    %394 = vmatprep.subr.mxu0 0.0
    %395 = vmatpush1.msra.mxu0 0.0
    %396 = vmatprep.subr.mxu0 0.0
    %397 = vmatpush1.msra.mxu0 0.0
    %398 = vmatprep.subr.mxu0 0.0
    %399 = vmatpush1.msra.mxu0 0.0
    %400 = vmatprep.subr.mxu0 0.0
    %401 = vmatpush1.msra.mxu0 0.0
    %402 = vmatprep.subr.mxu0 0.0
    %403 = vmatpush1.msra.mxu0 0.0
    %404 = vmatprep.subr.mxu0 0.0
    %405 = vmatpush1.msra.mxu0 0.0
    %406 = vmatprep.subr.mxu0 0.0
    %407 = vmatpush1.msra.mxu0 0.0
    %408 = vmatprep.subr.mxu0 0.0
    %409 = vmatpush1.msra.mxu0 0.0
    %410 = vmatprep.mubr.f32.mxu0 0.0
    %411 = vmatmul.mubr.f32.gmra.mrb[0].mxu0 %v210
    %v412 = vpop.f32.mrb[0].mxu0
    %v413 = vadd.f32 %v204, %v412
    %v414 = vpop.f32.mrb[0].mxu0
    %415 = vmatprep.mubr.f32.mxu0 0.0
    %416 = vmatmul.mubr.f32.gmra.mrb[0].mxu0 %v213
    %v417 = vpop.f32.mrb[0].mxu0
    %v418 = vadd.f32 %v204, %v417
    %v419 = vpop.f32.mrb[0].mxu0
    %420 = vmatprep.mubr.f32.mxu0 0.0
    %421 = vmatmul.mubr.f32.gmra.mrb[0].mxu0 %v216
    %v422 = vpop.f32.mrb[0].mxu0
    %v423 = vadd.f32 %v204, %v422
    %v424 = vpop.f32.mrb[0].mxu0
    %425 = vmatprep.mubr.f32.mxu0 0.0
    %426 = vmatmul.mubr.f32.gmra.mrb[0].mxu0 %v219
    %v427 = vpop.f32.mrb[0].mxu0
    %v428 = vadd.f32 %v204, %v427
    %v429 = vpop.f32.mrb[0].mxu0
    %430 = vmatprep.mubr.f32.mxu0 0.0
    %431 = vmatmul.mubr.f32.gmra.mrb[0].mxu0 %v222
    %v432 = vpop.f32.mrb[0].mxu0
    %v433 = vadd.f32 %v204, %v432
    %v434 = vpop.f32.mrb[0].mxu0
    %435 = vmatprep.mubr.f32.mxu0 0.0
    %436 = vmatmul.mubr.f32.gmra.mrb[0].mxu0 %v225
    %v437 = vpop.f32.mrb[0].mxu0
    %v438 = vadd.f32 %v204, %v437
    %v439 = vpop.f32.mrb[0].mxu0
    %440 = vmatprep.mubr.f32.mxu0 0.0
    %441 = vmatmul.mubr.f32.gmra.mrb[0].mxu0 %v228
    %v442 = vpop.f32.mrb[0].mxu0
    %v443 = vadd.f32 %v204, %v442
    %v444 = vpop.f32.mrb[0].mxu0
    %445 = vmatprep.mubr.f32.mxu0 0.0
    %446 = vmatmul.mubr.f32.gmra.mrb[0].mxu0 %v231
    %v447 = vpop.f32.mrb[0].mxu0
    %v448 = vadd.f32 %v204, %v447
    %v449 = vpop.f32.mrb[0].mxu0
    %450 = vdwg.mxu0
    %451 = vst [vmem:[#allocation2] sm:$0xff] %v300
    %452 = vst [vmem:[#allocation2 + $0x8] sm:$0xff] %v302
    %453 = vst.msk [vmem:[#allocation2 + $0x10] sm:$0xff] %vm208, %v413
    %454 = vst [vmem:[#allocation2 + $0x18] sm:$0xff] %v306
    %455 = vst [vmem:[#allocation2 + $0x20] sm:$0xff] %v308
    %456 = vst.msk [vmem:[#allocation2 + $0x28] sm:$0xff] %vm208, %v418
    %457 = vst [vmem:[#allocation2 + $0x30] sm:$0xff] %v312
    %458 = vst [vmem:[#allocation2 + $0x38] sm:$0xff] %v314
    %459 = vst.msk [vmem:[#allocation2 + $0x40] sm:$0xff] %vm208, %v423
    %460 = vst [vmem:[#allocation2 + $0x48] sm:$0xff] %v318
    %461 = vst [vmem:[#allocation2 + $0x50] sm:$0xff] %v320
    %462 = vst.msk [vmem:[#allocation2 + $0x58] sm:$0xff] %vm208, %v428
    %463 = vst [vmem:[#allocation2 + $0x60] sm:$0xff] %v324
    %464 = vst [vmem:[#allocation2 + $0x68] sm:$0xff] %v326
    %465 = vst.msk [vmem:[#allocation2 + $0x70] sm:$0xff] %vm208, %v433
    %466 = vst [vmem:[#allocation2 + $0x78] sm:$0xff] %v330
    %467 = vst [vmem:[#allocation2 + $0x80] sm:$0xff] %v332
    %468 = vst.msk [vmem:[#allocation2 + $0x88] sm:$0xff] %vm208, %v438
    %469 = vst [vmem:[#allocation2 + $0x90] sm:$0xff] %v336
    %470 = vst [vmem:[#allocation2 + $0x98] sm:$0xff] %v338
    %471 = vst.msk [vmem:[#allocation2 + $0xa0] sm:$0xff] %vm208, %v443
    %472 = vst [vmem:[#allocation2 + $0xa8] sm:$0xff] %v342
    %473 = vst [vmem:[#allocation2 + $0xb0] sm:$0xff] %v344
    %474 = vst.msk [vmem:[#allocation2 + $0xb8] sm:$0xff] %vm208, %v448
    %s475 = scalar_lea.vmem [#allocation6], 416
    %v476 = vld [vmem:[%s475] ss:$8 sm:$0x7]
    %v478 = vlaneseq
    %v479 = vshrl.u32 %v478, 7
    %v480 = vsub.s32 0, %v479
    %v481 = vrot.slane %v476, %v480
    %v482 = vlaneseq
    %v483 = vshrl.u32 %v482, 7
    %v484 = vsub.s32 1, %v483
    %v485 = vrot.slane %v476, %v484
    %v486 = vlaneseq
    %v487 = vshrl.u32 %v486, 7
    %v488 = vsub.s32 2, %v487
    %v489 = vrot.slane %v476, %v488
    %v493 = vld [vmem:[#allocation6 + $0x1b8] ss:$0 sm:$0xff]
    %v494 = vld [vmem:[#allocation2] sm:$0xff]
    %v495 = vld [vmem:[#allocation2 + $0x8] sm:$0xff]
    %v496 = vld [vmem:[#allocation2 + $0x10] sm:$0xff]
    %v497 = vld [vmem:[%s1] sm:$0xff]
    %498 = vst.msk [vmem:[#allocation3] sm:$0xff] %vm208, 0.0
    %v499 = vld [vmem:[#allocation6 + $0x20] sm:$0xff]
    %v500 = vld [vmem:[#allocation6 + $0x28] sm:$0xff]
    %v501 = vld [vmem:[#allocation6 + $0x30] sm:$0xff]
    %v502 = vld [vmem:[#allocation6 + $0x80] sm:$0xff]
    %v503 = vld [vmem:[#allocation6 + $0x88] sm:$0xff]
    %v504 = vld [vmem:[#allocation6 + $0x90] sm:$0xff]
    %v505 = vld [vmem:[#allocation6 + $0xe0] sm:$0xff]
    %v506 = vld [vmem:[#allocation6 + $0xe8] sm:$0xff]
    %v507 = vld [vmem:[#allocation6 + $0xf0] sm:$0xff]
    %v508 = vld [vmem:[#allocation6 + $0x140] sm:$0xff]
    %v509 = vld [vmem:[#allocation6 + $0x148] sm:$0xff]
    %v510 = vld [vmem:[#allocation6 + $0x150] sm:$0xff]
    %v512 = vsel %vm208, 0.0, 0
    %514 = vmatprep.subr.mxu0 %v500
    %515 = vmatpush1.msra.mxu0 %v499
    %516 = vmatprep.subr.mxu0 %v503
    %517 = vmatpush1.msra.mxu0 %v502
    %518 = vmatprep.subr.mxu0 %v506
    %519 = vmatpush1.msra.mxu0 %v505
    %520 = vmatprep.subr.mxu0 %v509
    %521 = vmatpush1.msra.mxu0 %v508
    %522 = vmatprep.subr.mxu0 0.0
    %523 = vmatpush1.msra.mxu0 0.0
    %524 = vmatprep.subr.mxu0 0.0
    %525 = vmatpush1.msra.mxu0 0.0
    %526 = vmatprep.subr.mxu0 0.0
    %527 = vmatpush1.msra.mxu0 0.0
    %528 = vmatprep.subr.mxu0 0.0
    %529 = vmatpush1.msra.mxu0 0.0
    %530 = vmatprep.subr.mxu0 0.0
    %531 = vmatpush1.msra.mxu0 0.0
    %532 = vmatprep.subr.mxu0 0.0
    %533 = vmatpush1.msra.mxu0 0.0
    %534 = vmatprep.subr.mxu0 0.0
    %535 = vmatpush1.msra.mxu0 0.0
    %536 = vmatprep.subr.mxu0 0.0
    %537 = vmatpush1.msra.mxu0 0.0
    %538 = vmatprep.subr.mxu0 0.0
    %539 = vmatpush1.msra.mxu0 0.0
    %540 = vmatprep.subr.mxu0 0.0
    %541 = vmatpush1.msra.mxu0 0.0
    %542 = vmatprep.subr.mxu0 0.0
    %543 = vmatpush1.msra.mxu0 0.0
    %544 = vmatprep.subr.mxu0 0.0
    %545 = vmatpush1.msra.mxu0 0.0
    %546 = vmatprep.subr.mxu0 0.0
    %547 = vmatpush1.msra.mxu0 0.0
    %548 = vmatprep.subr.mxu0 0.0
    %549 = vmatpush1.msra.mxu0 0.0
    %550 = vmatprep.subr.mxu0 0.0
    %551 = vmatpush1.msra.mxu0 0.0
    %552 = vmatprep.subr.mxu0 0.0
    %553 = vmatpush1.msra.mxu0 0.0
    %554 = vmatprep.subr.mxu0 0.0
    %555 = vmatpush1.msra.mxu0 0.0
    %556 = vmatprep.subr.mxu0 0.0
    %557 = vmatpush1.msra.mxu0 0.0
    %558 = vmatprep.subr.mxu0 0.0
    %559 = vmatpush1.msra.mxu0 0.0
    %560 = vmatprep.subr.mxu0 0.0
    %561 = vmatpush1.msra.mxu0 0.0
    %562 = vmatprep.subr.mxu0 0.0
    %563 = vmatpush1.msra.mxu0 0.0
    %564 = vmatprep.subr.mxu0 0.0
    %565 = vmatpush1.msra.mxu0 0.0
    %566 = vmatprep.subr.mxu0 0.0
    %567 = vmatpush1.msra.mxu0 0.0
    %568 = vmatprep.subr.mxu0 0.0
    %569 = vmatpush1.msra.mxu0 0.0
    %570 = vmatprep.subr.mxu0 0.0
    %571 = vmatpush1.msra.mxu0 0.0
    %572 = vmatprep.subr.mxu0 0.0
    %573 = vmatpush1.msra.mxu0 0.0
    %574 = vmatprep.subr.mxu0 0.0
    %575 = vmatpush1.msra.mxu0 0.0
    %576 = vmatprep.subr.mxu0 0.0
    %577 = vmatpush1.msra.mxu0 0.0
    %578 = vmatprep.mubr.f32.mxu0 0.0
    %579 = vmatmul.mubr.f32.gmra.mrb[0].mxu0 %v512
    %v580 = vpop.f32.mrb[0].mxu0
    %v581 = vadd.f32 %v481, %v580
    %v582 = vpop.f32.mrb[0].mxu0
    %v583 = vadd.f32 %v485, %v582
    %584 = vdwg.mxu0
    %585 = vmatprep.subr.mxu0 0.0
    %586 = vmatpush1.msra.mxu0 %v501
    %587 = vmatprep.subr.mxu0 0.0
    %588 = vmatpush1.msra.mxu0 %v504
    %589 = vmatprep.subr.mxu0 0.0
    %590 = vmatpush1.msra.mxu0 %v507
    %591 = vmatprep.subr.mxu0 0.0
    %592 = vmatpush1.msra.mxu0 %v510
    %593 = vmatprep.subr.mxu0 0.0
    %594 = vmatpush1.msra.mxu0 0.0
    %595 = vmatprep.subr.mxu0 0.0
    %596 = vmatpush1.msra.mxu0 0.0
    %597 = vmatprep.subr.mxu0 0.0
    %598 = vmatpush1.msra.mxu0 0.0
    %599 = vmatprep.subr.mxu0 0.0
    %600 = vmatpush1.msra.mxu0 0.0
    %601 = vmatprep.subr.mxu0 0.0
    %602 = vmatpush1.msra.mxu0 0.0
    %603 = vmatprep.subr.mxu0 0.0
    %604 = vmatpush1.msra.mxu0 0.0
    %605 = vmatprep.subr.mxu0 0.0
    %606 = vmatpush1.msra.mxu0 0.0
    %607 = vmatprep.subr.mxu0 0.0
    %608 = vmatpush1.msra.mxu0 0.0
    %609 = vmatprep.subr.mxu0 0.0
    %610 = vmatpush1.msra.mxu0 0.0
    %611 = vmatprep.subr.mxu0 0.0
    %612 = vmatpush1.msra.mxu0 0.0
    %613 = vmatprep.subr.mxu0 0.0
    %614 = vmatpush1.msra.mxu0 0.0
    %615 = vmatprep.subr.mxu0 0.0
    %616 = vmatpush1.msra.mxu0 0.0
    %617 = vmatprep.subr.mxu0 0.0
    %618 = vmatpush1.msra.mxu0 0.0
    %619 = vmatprep.subr.mxu0 0.0
    %620 = vmatpush1.msra.mxu0 0.0
    %621 = vmatprep.subr.mxu0 0.0
    %622 = vmatpush1.msra.mxu0 0.0
    %623 = vmatprep.subr.mxu0 0.0
    %624 = vmatpush1.msra.mxu0 0.0
    %625 = vmatprep.subr.mxu0 0.0
    %626 = vmatpush1.msra.mxu0 0.0
    %627 = vmatprep.subr.mxu0 0.0
    %628 = vmatpush1.msra.mxu0 0.0
    %629 = vmatprep.subr.mxu0 0.0
    %630 = vmatpush1.msra.mxu0 0.0
    %631 = vmatprep.subr.mxu0 0.0
    %632 = vmatpush1.msra.mxu0 0.0
    %633 = vmatprep.subr.mxu0 0.0
    %634 = vmatpush1.msra.mxu0 0.0
    %635 = vmatprep.subr.mxu0 0.0
    %636 = vmatpush1.msra.mxu0 0.0
    %637 = vmatprep.subr.mxu0 0.0
    %638 = vmatpush1.msra.mxu0 0.0
    %639 = vmatprep.subr.mxu0 0.0
    %640 = vmatpush1.msra.mxu0 0.0
    %641 = vmatprep.subr.mxu0 0.0
    %642 = vmatpush1.msra.mxu0 0.0
    %643 = vmatprep.subr.mxu0 0.0
    %644 = vmatpush1.msra.mxu0 0.0
    %645 = vmatprep.subr.mxu0 0.0
    %646 = vmatpush1.msra.mxu0 0.0
    %647 = vmatprep.subr.mxu0 0.0
    %648 = vmatpush1.msra.mxu0 0.0
    %649 = vmatprep.mubr.f32.mxu0 0.0
    %650 = vmatmul.mubr.f32.gmra.mrb[0].mxu0 %v512
    %v651 = vpop.f32.mrb[0].mxu0
    %v652 = vadd.f32 %v489, %v651
    %v653 = vpop.f32.mrb[0].mxu0
    %654 = vdwg.mxu0
    %v655 = vadd.f32 %v494, %v581
    %vm656 = vcmask 523264
    %657 = vst.msk [vmem:[#allocation4] sm:$0xff] %vm656, %v655
    %v658 = vmul.f32 %v655, 1.442695
    %v659 = vpow.pop %v658
    %661 = vrot.lane.b32.xlu0 %v497, 32
    %v662 = vpop.permute.xlu0 %661
    %v664 = vmul.f32 %v659, %v662
    %666 = vrot.lane.b32.xlu0 %v664, 96
    %v667 = vpop.permute.xlu0 %666
    %v669 = vadd.f32 %v655, %v667
    %v670 = vld [vmem:[#allocation6 + $0x38] sm:$0xff]
    %v671 = vld [vmem:[#allocation6 + $0x98] sm:$0xff]
    %v672 = vld [vmem:[#allocation6 + $0xf8] sm:$0xff]
    %v673 = vld [vmem:[#allocation6 + $0x158] sm:$0xff]
    %v675 = vsel %vm208, %v669, 0
    %677 = vmatprep.subr.mxu0 0.0
    %678 = vmatpush1.msra.mxu0 %v670
    %679 = vmatprep.subr.mxu0 0.0
    %680 = vmatpush1.msra.mxu0 %v671
    %681 = vmatprep.subr.mxu0 0.0
    %682 = vmatpush1.msra.mxu0 %v672
    %683 = vmatprep.subr.mxu0 0.0
    %684 = vmatpush1.msra.mxu0 %v673
    %685 = vmatprep.subr.mxu0 0.0
    %686 = vmatpush1.msra.mxu0 0.0
    %687 = vmatprep.subr.mxu0 0.0
    %688 = vmatpush1.msra.mxu0 0.0
    %689 = vmatprep.subr.mxu0 0.0
    %690 = vmatpush1.msra.mxu0 0.0
    %691 = vmatprep.subr.mxu0 0.0
    %692 = vmatpush1.msra.mxu0 0.0
    %693 = vmatprep.subr.mxu0 0.0
    %694 = vmatpush1.msra.mxu0 0.0
    %695 = vmatprep.subr.mxu0 0.0
    %696 = vmatpush1.msra.mxu0 0.0
    %697 = vmatprep.subr.mxu0 0.0
    %698 = vmatpush1.msra.mxu0 0.0
    %699 = vmatprep.subr.mxu0 0.0
    %700 = vmatpush1.msra.mxu0 0.0
    %701 = vmatprep.subr.mxu0 0.0
    %702 = vmatpush1.msra.mxu0 0.0
    %703 = vmatprep.subr.mxu0 0.0
    %704 = vmatpush1.msra.mxu0 0.0
    %705 = vmatprep.subr.mxu0 0.0
    %706 = vmatpush1.msra.mxu0 0.0
    %707 = vmatprep.subr.mxu0 0.0
    %708 = vmatpush1.msra.mxu0 0.0
    %709 = vmatprep.subr.mxu0 0.0
    %710 = vmatpush1.msra.mxu0 0.0
    %711 = vmatprep.subr.mxu0 0.0
    %712 = vmatpush1.msra.mxu0 0.0
    %713 = vmatprep.subr.mxu0 0.0
    %714 = vmatpush1.msra.mxu0 0.0
    %715 = vmatprep.subr.mxu0 0.0
    %716 = vmatpush1.msra.mxu0 0.0
    %717 = vmatprep.subr.mxu0 0.0
    %718 = vmatpush1.msra.mxu0 0.0
    %719 = vmatprep.subr.mxu0 0.0
    %720 = vmatpush1.msra.mxu0 0.0
    %721 = vmatprep.subr.mxu0 0.0
    %722 = vmatpush1.msra.mxu0 0.0
    %723 = vmatprep.subr.mxu0 0.0
    %724 = vmatpush1.msra.mxu0 0.0
    %725 = vmatprep.subr.mxu0 0.0
    %726 = vmatpush1.msra.mxu0 0.0
    %727 = vmatprep.subr.mxu0 0.0
    %728 = vmatpush1.msra.mxu0 0.0
    %729 = vmatprep.subr.mxu0 0.0
    %730 = vmatpush1.msra.mxu0 0.0
    %731 = vmatprep.subr.mxu0 0.0
    %732 = vmatpush1.msra.mxu0 0.0
    %733 = vmatprep.subr.mxu0 0.0
    %734 = vmatpush1.msra.mxu0 0.0
    %735 = vmatprep.subr.mxu0 0.0
    %736 = vmatpush1.msra.mxu0 0.0
    %737 = vmatprep.subr.mxu0 0.0
    %738 = vmatpush1.msra.mxu0 0.0
    %739 = vmatprep.subr.mxu0 0.0
    %740 = vmatpush1.msra.mxu0 0.0
    %741 = vmatprep.mubr.f32.mxu0 0.0
    %742 = vmatmul.mubr.f32.gmra.mrb[0].mxu0 %v675
    %v743 = vpop.f32.mrb[0].mxu0
    %v744 = vadd.f32 %v493, %v743
    %v745 = vpop.f32.mrb[0].mxu0
    %746 = vdwg.mxu0
    %v747 = vmax.f32 %v744, 0.0
    %748 = vst.msk [vmem:[#allocation5] sm:$0xff] %vm208, %v747
    %v749 = vld [vmem:[#allocation6 + $0x40] sm:$0xff]
    %v750 = vld [vmem:[#allocation6 + $0x48] sm:$0xff]
    %v751 = vld [vmem:[#allocation6 + $0xa0] sm:$0xff]
    %v752 = vld [vmem:[#allocation6 + $0xa8] sm:$0xff]
    %v753 = vld [vmem:[#allocation6 + $0x100] sm:$0xff]
    %v754 = vld [vmem:[#allocation6 + $0x108] sm:$0xff]
    %v755 = vld [vmem:[#allocation6 + $0x160] sm:$0xff]
    %v756 = vld [vmem:[#allocation6 + $0x168] sm:$0xff]
    %v758 = vsel %vm208, %v747, 0
    %760 = vmatprep.subr.mxu0 %v750
    %761 = vmatpush1.msra.mxu0 %v749
    %762 = vmatprep.subr.mxu0 %v752
    %763 = vmatpush1.msra.mxu0 %v751
    %764 = vmatprep.subr.mxu0 %v754
    %765 = vmatpush1.msra.mxu0 %v753
    %766 = vmatprep.subr.mxu0 %v756
    %767 = vmatpush1.msra.mxu0 %v755
    %768 = vmatprep.subr.mxu0 0.0
    %769 = vmatpush1.msra.mxu0 0.0
    %770 = vmatprep.subr.mxu0 0.0
    %771 = vmatpush1.msra.mxu0 0.0
    %772 = vmatprep.subr.mxu0 0.0
    %773 = vmatpush1.msra.mxu0 0.0
    %774 = vmatprep.subr.mxu0 0.0
    %775 = vmatpush1.msra.mxu0 0.0
    %776 = vmatprep.subr.mxu0 0.0
    %777 = vmatpush1.msra.mxu0 0.0
    %778 = vmatprep.subr.mxu0 0.0
    %779 = vmatpush1.msra.mxu0 0.0
    %780 = vmatprep.subr.mxu0 0.0
    %781 = vmatpush1.msra.mxu0 0.0
    %782 = vmatprep.subr.mxu0 0.0
    %783 = vmatpush1.msra.mxu0 0.0
    %784 = vmatprep.subr.mxu0 0.0
    %785 = vmatpush1.msra.mxu0 0.0
    %786 = vmatprep.subr.mxu0 0.0
    %787 = vmatpush1.msra.mxu0 0.0
    %788 = vmatprep.subr.mxu0 0.0
    %789 = vmatpush1.msra.mxu0 0.0
    %790 = vmatprep.subr.mxu0 0.0
    %791 = vmatpush1.msra.mxu0 0.0
    %792 = vmatprep.subr.mxu0 0.0
    %793 = vmatpush1.msra.mxu0 0.0
    %794 = vmatprep.subr.mxu0 0.0
    %795 = vmatpush1.msra.mxu0 0.0
    %796 = vmatprep.subr.mxu0 0.0
    %797 = vmatpush1.msra.mxu0 0.0
    %798 = vmatprep.subr.mxu0 0.0
    %799 = vmatpush1.msra.mxu0 0.0
    %800 = vmatprep.subr.mxu0 0.0
    %801 = vmatpush1.msra.mxu0 0.0
    %802 = vmatprep.subr.mxu0 0.0
    %803 = vmatpush1.msra.mxu0 0.0
    %804 = vmatprep.subr.mxu0 0.0
    %805 = vmatpush1.msra.mxu0 0.0
    %806 = vmatprep.subr.mxu0 0.0
    %807 = vmatpush1.msra.mxu0 0.0
    %808 = vmatprep.subr.mxu0 0.0
    %809 = vmatpush1.msra.mxu0 0.0
    %810 = vmatprep.subr.mxu0 0.0
    %811 = vmatpush1.msra.mxu0 0.0
    %812 = vmatprep.subr.mxu0 0.0
    %813 = vmatpush1.msra.mxu0 0.0
    %814 = vmatprep.subr.mxu0 0.0
    %815 = vmatpush1.msra.mxu0 0.0
    %816 = vmatprep.subr.mxu0 0.0
    %817 = vmatpush1.msra.mxu0 0.0
    %818 = vmatprep.subr.mxu0 0.0
    %819 = vmatpush1.msra.mxu0 0.0
    %820 = vmatprep.subr.mxu0 0.0
    %821 = vmatpush1.msra.mxu0 0.0
    %822 = vmatprep.subr.mxu0 0.0
    %823 = vmatpush1.msra.mxu0 0.0
    %824 = vmatprep.mubr.f32.mxu0 0.0
    %825 = vmatmul.mubr.f32.gmra.mrb[0].mxu0 %v758
    %v826 = vpop.f32.mrb[0].mxu0
    %v827 = vadd.f32 0.0, %v826
    %v828 = vpop.f32.mrb[0].mxu0
    %v829 = vadd.f32 0.0, %v828
    %830 = vdwg.mxu0
    %832 = vrot.lane.b32.xlu0 %v827, 64
    %v833 = vpop.permute.xlu0 %832
    %v835 = vadd.f32 %v494, %v833
    %v836 = vadd.f32 %v495, %v833
    %v837 = vadd.f32 %v835, %v581
    %v838 = vxor.u32 %v837, 2147483648
    %v839 = vmul.f32 %v838, 1.442695
    %v840 = vpow.pop %v839
    %v841 = vadd.f32 %v840, 1.0
    %v842 = vrcp.pop %v841
    %v843 = vmul.f32 1.0, %v842
    %845 = vrot.lane.b32.xlu0 %v583, 64
    %v846 = vpop.permute.xlu0 %845
    %v848 = vmul.f32 %v843, %v846
    %850 = vrot.lane.b32.xlu0 %v848, 64
    %v851 = vpop.permute.xlu0 %850
    %v853 = vadd.f32 %v836, %v851
    %v854 = vtanh.pop %v853
    %v855 = vsub.f32 1.0, %v843
    %857 = vrot.lane.b32.xlu0 %v854, 96
    %v858 = vpop.permute.xlu0 %857
    %v860 = vmul.f32 %v855, %v858
    %v861 = vmul.f32 %v843, 0.0
    %v862 = vadd.f32 %v860, %v861
    %864 = vrot.lane.b32.xlu0 %v829, 64
    %v865 = vpop.permute.xlu0 %864
    %v866 = vsel %vm656, %v833, %v865
    %v869 = vadd.f32 %v495, %v866
    %v870 = vadd.f32 %v496, %v865
    %v871 = vadd.f32 %v869, %v583
    %v872 = vadd.f32 %v870, %v652
    %v873 = vxor.u32 %v871, 2147483648
    %v874 = vmul.f32 %v873, 1.442695
    %v875 = vpow.pop %v874
    %v876 = vadd.f32 %v875, 1.0
    %v877 = vrcp.pop %v876
    %v878 = vmul.f32 1.0, %v877
    %v879 = vtanh.pop %v871
    %v880 = vxor.u32 %v872, 2147483648
    %v881 = vmul.f32 %v880, 1.442695
    %v882 = vpow.pop %v881
    %v883 = vadd.f32 %v882, 1.0
    %v884 = vrcp.pop %v883
    %v885 = vmul.f32 1.0, %v884
    %v886 = vmul.f32 %v878, 0.0
    %888 = vrot.lane.b32.xlu0 %v879, 64
    %v889 = vpop.permute.xlu0 %888
    %v891 = vmul.f32 %v878, %v889
    %893 = vrot.lane.b32.xlu0 %v891, 32
    %v894 = vpop.permute.xlu0 %893
    %v896 = vadd.f32 %v886, %v894
    %v897 = vtanh.pop %v896
    %899 = vrot.lane.b32.xlu0 %v897, 64
    %v900 = vpop.permute.xlu0 %899
    %v902 = vmul.f32 %v885, %v900
    %904 = vrot.lane.b32.xlu0 %v902, 96
    %v905 = vpop.permute.xlu0 %904
    %v907 = vadd.f32 %v862, %v905
    %v908 = vld [vmem:[#allocation2 + $0x18] sm:$0xff]
    %v909 = vld [vmem:[#allocation2 + $0x20] sm:$0xff]
    %v910 = vld [vmem:[#allocation2 + $0x28] sm:$0xff]
    %v911 = vld [vmem:[%s1 + $0x8] sm:$0xff]
    %913 = vrot.lane.b32.xlu0 %v907, 32
    %v914 = vpop.permute.xlu0 %913
    %916 = vst.msk [vmem:[#allocation3 + $0x8] sm:$0xff] %vm208, %v914
    %v917 = vld [vmem:[#allocation6 + $0x20] sm:$0xff]
    %v918 = vld [vmem:[#allocation6 + $0x28] sm:$0xff]
    %v919 = vld [vmem:[#allocation6 + $0x30] sm:$0xff]
    %v920 = vld [vmem:[#allocation6 + $0x80] sm:$0xff]
    %v921 = vld [vmem:[#allocation6 + $0x88] sm:$0xff]
    %v922 = vld [vmem:[#allocation6 + $0x90] sm:$0xff]
    %v923 = vld [vmem:[#allocation6 + $0xe0] sm:$0xff]
    %v924 = vld [vmem:[#allocation6 + $0xe8] sm:$0xff]
    %v925 = vld [vmem:[#allocation6 + $0xf0] sm:$0xff]
    %v926 = vld [vmem:[#allocation6 + $0x140] sm:$0xff]
    %v927 = vld [vmem:[#allocation6 + $0x148] sm:$0xff]
    %v928 = vld [vmem:[#allocation6 + $0x150] sm:$0xff]
    %v929 = vsel %vm208, %v914, 0
    %931 = vmatprep.subr.mxu0 %v918
    %932 = vmatpush1.msra.mxu0 %v917
    %933 = vmatprep.subr.mxu0 %v921
    %934 = vmatpush1.msra.mxu0 %v920
    %935 = vmatprep.subr.mxu0 %v924
    %936 = vmatpush1.msra.mxu0 %v923
    %937 = vmatprep.subr.mxu0 %v927
    %938 = vmatpush1.msra.mxu0 %v926
    %939 = vmatprep.subr.mxu0 0.0
    %940 = vmatpush1.msra.mxu0 0.0
    %941 = vmatprep.subr.mxu0 0.0
    %942 = vmatpush1.msra.mxu0 0.0
    %943 = vmatprep.subr.mxu0 0.0
    %944 = vmatpush1.msra.mxu0 0.0
    %945 = vmatprep.subr.mxu0 0.0
    %946 = vmatpush1.msra.mxu0 0.0
    %947 = vmatprep.subr.mxu0 0.0
    %948 = vmatpush1.msra.mxu0 0.0
    %949 = vmatprep.subr.mxu0 0.0
    %950 = vmatpush1.msra.mxu0 0.0
    %951 = vmatprep.subr.mxu0 0.0
    %952 = vmatpush1.msra.mxu0 0.0
    %953 = vmatprep.subr.mxu0 0.0
    %954 = vmatpush1.msra.mxu0 0.0
    %955 = vmatprep.subr.mxu0 0.0
    %956 = vmatpush1.msra.mxu0 0.0
    %957 = vmatprep.subr.mxu0 0.0
    %958 = vmatpush1.msra.mxu0 0.0
    %959 = vmatprep.subr.mxu0 0.0
    %960 = vmatpush1.msra.mxu0 0.0
    %961 = vmatprep.subr.mxu0 0.0
    %962 = vmatpush1.msra.mxu0 0.0
    %963 = vmatprep.subr.mxu0 0.0
    %964 = vmatpush1.msra.mxu0 0.0
    %965 = vmatprep.subr.mxu0 0.0
    %966 = vmatpush1.msra.mxu0 0.0
    %967 = vmatprep.subr.mxu0 0.0
    %968 = vmatpush1.msra.mxu0 0.0
    %969 = vmatprep.subr.mxu0 0.0
    %970 = vmatpush1.msra.mxu0 0.0
    %971 = vmatprep.subr.mxu0 0.0
    %972 = vmatpush1.msra.mxu0 0.0
    %973 = vmatprep.subr.mxu0 0.0
    %974 = vmatpush1.msra.mxu0 0.0
    %975 = vmatprep.subr.mxu0 0.0
    %976 = vmatpush1.msra.mxu0 0.0
    %977 = vmatprep.subr.mxu0 0.0
    %978 = vmatpush1.msra.mxu0 0.0
    %979 = vmatprep.subr.mxu0 0.0
    %980 = vmatpush1.msra.mxu0 0.0
    %981 = vmatprep.subr.mxu0 0.0
    %982 = vmatpush1.msra.mxu0 0.0
    %983 = vmatprep.subr.mxu0 0.0
    %984 = vmatpush1.msra.mxu0 0.0
    %985 = vmatprep.subr.mxu0 0.0
    %986 = vmatpush1.msra.mxu0 0.0
    %987 = vmatprep.subr.mxu0 0.0
    %988 = vmatpush1.msra.mxu0 0.0
    %989 = vmatprep.subr.mxu0 0.0
    %990 = vmatpush1.msra.mxu0 0.0
    %991 = vmatprep.subr.mxu0 0.0
    %992 = vmatpush1.msra.mxu0 0.0
    %993 = vmatprep.subr.mxu0 0.0
    %994 = vmatpush1.msra.mxu0 0.0
    %995 = vmatprep.mubr.f32.mxu0 0.0
    %996 = vmatmul.mubr.f32.gmra.mrb[0].mxu0 %v929
    %v997 = vpop.f32.mrb[0].mxu0
    %v998 = vadd.f32 %v481, %v997
    %v999 = vpop.f32.mrb[0].mxu0
    %v1000 = vadd.f32 %v485, %v999
    %1001 = vdwg.mxu0
    %1002 = vmatprep.subr.mxu0 0.0
    %1003 = vmatpush1.msra.mxu0 %v919
    %1004 = vmatprep.subr.mxu0 0.0
    %1005 = vmatpush1.msra.mxu0 %v922
    %1006 = vmatprep.subr.mxu0 0.0
    %1007 = vmatpush1.msra.mxu0 %v925
    %1008 = vmatprep.subr.mxu0 0.0
    %1009 = vmatpush1.msra.mxu0 %v928
    %1010 = vmatprep.subr.mxu0 0.0
    %1011 = vmatpush1.msra.mxu0 0.0
    %1012 = vmatprep.subr.mxu0 0.0
    %1013 = vmatpush1.msra.mxu0 0.0
    %1014 = vmatprep.subr.mxu0 0.0
    %1015 = vmatpush1.msra.mxu0 0.0
    %1016 = vmatprep.subr.mxu0 0.0
    %1017 = vmatpush1.msra.mxu0 0.0
    %1018 = vmatprep.subr.mxu0 0.0
    %1019 = vmatpush1.msra.mxu0 0.0
    %1020 = vmatprep.subr.mxu0 0.0
    %1021 = vmatpush1.msra.mxu0 0.0
    %1022 = vmatprep.subr.mxu0 0.0
    %1023 = vmatpush1.msra.mxu0 0.0
    %1024 = vmatprep.subr.mxu0 0.0
    %1025 = vmatpush1.msra.mxu0 0.0
    %1026 = vmatprep.subr.mxu0 0.0
    %1027 = vmatpush1.msra.mxu0 0.0
    %1028 = vmatprep.subr.mxu0 0.0
    %1029 = vmatpush1.msra.mxu0 0.0
    %1030 = vmatprep.subr.mxu0 0.0
    %1031 = vmatpush1.msra.mxu0 0.0
    %1032 = vmatprep.subr.mxu0 0.0
    %1033 = vmatpush1.msra.mxu0 0.0
    %1034 = vmatprep.subr.mxu0 0.0
    %1035 = vmatpush1.msra.mxu0 0.0
    %1036 = vmatprep.subr.mxu0 0.0
    %1037 = vmatpush1.msra.mxu0 0.0
    %1038 = vmatprep.subr.mxu0 0.0
    %1039 = vmatpush1.msra.mxu0 0.0
    %1040 = vmatprep.subr.mxu0 0.0
    %1041 = vmatpush1.msra.mxu0 0.0
    %1042 = vmatprep.subr.mxu0 0.0
    %1043 = vmatpush1.msra.mxu0 0.0
    %1044 = vmatprep.subr.mxu0 0.0
    %1045 = vmatpush1.msra.mxu0 0.0
    %1046 = vmatprep.subr.mxu0 0.0
    %1047 = vmatpush1.msra.mxu0 0.0
    %1048 = vmatprep.subr.mxu0 0.0
    %1049 = vmatpush1.msra.mxu0 0.0
    %1050 = vmatprep.subr.mxu0 0.0
    %1051 = vmatpush1.msra.mxu0 0.0
    %1052 = vmatprep.subr.mxu0 0.0
    %1053 = vmatpush1.msra.mxu0 0.0
    %1054 = vmatprep.subr.mxu0 0.0
    %1055 = vmatpush1.msra.mxu0 0.0
    %1056 = vmatprep.subr.mxu0 0.0
    %1057 = vmatpush1.msra.mxu0 0.0
    %1058 = vmatprep.subr.mxu0 0.0
    %1059 = vmatpush1.msra.mxu0 0.0
    %1060 = vmatprep.subr.mxu0 0.0
    %1061 = vmatpush1.msra.mxu0 0.0
    %1062 = vmatprep.subr.mxu0 0.0
    %1063 = vmatpush1.msra.mxu0 0.0
    %1064 = vmatprep.subr.mxu0 0.0
    %1065 = vmatpush1.msra.mxu0 0.0
    %1066 = vmatprep.mubr.f32.mxu0 0.0
    %1067 = vmatmul.mubr.f32.gmra.mrb[0].mxu0 %v929
    %v1068 = vpop.f32.mrb[0].mxu0
    %v1069 = vadd.f32 %v489, %v1068
    %v1070 = vpop.f32.mrb[0].mxu0
    %1071 = vdwg.mxu0
    %v1072 = vadd.f32 %v908, %v998
    %1073 = vst.msk [vmem:[#allocation4 + $0x8] sm:$0xff] %vm656, %v1072
    %v1074 = vmul.f32 %v1072, 1.442695
    %v1075 = vpow.pop %v1074
    %1077 = vrot.lane.b32.xlu0 %v911, 32
    %v1078 = vpop.permute.xlu0 %1077
    %v1080 = vmul.f32 %v1075, %v1078
    %1082 = vrot.lane.b32.xlu0 %v1080, 96
    %v1083 = vpop.permute.xlu0 %1082
    %v1085 = vadd.f32 %v1072, %v1083
    %v1086 = vld [vmem:[#allocation6 + $0x38] sm:$0xff]
    %v1087 = vld [vmem:[#allocation6 + $0x98] sm:$0xff]
    %v1088 = vld [vmem:[#allocation6 + $0xf8] sm:$0xff]
    %v1089 = vld [vmem:[#allocation6 + $0x158] sm:$0xff]
    %v1091 = vsel %vm208, %v1085, 0
    %1093 = vmatprep.subr.mxu0 0.0
    %1094 = vmatpush1.msra.mxu0 %v1086
    %1095 = vmatprep.subr.mxu0 0.0
    %1096 = vmatpush1.msra.mxu0 %v1087
    %1097 = vmatprep.subr.mxu0 0.0
    %1098 = vmatpush1.msra.mxu0 %v1088
    %1099 = vmatprep.subr.mxu0 0.0
    %1100 = vmatpush1.msra.mxu0 %v1089
    %1101 = vmatprep.subr.mxu0 0.0
    %1102 = vmatpush1.msra.mxu0 0.0
    %1103 = vmatprep.subr.mxu0 0.0
    %1104 = vmatpush1.msra.mxu0 0.0
    %1105 = vmatprep.subr.mxu0 0.0
    %1106 = vmatpush1.msra.mxu0 0.0
    %1107 = vmatprep.subr.mxu0 0.0
    %1108 = vmatpush1.msra.mxu0 0.0
    %1109 = vmatprep.subr.mxu0 0.0
    %1110 = vmatpush1.msra.mxu0 0.0
    %1111 = vmatprep.subr.mxu0 0.0
    %1112 = vmatpush1.msra.mxu0 0.0
    %1113 = vmatprep.subr.mxu0 0.0
    %1114 = vmatpush1.msra.mxu0 0.0
    %1115 = vmatprep.subr.mxu0 0.0
    %1116 = vmatpush1.msra.mxu0 0.0
    %1117 = vmatprep.subr.mxu0 0.0
    %1118 = vmatpush1.msra.mxu0 0.0
    %1119 = vmatprep.subr.mxu0 0.0
    %1120 = vmatpush1.msra.mxu0 0.0
    %1121 = vmatprep.subr.mxu0 0.0
    %1122 = vmatpush1.msra.mxu0 0.0
    %1123 = vmatprep.subr.mxu0 0.0
    %1124 = vmatpush1.msra.mxu0 0.0
    %1125 = vmatprep.subr.mxu0 0.0
    %1126 = vmatpush1.msra.mxu0 0.0
    %1127 = vmatprep.subr.mxu0 0.0
    %1128 = vmatpush1.msra.mxu0 0.0
    %1129 = vmatprep.subr.mxu0 0.0
    %1130 = vmatpush1.msra.mxu0 0.0
    %1131 = vmatprep.subr.mxu0 0.0
    %1132 = vmatpush1.msra.mxu0 0.0
    %1133 = vmatprep.subr.mxu0 0.0
    %1134 = vmatpush1.msra.mxu0 0.0
    %1135 = vmatprep.subr.mxu0 0.0
    %1136 = vmatpush1.msra.mxu0 0.0
    %1137 = vmatprep.subr.mxu0 0.0
    %1138 = vmatpush1.msra.mxu0 0.0
    %1139 = vmatprep.subr.mxu0 0.0
    %1140 = vmatpush1.msra.mxu0 0.0
    %1141 = vmatprep.subr.mxu0 0.0
    %1142 = vmatpush1.msra.mxu0 0.0
    %1143 = vmatprep.subr.mxu0 0.0
    %1144 = vmatpush1.msra.mxu0 0.0
    %1145 = vmatprep.subr.mxu0 0.0
    %1146 = vmatpush1.msra.mxu0 0.0
    %1147 = vmatprep.subr.mxu0 0.0
    %1148 = vmatpush1.msra.mxu0 0.0
    %1149 = vmatprep.subr.mxu0 0.0
    %1150 = vmatpush1.msra.mxu0 0.0
    %1151 = vmatprep.subr.mxu0 0.0
    %1152 = vmatpush1.msra.mxu0 0.0
    %1153 = vmatprep.subr.mxu0 0.0
    %1154 = vmatpush1.msra.mxu0 0.0
    %1155 = vmatprep.subr.mxu0 0.0
    %1156 = vmatpush1.msra.mxu0 0.0
    %1157 = vmatprep.mubr.f32.mxu0 0.0
    %1158 = vmatmul.mubr.f32.gmra.mrb[0].mxu0 %v1091
    %v1159 = vpop.f32.mrb[0].mxu0
    %v1160 = vadd.f32 %v493, %v1159
    %v1161 = vpop.f32.mrb[0].mxu0
    %1162 = vdwg.mxu0
    %v1163 = vmax.f32 %v1160, 0.0
    %1164 = vst.msk [vmem:[#allocation5 + $0x8] sm:$0xff] %vm208, %v1163
    %v1165 = vld [vmem:[#allocation6 + $0x40] sm:$0xff]
    %v1166 = vld [vmem:[#allocation6 + $0x48] sm:$0xff]
    %v1167 = vld [vmem:[#allocation6 + $0xa0] sm:$0xff]
    %v1168 = vld [vmem:[#allocation6 + $0xa8] sm:$0xff]
    %v1169 = vld [vmem:[#allocation6 + $0x100] sm:$0xff]
    %v1170 = vld [vmem:[#allocation6 + $0x108] sm:$0xff]
    %v1171 = vld [vmem:[#allocation6 + $0x160] sm:$0xff]
    %v1172 = vld [vmem:[#allocation6 + $0x168] sm:$0xff]
    %v1174 = vsel %vm208, %v1163, 0
    %1176 = vmatprep.subr.mxu0 %v1166
    %1177 = vmatpush1.msra.mxu0 %v1165
    %1178 = vmatprep.subr.mxu0 %v1168
    %1179 = vmatpush1.msra.mxu0 %v1167
    %1180 = vmatprep.subr.mxu0 %v1170
    %1181 = vmatpush1.msra.mxu0 %v1169
    %1182 = vmatprep.subr.mxu0 %v1172
    %1183 = vmatpush1.msra.mxu0 %v1171
    %1184 = vmatprep.subr.mxu0 0.0
    %1185 = vmatpush1.msra.mxu0 0.0
    %1186 = vmatprep.subr.mxu0 0.0
    %1187 = vmatpush1.msra.mxu0 0.0
    %1188 = vmatprep.subr.mxu0 0.0
    %1189 = vmatpush1.msra.mxu0 0.0
    %1190 = vmatprep.subr.mxu0 0.0
    %1191 = vmatpush1.msra.mxu0 0.0
    %1192 = vmatprep.subr.mxu0 0.0
    %1193 = vmatpush1.msra.mxu0 0.0
    %1194 = vmatprep.subr.mxu0 0.0
    %1195 = vmatpush1.msra.mxu0 0.0
    %1196 = vmatprep.subr.mxu0 0.0
    %1197 = vmatpush1.msra.mxu0 0.0
    %1198 = vmatprep.subr.mxu0 0.0
    %1199 = vmatpush1.msra.mxu0 0.0
    %1200 = vmatprep.subr.mxu0 0.0
    %1201 = vmatpush1.msra.mxu0 0.0
    %1202 = vmatprep.subr.mxu0 0.0
    %1203 = vmatpush1.msra.mxu0 0.0
    %1204 = vmatprep.subr.mxu0 0.0
    %1205 = vmatpush1.msra.mxu0 0.0
    %1206 = vmatprep.subr.mxu0 0.0
    %1207 = vmatpush1.msra.mxu0 0.0
    %1208 = vmatprep.subr.mxu0 0.0
    %1209 = vmatpush1.msra.mxu0 0.0
    %1210 = vmatprep.subr.mxu0 0.0
    %1211 = vmatpush1.msra.mxu0 0.0
    %1212 = vmatprep.subr.mxu0 0.0
    %1213 = vmatpush1.msra.mxu0 0.0
    %1214 = vmatprep.subr.mxu0 0.0
    %1215 = vmatpush1.msra.mxu0 0.0
    %1216 = vmatprep.subr.mxu0 0.0
    %1217 = vmatpush1.msra.mxu0 0.0
    %1218 = vmatprep.subr.mxu0 0.0
    %1219 = vmatpush1.msra.mxu0 0.0
    %1220 = vmatprep.subr.mxu0 0.0
    %1221 = vmatpush1.msra.mxu0 0.0
    %1222 = vmatprep.subr.mxu0 0.0
    %1223 = vmatpush1.msra.mxu0 0.0
    %1224 = vmatprep.subr.mxu0 0.0
    %1225 = vmatpush1.msra.mxu0 0.0
    %1226 = vmatprep.subr.mxu0 0.0
    %1227 = vmatpush1.msra.mxu0 0.0
    %1228 = vmatprep.subr.mxu0 0.0
    %1229 = vmatpush1.msra.mxu0 0.0
    %1230 = vmatprep.subr.mxu0 0.0
    %1231 = vmatpush1.msra.mxu0 0.0
    %1232 = vmatprep.subr.mxu0 0.0
    %1233 = vmatpush1.msra.mxu0 0.0
    %1234 = vmatprep.subr.mxu0 0.0
    %1235 = vmatpush1.msra.mxu0 0.0
    %1236 = vmatprep.subr.mxu0 0.0
    %1237 = vmatpush1.msra.mxu0 0.0
    %1238 = vmatprep.subr.mxu0 0.0
    %1239 = vmatpush1.msra.mxu0 0.0
    %1240 = vmatprep.mubr.f32.mxu0 0.0
    %1241 = vmatmul.mubr.f32.gmra.mrb[0].mxu0 %v1174
    %v1242 = vpop.f32.mrb[0].mxu0
    %v1243 = vadd.f32 0.0, %v1242
    %v1244 = vpop.f32.mrb[0].mxu0
    %v1245 = vadd.f32 0.0, %v1244
    %1246 = vdwg.mxu0
    %1248 = vrot.lane.b32.xlu0 %v1243, 64
    %v1249 = vpop.permute.xlu0 %1248
    %v1251 = vadd.f32 %v908, %v1249
    %v1252 = vadd.f32 %v909, %v1249
    %v1253 = vadd.f32 %v1251, %v998
    %v1254 = vxor.u32 %v1253, 2147483648
    %v1255 = vmul.f32 %v1254, 1.442695
    %v1256 = vpow.pop %v1255
    %v1257 = vadd.f32 %v1256, 1.0
    %v1258 = vrcp.pop %v1257
    %v1259 = vmul.f32 1.0, %v1258
    %1261 = vrot.lane.b32.xlu0 %v1000, 64
    %v1262 = vpop.permute.xlu0 %1261
    %v1264 = vmul.f32 %v1259, %v1262
    %1266 = vrot.lane.b32.xlu0 %v1264, 64
    %v1267 = vpop.permute.xlu0 %1266
    %v1269 = vadd.f32 %v1252, %v1267
    %v1270 = vtanh.pop %v1269
    %v1271 = vsub.f32 1.0, %v1259
    %1273 = vrot.lane.b32.xlu0 %v1270, 96
    %v1274 = vpop.permute.xlu0 %1273
    %v1276 = vmul.f32 %v1271, %v1274
    %v1277 = vmul.f32 %v1259, %v907
    %v1278 = vadd.f32 %v1276, %v1277
    %1280 = vrot.lane.b32.xlu0 %v1245, 64
    %v1281 = vpop.permute.xlu0 %1280
    %v1282 = vsel %vm656, %v1249, %v1281
    %v1285 = vadd.f32 %v909, %v1282
    %v1286 = vadd.f32 %v910, %v1281
    %v1287 = vadd.f32 %v1285, %v1000
    %v1288 = vadd.f32 %v1286, %v1069
    %v1289 = vxor.u32 %v1287, 2147483648
    %v1290 = vmul.f32 %v1289, 1.442695
    %v1291 = vpow.pop %v1290
    %v1292 = vadd.f32 %v1291, 1.0
    %v1293 = vrcp.pop %v1292
    %v1294 = vmul.f32 1.0, %v1293
    %v1295 = vtanh.pop %v1287
    %v1296 = vxor.u32 %v1288, 2147483648
    %v1297 = vmul.f32 %v1296, 1.442695
    %v1298 = vpow.pop %v1297
    %v1299 = vadd.f32 %v1298, 1.0
    %v1300 = vrcp.pop %v1299
    %v1301 = vmul.f32 1.0, %v1300
    %v1302 = vmul.f32 %v1294, %v896
    %1304 = vrot.lane.b32.xlu0 %v1295, 64
    %v1305 = vpop.permute.xlu0 %1304
    %v1307 = vmul.f32 %v1294, %v1305
    %1309 = vrot.lane.b32.xlu0 %v1307, 32
    %v1310 = vpop.permute.xlu0 %1309
    %v1312 = vadd.f32 %v1302, %v1310
    %v1313 = vtanh.pop %v1312
    %1315 = vrot.lane.b32.xlu0 %v1313, 64
    %v1316 = vpop.permute.xlu0 %1315
    %v1318 = vmul.f32 %v1301, %v1316
    %1320 = vrot.lane.b32.xlu0 %v1318, 96
    %v1321 = vpop.permute.xlu0 %1320
    %v1323 = vadd.f32 %v1278, %v1321
    %v1324 = vld [vmem:[#allocation2 + $0x30] sm:$0xff]
    %v1325 = vld [vmem:[#allocation2 + $0x38] sm:$0xff]
    %v1326 = vld [vmem:[#allocation2 + $0x40] sm:$0xff]
    %v1327 = vld [vmem:[%s1 + $0x10] sm:$0xff]
    %1329 = vrot.lane.b32.xlu0 %v1323, 32
    %v1330 = vpop.permute.xlu0 %1329
    %1332 = vst.msk [vmem:[#allocation3 + $0x10] sm:$0xff] %vm208, %v1330
    %v1333 = vld [vmem:[#allocation6 + $0x20] sm:$0xff]
    %v1334 = vld [vmem:[#allocation6 + $0x28] sm:$0xff]
    %v1335 = vld [vmem:[#allocation6 + $0x30] sm:$0xff]
    %v1336 = vld [vmem:[#allocation6 + $0x80] sm:$0xff]
    %v1337 = vld [vmem:[#allocation6 + $0x88] sm:$0xff]
    %v1338 = vld [vmem:[#allocation6 + $0x90] sm:$0xff]
    %v1339 = vld [vmem:[#allocation6 + $0xe0] sm:$0xff]
    %v1340 = vld [vmem:[#allocation6 + $0xe8] sm:$0xff]
    %v1341 = vld [vmem:[#allocation6 + $0xf0] sm:$0xff]
    %v1342 = vld [vmem:[#allocation6 + $0x140] sm:$0xff]
    %v1343 = vld [vmem:[#allocation6 + $0x148] sm:$0xff]
    %v1344 = vld [vmem:[#allocation6 + $0x150] sm:$0xff]
    %v1345 = vsel %vm208, %v1330, 0
    %1347 = vmatprep.subr.mxu0 %v1334
    %1348 = vmatpush1.msra.mxu0 %v1333
    %1349 = vmatprep.subr.mxu0 %v1337
    %1350 = vmatpush1.msra.mxu0 %v1336
    %1351 = vmatprep.subr.mxu0 %v1340
    %1352 = vmatpush1.msra.mxu0 %v1339
    %1353 = vmatprep.subr.mxu0 %v1343
    %1354 = vmatpush1.msra.mxu0 %v1342
    %1355 = vmatprep.subr.mxu0 0.0
    %1356 = vmatpush1.msra.mxu0 0.0
    %1357 = vmatprep.subr.mxu0 0.0
    %1358 = vmatpush1.msra.mxu0 0.0
    %1359 = vmatprep.subr.mxu0 0.0
    %1360 = vmatpush1.msra.mxu0 0.0
    %1361 = vmatprep.subr.mxu0 0.0
    %1362 = vmatpush1.msra.mxu0 0.0
    %1363 = vmatprep.subr.mxu0 0.0
    %1364 = vmatpush1.msra.mxu0 0.0
    %1365 = vmatprep.subr.mxu0 0.0
    %1366 = vmatpush1.msra.mxu0 0.0
    %1367 = vmatprep.subr.mxu0 0.0
    %1368 = vmatpush1.msra.mxu0 0.0
    %1369 = vmatprep.subr.mxu0 0.0
    %1370 = vmatpush1.msra.mxu0 0.0
    %1371 = vmatprep.subr.mxu0 0.0
    %1372 = vmatpush1.msra.mxu0 0.0
    %1373 = vmatprep.subr.mxu0 0.0
    %1374 = vmatpush1.msra.mxu0 0.0
    %1375 = vmatprep.subr.mxu0 0.0
    %1376 = vmatpush1.msra.mxu0 0.0
    %1377 = vmatprep.subr.mxu0 0.0
    %1378 = vmatpush1.msra.mxu0 0.0
    %1379 = vmatprep.subr.mxu0 0.0
    %1380 = vmatpush1.msra.mxu0 0.0
    %1381 = vmatprep.subr.mxu0 0.0
    %1382 = vmatpush1.msra.mxu0 0.0
    %1383 = vmatprep.subr.mxu0 0.0
    %1384 = vmatpush1.msra.mxu0 0.0
    %1385 = vmatprep.subr.mxu0 0.0
    %1386 = vmatpush1.msra.mxu0 0.0
    %1387 = vmatprep.subr.mxu0 0.0
    %1388 = vmatpush1.msra.mxu0 0.0
    %1389 = vmatprep.subr.mxu0 0.0
    %1390 = vmatpush1.msra.mxu0 0.0
    %1391 = vmatprep.subr.mxu0 0.0
    %1392 = vmatpush1.msra.mxu0 0.0
    %1393 = vmatprep.subr.mxu0 0.0
    %1394 = vmatpush1.msra.mxu0 0.0
    %1395 = vmatprep.subr.mxu0 0.0
    %1396 = vmatpush1.msra.mxu0 0.0
    %1397 = vmatprep.subr.mxu0 0.0
    %1398 = vmatpush1.msra.mxu0 0.0
    %1399 = vmatprep.subr.mxu0 0.0
    %1400 = vmatpush1.msra.mxu0 0.0
    %1401 = vmatprep.subr.mxu0 0.0
    %1402 = vmatpush1.msra.mxu0 0.0
    %1403 = vmatprep.subr.mxu0 0.0
    %1404 = vmatpush1.msra.mxu0 0.0
    %1405 = vmatprep.subr.mxu0 0.0
    %1406 = vmatpush1.msra.mxu0 0.0
    %1407 = vmatprep.subr.mxu0 0.0
    %1408 = vmatpush1.msra.mxu0 0.0
    %1409 = vmatprep.subr.mxu0 0.0
    %1410 = vmatpush1.msra.mxu0 0.0
    %1411 = vmatprep.mubr.f32.mxu0 0.0
    %1412 = vmatmul.mubr.f32.gmra.mrb[0].mxu0 %v1345
    %v1413 = vpop.f32.mrb[0].mxu0
    %v1414 = vadd.f32 %v481, %v1413
    %v1415 = vpop.f32.mrb[0].mxu0
    %v1416 = vadd.f32 %v485, %v1415
    %1417 = vdwg.mxu0
    %1418 = vmatprep.subr.mxu0 0.0
    %1419 = vmatpush1.msra.mxu0 %v1335
    %1420 = vmatprep.subr.mxu0 0.0
    %1421 = vmatpush1.msra.mxu0 %v1338
    %1422 = vmatprep.subr.mxu0 0.0
    %1423 = vmatpush1.msra.mxu0 %v1341
    %1424 = vmatprep.subr.mxu0 0.0
    %1425 = vmatpush1.msra.mxu0 %v1344
    %1426 = vmatprep.subr.mxu0 0.0
    %1427 = vmatpush1.msra.mxu0 0.0
    %1428 = vmatprep.subr.mxu0 0.0
    %1429 = vmatpush1.msra.mxu0 0.0
    %1430 = vmatprep.subr.mxu0 0.0
    %1431 = vmatpush1.msra.mxu0 0.0
    %1432 = vmatprep.subr.mxu0 0.0
    %1433 = vmatpush1.msra.mxu0 0.0
    %1434 = vmatprep.subr.mxu0 0.0
    %1435 = vmatpush1.msra.mxu0 0.0
    %1436 = vmatprep.subr.mxu0 0.0
    %1437 = vmatpush1.msra.mxu0 0.0
    %1438 = vmatprep.subr.mxu0 0.0
    %1439 = vmatpush1.msra.mxu0 0.0
    %1440 = vmatprep.subr.mxu0 0.0
    %1441 = vmatpush1.msra.mxu0 0.0
    %1442 = vmatprep.subr.mxu0 0.0
    %1443 = vmatpush1.msra.mxu0 0.0
    %1444 = vmatprep.subr.mxu0 0.0
    %1445 = vmatpush1.msra.mxu0 0.0
    %1446 = vmatprep.subr.mxu0 0.0
    %1447 = vmatpush1.msra.mxu0 0.0
    %1448 = vmatprep.subr.mxu0 0.0
    %1449 = vmatpush1.msra.mxu0 0.0
    %1450 = vmatprep.subr.mxu0 0.0
    %1451 = vmatpush1.msra.mxu0 0.0
    %1452 = vmatprep.subr.mxu0 0.0
    %1453 = vmatpush1.msra.mxu0 0.0
    %1454 = vmatprep.subr.mxu0 0.0
    %1455 = vmatpush1.msra.mxu0 0.0
    %1456 = vmatprep.subr.mxu0 0.0
    %1457 = vmatpush1.msra.mxu0 0.0
    %1458 = vmatprep.subr.mxu0 0.0
    %1459 = vmatpush1.msra.mxu0 0.0
    %1460 = vmatprep.subr.mxu0 0.0
    %1461 = vmatpush1.msra.mxu0 0.0
    %1462 = vmatprep.subr.mxu0 0.0
    %1463 = vmatpush1.msra.mxu0 0.0
    %1464 = vmatprep.subr.mxu0 0.0
    %1465 = vmatpush1.msra.mxu0 0.0
    %1466 = vmatprep.subr.mxu0 0.0
    %1467 = vmatpush1.msra.mxu0 0.0
    %1468 = vmatprep.subr.mxu0 0.0
    %1469 = vmatpush1.msra.mxu0 0.0
    %1470 = vmatprep.subr.mxu0 0.0
    %1471 = vmatpush1.msra.mxu0 0.0
    %1472 = vmatprep.subr.mxu0 0.0
    %1473 = vmatpush1.msra.mxu0 0.0
    %1474 = vmatprep.subr.mxu0 0.0
    %1475 = vmatpush1.msra.mxu0 0.0
    %1476 = vmatprep.subr.mxu0 0.0
    %1477 = vmatpush1.msra.mxu0 0.0
    %1478 = vmatprep.subr.mxu0 0.0
    %1479 = vmatpush1.msra.mxu0 0.0
    %1480 = vmatprep.subr.mxu0 0.0
    %1481 = vmatpush1.msra.mxu0 0.0
    %1482 = vmatprep.mubr.f32.mxu0 0.0
    %1483 = vmatmul.mubr.f32.gmra.mrb[0].mxu0 %v1345
    %v1484 = vpop.f32.mrb[0].mxu0
    %v1485 = vadd.f32 %v489, %v1484
    %v1486 = vpop.f32.mrb[0].mxu0
    %1487 = vdwg.mxu0
    %v1488 = vadd.f32 %v1324, %v1414
    %1489 = vst.msk [vmem:[#allocation4 + $0x10] sm:$0xff] %vm656, %v1488
    %v1490 = vmul.f32 %v1488, 1.442695
    %v1491 = vpow.pop %v1490
    %1493 = vrot.lane.b32.xlu0 %v1327, 32
    %v1494 = vpop.permute.xlu0 %1493
    %v1496 = vmul.f32 %v1491, %v1494
    %1498 = vrot.lane.b32.xlu0 %v1496, 96
    %v1499 = vpop.permute.xlu0 %1498
    %v1501 = vadd.f32 %v1488, %v1499
    %v1502 = vld [vmem:[#allocation6 + $0x38] sm:$0xff]
    %v1503 = vld [vmem:[#allocation6 + $0x98] sm:$0xff]
    %v1504 = vld [vmem:[#allocation6 + $0xf8] sm:$0xff]
    %v1505 = vld [vmem:[#allocation6 + $0x158] sm:$0xff]
    %v1507 = vsel %vm208, %v1501, 0
    %1509 = vmatprep.subr.mxu0 0.0
    %1510 = vmatpush1.msra.mxu0 %v1502
    %1511 = vmatprep.subr.mxu0 0.0
    %1512 = vmatpush1.msra.mxu0 %v1503
    %1513 = vmatprep.subr.mxu0 0.0
    %1514 = vmatpush1.msra.mxu0 %v1504
    %1515 = vmatprep.subr.mxu0 0.0
    %1516 = vmatpush1.msra.mxu0 %v1505
    %1517 = vmatprep.subr.mxu0 0.0
    %1518 = vmatpush1.msra.mxu0 0.0
    %1519 = vmatprep.subr.mxu0 0.0
    %1520 = vmatpush1.msra.mxu0 0.0
    %1521 = vmatprep.subr.mxu0 0.0
    %1522 = vmatpush1.msra.mxu0 0.0
    %1523 = vmatprep.subr.mxu0 0.0
    %1524 = vmatpush1.msra.mxu0 0.0
    %1525 = vmatprep.subr.mxu0 0.0
    %1526 = vmatpush1.msra.mxu0 0.0
    %1527 = vmatprep.subr.mxu0 0.0
    %1528 = vmatpush1.msra.mxu0 0.0
    %1529 = vmatprep.subr.mxu0 0.0
    %1530 = vmatpush1.msra.mxu0 0.0
    %1531 = vmatprep.subr.mxu0 0.0
    %1532 = vmatpush1.msra.mxu0 0.0
    %1533 = vmatprep.subr.mxu0 0.0
    %1534 = vmatpush1.msra.mxu0 0.0
    %1535 = vmatprep.subr.mxu0 0.0
    %1536 = vmatpush1.msra.mxu0 0.0
    %1537 = vmatprep.subr.mxu0 0.0
    %1538 = vmatpush1.msra.mxu0 0.0
    %1539 = vmatprep.subr.mxu0 0.0
    %1540 = vmatpush1.msra.mxu0 0.0
    %1541 = vmatprep.subr.mxu0 0.0
    %1542 = vmatpush1.msra.mxu0 0.0
    %1543 = vmatprep.subr.mxu0 0.0
    %1544 = vmatpush1.msra.mxu0 0.0
    %1545 = vmatprep.subr.mxu0 0.0
    %1546 = vmatpush1.msra.mxu0 0.0
    %1547 = vmatprep.subr.mxu0 0.0
    %1548 = vmatpush1.msra.mxu0 0.0
    %1549 = vmatprep.subr.mxu0 0.0
    %1550 = vmatpush1.msra.mxu0 0.0
    %1551 = vmatprep.subr.mxu0 0.0
    %1552 = vmatpush1.msra.mxu0 0.0
    %1553 = vmatprep.subr.mxu0 0.0
    %1554 = vmatpush1.msra.mxu0 0.0
    %1555 = vmatprep.subr.mxu0 0.0
    %1556 = vmatpush1.msra.mxu0 0.0
    %1557 = vmatprep.subr.mxu0 0.0
    %1558 = vmatpush1.msra.mxu0 0.0
    %1559 = vmatprep.subr.mxu0 0.0
    %1560 = vmatpush1.msra.mxu0 0.0
    %1561 = vmatprep.subr.mxu0 0.0
    %1562 = vmatpush1.msra.mxu0 0.0
    %1563 = vmatprep.subr.mxu0 0.0
    %1564 = vmatpush1.msra.mxu0 0.0
    %1565 = vmatprep.subr.mxu0 0.0
    %1566 = vmatpush1.msra.mxu0 0.0
    %1567 = vmatprep.subr.mxu0 0.0
    %1568 = vmatpush1.msra.mxu0 0.0
    %1569 = vmatprep.subr.mxu0 0.0
    %1570 = vmatpush1.msra.mxu0 0.0
    %1571 = vmatprep.subr.mxu0 0.0
    %1572 = vmatpush1.msra.mxu0 0.0
    %1573 = vmatprep.mubr.f32.mxu0 0.0
    %1574 = vmatmul.mubr.f32.gmra.mrb[0].mxu0 %v1507
    %v1575 = vpop.f32.mrb[0].mxu0
    %v1576 = vadd.f32 %v493, %v1575
    %v1577 = vpop.f32.mrb[0].mxu0
    %1578 = vdwg.mxu0
    %v1579 = vmax.f32 %v1576, 0.0
    %1580 = vst.msk [vmem:[#allocation5 + $0x10] sm:$0xff] %vm208, %v1579
    %v1581 = vld [vmem:[#allocation6 + $0x40] sm:$0xff]
    %v1582 = vld [vmem:[#allocation6 + $0x48] sm:$0xff]
    %v1583 = vld [vmem:[#allocation6 + $0xa0] sm:$0xff]
    %v1584 = vld [vmem:[#allocation6 + $0xa8] sm:$0xff]
    %v1585 = vld [vmem:[#allocation6 + $0x100] sm:$0xff]
    %v1586 = vld [vmem:[#allocation6 + $0x108] sm:$0xff]
    %v1587 = vld [vmem:[#allocation6 + $0x160] sm:$0xff]
    %v1588 = vld [vmem:[#allocation6 + $0x168] sm:$0xff]
    %v1590 = vsel %vm208, %v1579, 0
    %1592 = vmatprep.subr.mxu0 %v1582
    %1593 = vmatpush1.msra.mxu0 %v1581
    %1594 = vmatprep.subr.mxu0 %v1584
    %1595 = vmatpush1.msra.mxu0 %v1583
    %1596 = vmatprep.subr.mxu0 %v1586
    %1597 = vmatpush1.msra.mxu0 %v1585
    %1598 = vmatprep.subr.mxu0 %v1588
    %1599 = vmatpush1.msra.mxu0 %v1587
    %1600 = vmatprep.subr.mxu0 0.0
    %1601 = vmatpush1.msra.mxu0 0.0
    %1602 = vmatprep.subr.mxu0 0.0
    %1603 = vmatpush1.msra.mxu0 0.0
    %1604 = vmatprep.subr.mxu0 0.0
    %1605 = vmatpush1.msra.mxu0 0.0
    %1606 = vmatprep.subr.mxu0 0.0
    %1607 = vmatpush1.msra.mxu0 0.0
    %1608 = vmatprep.subr.mxu0 0.0
    %1609 = vmatpush1.msra.mxu0 0.0
    %1610 = vmatprep.subr.mxu0 0.0
    %1611 = vmatpush1.msra.mxu0 0.0
    %1612 = vmatprep.subr.mxu0 0.0
    %1613 = vmatpush1.msra.mxu0 0.0
    %1614 = vmatprep.subr.mxu0 0.0
    %1615 = vmatpush1.msra.mxu0 0.0
    %1616 = vmatprep.subr.mxu0 0.0
    %1617 = vmatpush1.msra.mxu0 0.0
    %1618 = vmatprep.subr.mxu0 0.0
    %1619 = vmatpush1.msra.mxu0 0.0
    %1620 = vmatprep.subr.mxu0 0.0
    %1621 = vmatpush1.msra.mxu0 0.0
    %1622 = vmatprep.subr.mxu0 0.0
    %1623 = vmatpush1.msra.mxu0 0.0
    %1624 = vmatprep.subr.mxu0 0.0
    %1625 = vmatpush1.msra.mxu0 0.0
    %1626 = vmatprep.subr.mxu0 0.0
    %1627 = vmatpush1.msra.mxu0 0.0
    %1628 = vmatprep.subr.mxu0 0.0
    %1629 = vmatpush1.msra.mxu0 0.0
    %1630 = vmatprep.subr.mxu0 0.0
    %1631 = vmatpush1.msra.mxu0 0.0
    %1632 = vmatprep.subr.mxu0 0.0
    %1633 = vmatpush1.msra.mxu0 0.0
    %1634 = vmatprep.subr.mxu0 0.0
    %1635 = vmatpush1.msra.mxu0 0.0
    %1636 = vmatprep.subr.mxu0 0.0
    %1637 = vmatpush1.msra.mxu0 0.0
    %1638 = vmatprep.subr.mxu0 0.0
    %1639 = vmatpush1.msra.mxu0 0.0
    %1640 = vmatprep.subr.mxu0 0.0
    %1641 = vmatpush1.msra.mxu0 0.0
    %1642 = vmatprep.subr.mxu0 0.0
    %1643 = vmatpush1.msra.mxu0 0.0
    %1644 = vmatprep.subr.mxu0 0.0
    %1645 = vmatpush1.msra.mxu0 0.0
    %1646 = vmatprep.subr.mxu0 0.0
    %1647 = vmatpush1.msra.mxu0 0.0
    %1648 = vmatprep.subr.mxu0 0.0
    %1649 = vmatpush1.msra.mxu0 0.0
    %1650 = vmatprep.subr.mxu0 0.0
    %1651 = vmatpush1.msra.mxu0 0.0
    %1652 = vmatprep.subr.mxu0 0.0
    %1653 = vmatpush1.msra.mxu0 0.0
    %1654 = vmatprep.subr.mxu0 0.0
    %1655 = vmatpush1.msra.mxu0 0.0
    %1656 = vmatprep.mubr.f32.mxu0 0.0
    %1657 = vmatmul.mubr.f32.gmra.mrb[0].mxu0 %v1590
    %v1658 = vpop.f32.mrb[0].mxu0
    %v1659 = vadd.f32 0.0, %v1658
    %v1660 = vpop.f32.mrb[0].mxu0
    %v1661 = vadd.f32 0.0, %v1660
    %1662 = vdwg.mxu0
    %1664 = vrot.lane.b32.xlu0 %v1659, 64
    %v1665 = vpop.permute.xlu0 %1664
    %v1667 = vadd.f32 %v1324, %v1665
    %v1668 = vadd.f32 %v1325, %v1665
    %v1669 = vadd.f32 %v1667, %v1414
    %v1670 = vxor.u32 %v1669, 2147483648
    %v1671 = vmul.f32 %v1670, 1.442695
    %v1672 = vpow.pop %v1671
    %v1673 = vadd.f32 %v1672, 1.0
    %v1674 = vrcp.pop %v1673
    %v1675 = vmul.f32 1.0, %v1674
    %1677 = vrot.lane.b32.xlu0 %v1416, 64
    %v1678 = vpop.permute.xlu0 %1677
    %v1680 = vmul.f32 %v1675, %v1678
    %1682 = vrot.lane.b32.xlu0 %v1680, 64
    %v1683 = vpop.permute.xlu0 %1682
    %v1685 = vadd.f32 %v1668, %v1683
    %v1686 = vtanh.pop %v1685
    %v1687 = vsub.f32 1.0, %v1675
    %1689 = vrot.lane.b32.xlu0 %v1686, 96
    %v1690 = vpop.permute.xlu0 %1689
    %v1692 = vmul.f32 %v1687, %v1690
    %v1693 = vmul.f32 %v1675, %v1323
    %v1694 = vadd.f32 %v1692, %v1693
    %1696 = vrot.lane.b32.xlu0 %v1661, 64
    %v1697 = vpop.permute.xlu0 %1696
    %v1698 = vsel %vm656, %v1665, %v1697
    %v1701 = vadd.f32 %v1325, %v1698
    %v1702 = vadd.f32 %v1326, %v1697
    %v1703 = vadd.f32 %v1701, %v1416
    %v1704 = vadd.f32 %v1702, %v1485
    %v1705 = vxor.u32 %v1703, 2147483648
    %v1706 = vmul.f32 %v1705, 1.442695
    %v1707 = vpow.pop %v1706
    %v1708 = vadd.f32 %v1707, 1.0
    %v1709 = vrcp.pop %v1708
    %v1710 = vmul.f32 1.0, %v1709
    %v1711 = vtanh.pop %v1703
    %v1712 = vxor.u32 %v1704, 2147483648
    %v1713 = vmul.f32 %v1712, 1.442695
    %v1714 = vpow.pop %v1713
    %v1715 = vadd.f32 %v1714, 1.0
    %v1716 = vrcp.pop %v1715
    %v1717 = vmul.f32 1.0, %v1716
    %v1718 = vmul.f32 %v1710, %v1312
    %1720 = vrot.lane.b32.xlu0 %v1711, 64
    %v1721 = vpop.permute.xlu0 %1720
    %v1723 = vmul.f32 %v1710, %v1721
    %1725 = vrot.lane.b32.xlu0 %v1723, 32
    %v1726 = vpop.permute.xlu0 %1725
    %v1728 = vadd.f32 %v1718, %v1726
    %v1729 = vtanh.pop %v1728
    %1731 = vrot.lane.b32.xlu0 %v1729, 64
    %v1732 = vpop.permute.xlu0 %1731
    %v1734 = vmul.f32 %v1717, %v1732
    %1736 = vrot.lane.b32.xlu0 %v1734, 96
    %v1737 = vpop.permute.xlu0 %1736
    %v1739 = vadd.f32 %v1694, %v1737
    %v1740 = vld [vmem:[#allocation2 + $0x48] sm:$0xff]
    %v1741 = vld [vmem:[#allocation2 + $0x50] sm:$0xff]
    %v1742 = vld [vmem:[#allocation2 + $0x58] sm:$0xff]
    %v1743 = vld [vmem:[%s1 + $0x18] sm:$0xff]
    %1745 = vrot.lane.b32.xlu0 %v1739, 32
    %v1746 = vpop.permute.xlu0 %1745
    %1748 = vst.msk [vmem:[#allocation3 + $0x18] sm:$0xff] %vm208, %v1746
    %v1749 = vld [vmem:[#allocation6 + $0x20] sm:$0xff]
    %v1750 = vld [vmem:[#allocation6 + $0x28] sm:$0xff]
    %v1751 = vld [vmem:[#allocation6 + $0x30] sm:$0xff]
    %v1752 = vld [vmem:[#allocation6 + $0x80] sm:$0xff]
    %v1753 = vld [vmem:[#allocation6 + $0x88] sm:$0xff]
    %v1754 = vld [vmem:[#allocation6 + $0x90] sm:$0xff]
    %v1755 = vld [vmem:[#allocation6 + $0xe0] sm:$0xff]
    %v1756 = vld [vmem:[#allocation6 + $0xe8] sm:$0xff]
    %v1757 = vld [vmem:[#allocation6 + $0xf0] sm:$0xff]
    %v1758 = vld [vmem:[#allocation6 + $0x140] sm:$0xff]
    %v1759 = vld [vmem:[#allocation6 + $0x148] sm:$0xff]
    %v1760 = vld [vmem:[#allocation6 + $0x150] sm:$0xff]
    %v1761 = vsel %vm208, %v1746, 0
    %1763 = vmatprep.subr.mxu0 %v1750
    %1764 = vmatpush1.msra.mxu0 %v1749
    %1765 = vmatprep.subr.mxu0 %v1753
    %1766 = vmatpush1.msra.mxu0 %v1752
    %1767 = vmatprep.subr.mxu0 %v1756
    %1768 = vmatpush1.msra.mxu0 %v1755
    %1769 = vmatprep.subr.mxu0 %v1759
    %1770 = vmatpush1.msra.mxu0 %v1758
    %1771 = vmatprep.subr.mxu0 0.0
    %1772 = vmatpush1.msra.mxu0 0.0
    %1773 = vmatprep.subr.mxu0 0.0
    %1774 = vmatpush1.msra.mxu0 0.0
    %1775 = vmatprep.subr.mxu0 0.0
    %1776 = vmatpush1.msra.mxu0 0.0
    %1777 = vmatprep.subr.mxu0 0.0
    %1778 = vmatpush1.msra.mxu0 0.0
    %1779 = vmatprep.subr.mxu0 0.0
    %1780 = vmatpush1.msra.mxu0 0.0
    %1781 = vmatprep.subr.mxu0 0.0
    %1782 = vmatpush1.msra.mxu0 0.0
    %1783 = vmatprep.subr.mxu0 0.0
    %1784 = vmatpush1.msra.mxu0 0.0
    %1785 = vmatprep.subr.mxu0 0.0
    %1786 = vmatpush1.msra.mxu0 0.0
    %1787 = vmatprep.subr.mxu0 0.0
    %1788 = vmatpush1.msra.mxu0 0.0
    %1789 = vmatprep.subr.mxu0 0.0
    %1790 = vmatpush1.msra.mxu0 0.0
    %1791 = vmatprep.subr.mxu0 0.0
    %1792 = vmatpush1.msra.mxu0 0.0
    %1793 = vmatprep.subr.mxu0 0.0
    %1794 = vmatpush1.msra.mxu0 0.0
    %1795 = vmatprep.subr.mxu0 0.0
    %1796 = vmatpush1.msra.mxu0 0.0
    %1797 = vmatprep.subr.mxu0 0.0
    %1798 = vmatpush1.msra.mxu0 0.0
    %1799 = vmatprep.subr.mxu0 0.0
    %1800 = vmatpush1.msra.mxu0 0.0
    %1801 = vmatprep.subr.mxu0 0.0
    %1802 = vmatpush1.msra.mxu0 0.0
    %1803 = vmatprep.subr.mxu0 0.0
    %1804 = vmatpush1.msra.mxu0 0.0
    %1805 = vmatprep.subr.mxu0 0.0
    %1806 = vmatpush1.msra.mxu0 0.0
    %1807 = vmatprep.subr.mxu0 0.0
    %1808 = vmatpush1.msra.mxu0 0.0
    %1809 = vmatprep.subr.mxu0 0.0
    %1810 = vmatpush1.msra.mxu0 0.0
    %1811 = vmatprep.subr.mxu0 0.0
    %1812 = vmatpush1.msra.mxu0 0.0
    %1813 = vmatprep.subr.mxu0 0.0
    %1814 = vmatpush1.msra.mxu0 0.0
    %1815 = vmatprep.subr.mxu0 0.0
    %1816 = vmatpush1.msra.mxu0 0.0
    %1817 = vmatprep.subr.mxu0 0.0
    %1818 = vmatpush1.msra.mxu0 0.0
    %1819 = vmatprep.subr.mxu0 0.0
    %1820 = vmatpush1.msra.mxu0 0.0
    %1821 = vmatprep.subr.mxu0 0.0
    %1822 = vmatpush1.msra.mxu0 0.0
    %1823 = vmatprep.subr.mxu0 0.0
    %1824 = vmatpush1.msra.mxu0 0.0
    %1825 = vmatprep.subr.mxu0 0.0
    %1826 = vmatpush1.msra.mxu0 0.0
    %1827 = vmatprep.mubr.f32.mxu0 0.0
    %1828 = vmatmul.mubr.f32.gmra.mrb[0].mxu0 %v1761
    %v1829 = vpop.f32.mrb[0].mxu0
    %v1830 = vadd.f32 %v481, %v1829
    %v1831 = vpop.f32.mrb[0].mxu0
    %v1832 = vadd.f32 %v485, %v1831
    %1833 = vdwg.mxu0
    %1834 = vmatprep.subr.mxu0 0.0
    %1835 = vmatpush1.msra.mxu0 %v1751
    %1836 = vmatprep.subr.mxu0 0.0
    %1837 = vmatpush1.msra.mxu0 %v1754
    %1838 = vmatprep.subr.mxu0 0.0
    %1839 = vmatpush1.msra.mxu0 %v1757
    %1840 = vmatprep.subr.mxu0 0.0
    %1841 = vmatpush1.msra.mxu0 %v1760
    %1842 = vmatprep.subr.mxu0 0.0
    %1843 = vmatpush1.msra.mxu0 0.0
    %1844 = vmatprep.subr.mxu0 0.0
    %1845 = vmatpush1.msra.mxu0 0.0
    %1846 = vmatprep.subr.mxu0 0.0
    %1847 = vmatpush1.msra.mxu0 0.0
    %1848 = vmatprep.subr.mxu0 0.0
    %1849 = vmatpush1.msra.mxu0 0.0
    %1850 = vmatprep.subr.mxu0 0.0
    %1851 = vmatpush1.msra.mxu0 0.0
    %1852 = vmatprep.subr.mxu0 0.0
    %1853 = vmatpush1.msra.mxu0 0.0
    %1854 = vmatprep.subr.mxu0 0.0
    %1855 = vmatpush1.msra.mxu0 0.0
    %1856 = vmatprep.subr.mxu0 0.0
    %1857 = vmatpush1.msra.mxu0 0.0
    %1858 = vmatprep.subr.mxu0 0.0
    %1859 = vmatpush1.msra.mxu0 0.0
    %1860 = vmatprep.subr.mxu0 0.0
    %1861 = vmatpush1.msra.mxu0 0.0
    %1862 = vmatprep.subr.mxu0 0.0
    %1863 = vmatpush1.msra.mxu0 0.0
    %1864 = vmatprep.subr.mxu0 0.0
    %1865 = vmatpush1.msra.mxu0 0.0
    %1866 = vmatprep.subr.mxu0 0.0
    %1867 = vmatpush1.msra.mxu0 0.0
    %1868 = vmatprep.subr.mxu0 0.0
    %1869 = vmatpush1.msra.mxu0 0.0
    %1870 = vmatprep.subr.mxu0 0.0
    %1871 = vmatpush1.msra.mxu0 0.0
    %1872 = vmatprep.subr.mxu0 0.0
    %1873 = vmatpush1.msra.mxu0 0.0
    %1874 = vmatprep.subr.mxu0 0.0
    %1875 = vmatpush1.msra.mxu0 0.0
    %1876 = vmatprep.subr.mxu0 0.0
    %1877 = vmatpush1.msra.mxu0 0.0
    %1878 = vmatprep.subr.mxu0 0.0
    %1879 = vmatpush1.msra.mxu0 0.0
    %1880 = vmatprep.subr.mxu0 0.0
    %1881 = vmatpush1.msra.mxu0 0.0
    %1882 = vmatprep.subr.mxu0 0.0
    %1883 = vmatpush1.msra.mxu0 0.0
    %1884 = vmatprep.subr.mxu0 0.0
    %1885 = vmatpush1.msra.mxu0 0.0
    %1886 = vmatprep.subr.mxu0 0.0
    %1887 = vmatpush1.msra.mxu0 0.0
    %1888 = vmatprep.subr.mxu0 0.0
    %1889 = vmatpush1.msra.mxu0 0.0
    %1890 = vmatprep.subr.mxu0 0.0
    %1891 = vmatpush1.msra.mxu0 0.0
    %1892 = vmatprep.subr.mxu0 0.0
    %1893 = vmatpush1.msra.mxu0 0.0
    %1894 = vmatprep.subr.mxu0 0.0
    %1895 = vmatpush1.msra.mxu0 0.0
    %1896 = vmatprep.subr.mxu0 0.0
    %1897 = vmatpush1.msra.mxu0 0.0
    %1898 = vmatprep.mubr.f32.mxu0 0.0
    %1899 = vmatmul.mubr.f32.gmra.mrb[0].mxu0 %v1761
    %v1900 = vpop.f32.mrb[0].mxu0
    %v1901 = vadd.f32 %v489, %v1900
    %v1902 = vpop.f32.mrb[0].mxu0
    %1903 = vdwg.mxu0
    %v1904 = vadd.f32 %v1740, %v1830
    %1905 = vst.msk [vmem:[#allocation4 + $0x18] sm:$0xff] %vm656, %v1904
    %v1906 = vmul.f32 %v1904, 1.442695
    %v1907 = vpow.pop %v1906
    %1909 = vrot.lane.b32.xlu0 %v1743, 32
    %v1910 = vpop.permute.xlu0 %1909
    %v1912 = vmul.f32 %v1907, %v1910
    %1914 = vrot.lane.b32.xlu0 %v1912, 96
    %v1915 = vpop.permute.xlu0 %1914
    %v1917 = vadd.f32 %v1904, %v1915
    %v1918 = vld [vmem:[#allocation6 + $0x38] sm:$0xff]
    %v1919 = vld [vmem:[#allocation6 + $0x98] sm:$0xff]
    %v1920 = vld [vmem:[#allocation6 + $0xf8] sm:$0xff]
    %v1921 = vld [vmem:[#allocation6 + $0x158] sm:$0xff]
    %v1923 = vsel %vm208, %v1917, 0
    %1925 = vmatprep.subr.mxu0 0.0
    %1926 = vmatpush1.msra.mxu0 %v1918
    %1927 = vmatprep.subr.mxu0 0.0
    %1928 = vmatpush1.msra.mxu0 %v1919
    %1929 = vmatprep.subr.mxu0 0.0
    %1930 = vmatpush1.msra.mxu0 %v1920
    %1931 = vmatprep.subr.mxu0 0.0
    %1932 = vmatpush1.msra.mxu0 %v1921
    %1933 = vmatprep.subr.mxu0 0.0
    %1934 = vmatpush1.msra.mxu0 0.0
    %1935 = vmatprep.subr.mxu0 0.0
    %1936 = vmatpush1.msra.mxu0 0.0
    %1937 = vmatprep.subr.mxu0 0.0
    %1938 = vmatpush1.msra.mxu0 0.0
    %1939 = vmatprep.subr.mxu0 0.0
    %1940 = vmatpush1.msra.mxu0 0.0
    %1941 = vmatprep.subr.mxu0 0.0
    %1942 = vmatpush1.msra.mxu0 0.0
    %1943 = vmatprep.subr.mxu0 0.0
    %1944 = vmatpush1.msra.mxu0 0.0
    %1945 = vmatprep.subr.mxu0 0.0
    %1946 = vmatpush1.msra.mxu0 0.0
    %1947 = vmatprep.subr.mxu0 0.0
    %1948 = vmatpush1.msra.mxu0 0.0
    %1949 = vmatprep.subr.mxu0 0.0
    %1950 = vmatpush1.msra.mxu0 0.0
    %1951 = vmatprep.subr.mxu0 0.0
    %1952 = vmatpush1.msra.mxu0 0.0
    %1953 = vmatprep.subr.mxu0 0.0
    %1954 = vmatpush1.msra.mxu0 0.0
    %1955 = vmatprep.subr.mxu0 0.0
    %1956 = vmatpush1.msra.mxu0 0.0
    %1957 = vmatprep.subr.mxu0 0.0
    %1958 = vmatpush1.msra.mxu0 0.0
    %1959 = vmatprep.subr.mxu0 0.0
    %1960 = vmatpush1.msra.mxu0 0.0
    %1961 = vmatprep.subr.mxu0 0.0
    %1962 = vmatpush1.msra.mxu0 0.0
    %1963 = vmatprep.subr.mxu0 0.0
    %1964 = vmatpush1.msra.mxu0 0.0
    %1965 = vmatprep.subr.mxu0 0.0
    %1966 = vmatpush1.msra.mxu0 0.0
    %1967 = vmatprep.subr.mxu0 0.0
    %1968 = vmatpush1.msra.mxu0 0.0
    %1969 = vmatprep.subr.mxu0 0.0
    %1970 = vmatpush1.msra.mxu0 0.0
    %1971 = vmatprep.subr.mxu0 0.0
    %1972 = vmatpush1.msra.mxu0 0.0
    %1973 = vmatprep.subr.mxu0 0.0
    %1974 = vmatpush1.msra.mxu0 0.0
    %1975 = vmatprep.subr.mxu0 0.0
    %1976 = vmatpush1.msra.mxu0 0.0
    %1977 = vmatprep.subr.mxu0 0.0
    %1978 = vmatpush1.msra.mxu0 0.0
    %1979 = vmatprep.subr.mxu0 0.0
    %1980 = vmatpush1.msra.mxu0 0.0
    %1981 = vmatprep.subr.mxu0 0.0
    %1982 = vmatpush1.msra.mxu0 0.0
    %1983 = vmatprep.subr.mxu0 0.0
    %1984 = vmatpush1.msra.mxu0 0.0
    %1985 = vmatprep.subr.mxu0 0.0
    %1986 = vmatpush1.msra.mxu0 0.0
    %1987 = vmatprep.subr.mxu0 0.0
    %1988 = vmatpush1.msra.mxu0 0.0
    %1989 = vmatprep.mubr.f32.mxu0 0.0
    %1990 = vmatmul.mubr.f32.gmra.mrb[0].mxu0 %v1923
    %v1991 = vpop.f32.mrb[0].mxu0
    %v1992 = vadd.f32 %v493, %v1991
    %v1993 = vpop.f32.mrb[0].mxu0
    %1994 = vdwg.mxu0
    %v1995 = vmax.f32 %v1992, 0.0
    %1996 = vst.msk [vmem:[#allocation5 + $0x18] sm:$0xff] %vm208, %v1995
    %v1997 = vld [vmem:[#allocation6 + $0x40] sm:$0xff]
    %v1998 = vld [vmem:[#allocation6 + $0x48] sm:$0xff]
    %v1999 = vld [vmem:[#allocation6 + $0xa0] sm:$0xff]
    %v2000 = vld [vmem:[#allocation6 + $0xa8] sm:$0xff]
    %v2001 = vld [vmem:[#allocation6 + $0x100] sm:$0xff]
    %v2002 = vld [vmem:[#allocation6 + $0x108] sm:$0xff]
    %v2003 = vld [vmem:[#allocation6 + $0x160] sm:$0xff]
    %v2004 = vld [vmem:[#allocation6 + $0x168] sm:$0xff]
    %v2006 = vsel %vm208, %v1995, 0
    %2008 = vmatprep.subr.mxu0 %v1998
    %2009 = vmatpush1.msra.mxu0 %v1997
    %2010 = vmatprep.subr.mxu0 %v2000
    %2011 = vmatpush1.msra.mxu0 %v1999
    %2012 = vmatprep.subr.mxu0 %v2002
    %2013 = vmatpush1.msra.mxu0 %v2001
    %2014 = vmatprep.subr.mxu0 %v2004
    %2015 = vmatpush1.msra.mxu0 %v2003
    %2016 = vmatprep.subr.mxu0 0.0
    %2017 = vmatpush1.msra.mxu0 0.0
    %2018 = vmatprep.subr.mxu0 0.0
    %2019 = vmatpush1.msra.mxu0 0.0
    %2020 = vmatprep.subr.mxu0 0.0
    %2021 = vmatpush1.msra.mxu0 0.0
    %2022 = vmatprep.subr.mxu0 0.0
    %2023 = vmatpush1.msra.mxu0 0.0
    %2024 = vmatprep.subr.mxu0 0.0
    %2025 = vmatpush1.msra.mxu0 0.0
    %2026 = vmatprep.subr.mxu0 0.0
    %2027 = vmatpush1.msra.mxu0 0.0
    %2028 = vmatprep.subr.mxu0 0.0
    %2029 = vmatpush1.msra.mxu0 0.0
    %2030 = vmatprep.subr.mxu0 0.0
    %2031 = vmatpush1.msra.mxu0 0.0
    %2032 = vmatprep.subr.mxu0 0.0
    %2033 = vmatpush1.msra.mxu0 0.0
    %2034 = vmatprep.subr.mxu0 0.0
    %2035 = vmatpush1.msra.mxu0 0.0
    %2036 = vmatprep.subr.mxu0 0.0
    %2037 = vmatpush1.msra.mxu0 0.0
    %2038 = vmatprep.subr.mxu0 0.0
    %2039 = vmatpush1.msra.mxu0 0.0
    %2040 = vmatprep.subr.mxu0 0.0
    %2041 = vmatpush1.msra.mxu0 0.0
    %2042 = vmatprep.subr.mxu0 0.0
    %2043 = vmatpush1.msra.mxu0 0.0
    %2044 = vmatprep.subr.mxu0 0.0
    %2045 = vmatpush1.msra.mxu0 0.0
    %2046 = vmatprep.subr.mxu0 0.0
    %2047 = vmatpush1.msra.mxu0 0.0
    %2048 = vmatprep.subr.mxu0 0.0
    %2049 = vmatpush1.msra.mxu0 0.0
    %2050 = vmatprep.subr.mxu0 0.0
    %2051 = vmatpush1.msra.mxu0 0.0
    %2052 = vmatprep.subr.mxu0 0.0
    %2053 = vmatpush1.msra.mxu0 0.0
    %2054 = vmatprep.subr.mxu0 0.0
    %2055 = vmatpush1.msra.mxu0 0.0
    %2056 = vmatprep.subr.mxu0 0.0
    %2057 = vmatpush1.msra.mxu0 0.0
    %2058 = vmatprep.subr.mxu0 0.0
    %2059 = vmatpush1.msra.mxu0 0.0
    %2060 = vmatprep.subr.mxu0 0.0
    %2061 = vmatpush1.msra.mxu0 0.0
    %2062 = vmatprep.subr.mxu0 0.0
    %2063 = vmatpush1.msra.mxu0 0.0
    %2064 = vmatprep.subr.mxu0 0.0
    %2065 = vmatpush1.msra.mxu0 0.0
    %2066 = vmatprep.subr.mxu0 0.0
    %2067 = vmatpush1.msra.mxu0 0.0
    %2068 = vmatprep.subr.mxu0 0.0
    %2069 = vmatpush1.msra.mxu0 0.0
    %2070 = vmatprep.subr.mxu0 0.0
    %2071 = vmatpush1.msra.mxu0 0.0
    %2072 = vmatprep.mubr.f32.mxu0 0.0
    %2073 = vmatmul.mubr.f32.gmra.mrb[0].mxu0 %v2006
    %v2074 = vpop.f32.mrb[0].mxu0
    %v2075 = vadd.f32 0.0, %v2074
    %v2076 = vpop.f32.mrb[0].mxu0
    %v2077 = vadd.f32 0.0, %v2076
    %2078 = vdwg.mxu0
    %2080 = vrot.lane.b32.xlu0 %v2075, 64
    %v2081 = vpop.permute.xlu0 %2080
    %v2083 = vadd.f32 %v1740, %v2081
    %v2084 = vadd.f32 %v1741, %v2081
    %v2085 = vadd.f32 %v2083, %v1830
    %v2086 = vxor.u32 %v2085, 2147483648
    %v2087 = vmul.f32 %v2086, 1.442695
    %v2088 = vpow.pop %v2087
    %v2089 = vadd.f32 %v2088, 1.0
    %v2090 = vrcp.pop %v2089
    %v2091 = vmul.f32 1.0, %v2090
    %2093 = vrot.lane.b32.xlu0 %v1832, 64
    %v2094 = vpop.permute.xlu0 %2093
    %v2096 = vmul.f32 %v2091, %v2094
    %2098 = vrot.lane.b32.xlu0 %v2096, 64
    %v2099 = vpop.permute.xlu0 %2098
    %v2101 = vadd.f32 %v2084, %v2099
    %v2102 = vtanh.pop %v2101
    %v2103 = vsub.f32 1.0, %v2091
    %2105 = vrot.lane.b32.xlu0 %v2102, 96
    %v2106 = vpop.permute.xlu0 %2105
    %v2108 = vmul.f32 %v2103, %v2106
    %v2109 = vmul.f32 %v2091, %v1739
    %v2110 = vadd.f32 %v2108, %v2109
    %2112 = vrot.lane.b32.xlu0 %v2077, 64
    %v2113 = vpop.permute.xlu0 %2112
    %v2114 = vsel %vm656, %v2081, %v2113
    %v2117 = vadd.f32 %v1741, %v2114
    %v2118 = vadd.f32 %v1742, %v2113
    %v2119 = vadd.f32 %v2117, %v1832
    %v2120 = vadd.f32 %v2118, %v1901
    %v2121 = vxor.u32 %v2119, 2147483648
    %v2122 = vmul.f32 %v2121, 1.442695
    %v2123 = vpow.pop %v2122
    %v2124 = vadd.f32 %v2123, 1.0
    %v2125 = vrcp.pop %v2124
    %v2126 = vmul.f32 1.0, %v2125
    %v2127 = vtanh.pop %v2119
    %v2128 = vxor.u32 %v2120, 2147483648
    %v2129 = vmul.f32 %v2128, 1.442695
    %v2130 = vpow.pop %v2129
    %v2131 = vadd.f32 %v2130, 1.0
    %v2132 = vrcp.pop %v2131
    %v2133 = vmul.f32 1.0, %v2132
    %v2134 = vmul.f32 %v2126, %v1728
    %2136 = vrot.lane.b32.xlu0 %v2127, 64
    %v2137 = vpop.permute.xlu0 %2136
    %v2139 = vmul.f32 %v2126, %v2137
    %2141 = vrot.lane.b32.xlu0 %v2139, 32
    %v2142 = vpop.permute.xlu0 %2141
    %v2144 = vadd.f32 %v2134, %v2142
    %v2145 = vtanh.pop %v2144
    %2147 = vrot.lane.b32.xlu0 %v2145, 64
    %v2148 = vpop.permute.xlu0 %2147
    %v2150 = vmul.f32 %v2133, %v2148
    %2152 = vrot.lane.b32.xlu0 %v2150, 96
    %v2153 = vpop.permute.xlu0 %2152
    %v2155 = vadd.f32 %v2110, %v2153
    %v2156 = vld [vmem:[#allocation2 + $0x60] sm:$0xff]
    %v2157 = vld [vmem:[#allocation2 + $0x68] sm:$0xff]
    %v2158 = vld [vmem:[#allocation2 + $0x70] sm:$0xff]
    %v2159 = vld [vmem:[%s1 + $0x20] sm:$0xff]
    %2161 = vrot.lane.b32.xlu0 %v2155, 32
    %v2162 = vpop.permute.xlu0 %2161
    %2164 = vst.msk [vmem:[#allocation3 + $0x20] sm:$0xff] %vm208, %v2162
    %v2165 = vld [vmem:[#allocation6 + $0x20] sm:$0xff]
    %v2166 = vld [vmem:[#allocation6 + $0x28] sm:$0xff]
    %v2167 = vld [vmem:[#allocation6 + $0x30] sm:$0xff]
    %v2168 = vld [vmem:[#allocation6 + $0x80] sm:$0xff]
    %v2169 = vld [vmem:[#allocation6 + $0x88] sm:$0xff]
    %v2170 = vld [vmem:[#allocation6 + $0x90] sm:$0xff]
    %v2171 = vld [vmem:[#allocation6 + $0xe0] sm:$0xff]
    %v2172 = vld [vmem:[#allocation6 + $0xe8] sm:$0xff]
    %v2173 = vld [vmem:[#allocation6 + $0xf0] sm:$0xff]
    %v2174 = vld [vmem:[#allocation6 + $0x140] sm:$0xff]
    %v2175 = vld [vmem:[#allocation6 + $0x148] sm:$0xff]
    %v2176 = vld [vmem:[#allocation6 + $0x150] sm:$0xff]
    %v2177 = vsel %vm208, %v2162, 0
    %2179 = vmatprep.subr.mxu0 %v2166
    %2180 = vmatpush1.msra.mxu0 %v2165
    %2181 = vmatprep.subr.mxu0 %v2169
    %2182 = vmatpush1.msra.mxu0 %v2168
    %2183 = vmatprep.subr.mxu0 %v2172
    %2184 = vmatpush1.msra.mxu0 %v2171
    %2185 = vmatprep.subr.mxu0 %v2175
    %2186 = vmatpush1.msra.mxu0 %v2174
    %2187 = vmatprep.subr.mxu0 0.0
    %2188 = vmatpush1.msra.mxu0 0.0
    %2189 = vmatprep.subr.mxu0 0.0
    %2190 = vmatpush1.msra.mxu0 0.0
    %2191 = vmatprep.subr.mxu0 0.0
    %2192 = vmatpush1.msra.mxu0 0.0
    %2193 = vmatprep.subr.mxu0 0.0
    %2194 = vmatpush1.msra.mxu0 0.0
    %2195 = vmatprep.subr.mxu0 0.0
    %2196 = vmatpush1.msra.mxu0 0.0
    %2197 = vmatprep.subr.mxu0 0.0
    %2198 = vmatpush1.msra.mxu0 0.0
    %2199 = vmatprep.subr.mxu0 0.0
    %2200 = vmatpush1.msra.mxu0 0.0
    %2201 = vmatprep.subr.mxu0 0.0
    %2202 = vmatpush1.msra.mxu0 0.0
    %2203 = vmatprep.subr.mxu0 0.0
    %2204 = vmatpush1.msra.mxu0 0.0
    %2205 = vmatprep.subr.mxu0 0.0
    %2206 = vmatpush1.msra.mxu0 0.0
    %2207 = vmatprep.subr.mxu0 0.0
    %2208 = vmatpush1.msra.mxu0 0.0
    %2209 = vmatprep.subr.mxu0 0.0
    %2210 = vmatpush1.msra.mxu0 0.0
    %2211 = vmatprep.subr.mxu0 0.0
    %2212 = vmatpush1.msra.mxu0 0.0
    %2213 = vmatprep.subr.mxu0 0.0
    %2214 = vmatpush1.msra.mxu0 0.0
    %2215 = vmatprep.subr.mxu0 0.0
    %2216 = vmatpush1.msra.mxu0 0.0
    %2217 = vmatprep.subr.mxu0 0.0
    %2218 = vmatpush1.msra.mxu0 0.0
    %2219 = vmatprep.subr.mxu0 0.0
    %2220 = vmatpush1.msra.mxu0 0.0
    %2221 = vmatprep.subr.mxu0 0.0
    %2222 = vmatpush1.msra.mxu0 0.0
    %2223 = vmatprep.subr.mxu0 0.0
    %2224 = vmatpush1.msra.mxu0 0.0
    %2225 = vmatprep.subr.mxu0 0.0
    %2226 = vmatpush1.msra.mxu0 0.0
    %2227 = vmatprep.subr.mxu0 0.0
    %2228 = vmatpush1.msra.mxu0 0.0
    %2229 = vmatprep.subr.mxu0 0.0
    %2230 = vmatpush1.msra.mxu0 0.0
    %2231 = vmatprep.subr.mxu0 0.0
    %2232 = vmatpush1.msra.mxu0 0.0
    %2233 = vmatprep.subr.mxu0 0.0
    %2234 = vmatpush1.msra.mxu0 0.0
    %2235 = vmatprep.subr.mxu0 0.0
    %2236 = vmatpush1.msra.mxu0 0.0
    %2237 = vmatprep.subr.mxu0 0.0
    %2238 = vmatpush1.msra.mxu0 0.0
    %2239 = vmatprep.subr.mxu0 0.0
    %2240 = vmatpush1.msra.mxu0 0.0
    %2241 = vmatprep.subr.mxu0 0.0
    %2242 = vmatpush1.msra.mxu0 0.0
    %2243 = vmatprep.mubr.f32.mxu0 0.0
    %2244 = vmatmul.mubr.f32.gmra.mrb[0].mxu0 %v2177
    %v2245 = vpop.f32.mrb[0].mxu0
    %v2246 = vadd.f32 %v481, %v2245
    %v2247 = vpop.f32.mrb[0].mxu0
    %v2248 = vadd.f32 %v485, %v2247
    %2249 = vdwg.mxu0
    %2250 = vmatprep.subr.mxu0 0.0
    %2251 = vmatpush1.msra.mxu0 %v2167
    %2252 = vmatprep.subr.mxu0 0.0
    %2253 = vmatpush1.msra.mxu0 %v2170
    %2254 = vmatprep.subr.mxu0 0.0
    %2255 = vmatpush1.msra.mxu0 %v2173
    %2256 = vmatprep.subr.mxu0 0.0
    %2257 = vmatpush1.msra.mxu0 %v2176
    %2258 = vmatprep.subr.mxu0 0.0
    %2259 = vmatpush1.msra.mxu0 0.0
    %2260 = vmatprep.subr.mxu0 0.0
    %2261 = vmatpush1.msra.mxu0 0.0
    %2262 = vmatprep.subr.mxu0 0.0
    %2263 = vmatpush1.msra.mxu0 0.0
    %2264 = vmatprep.subr.mxu0 0.0
    %2265 = vmatpush1.msra.mxu0 0.0
    %2266 = vmatprep.subr.mxu0 0.0
    %2267 = vmatpush1.msra.mxu0 0.0
    %2268 = vmatprep.subr.mxu0 0.0
    %2269 = vmatpush1.msra.mxu0 0.0
    %2270 = vmatprep.subr.mxu0 0.0
    %2271 = vmatpush1.msra.mxu0 0.0
    %2272 = vmatprep.subr.mxu0 0.0
    %2273 = vmatpush1.msra.mxu0 0.0
    %2274 = vmatprep.subr.mxu0 0.0
    %2275 = vmatpush1.msra.mxu0 0.0
    %2276 = vmatprep.subr.mxu0 0.0
    %2277 = vmatpush1.msra.mxu0 0.0
    %2278 = vmatprep.subr.mxu0 0.0
    %2279 = vmatpush1.msra.mxu0 0.0
    %2280 = vmatprep.subr.mxu0 0.0
    %2281 = vmatpush1.msra.mxu0 0.0
    %2282 = vmatprep.subr.mxu0 0.0
    %2283 = vmatpush1.msra.mxu0 0.0
    %2284 = vmatprep.subr.mxu0 0.0
    %2285 = vmatpush1.msra.mxu0 0.0
    %2286 = vmatprep.subr.mxu0 0.0
    %2287 = vmatpush1.msra.mxu0 0.0
    %2288 = vmatprep.subr.mxu0 0.0
    %2289 = vmatpush1.msra.mxu0 0.0
    %2290 = vmatprep.subr.mxu0 0.0
    %2291 = vmatpush1.msra.mxu0 0.0
    %2292 = vmatprep.subr.mxu0 0.0
    %2293 = vmatpush1.msra.mxu0 0.0
    %2294 = vmatprep.subr.mxu0 0.0
    %2295 = vmatpush1.msra.mxu0 0.0
    %2296 = vmatprep.subr.mxu0 0.0
    %2297 = vmatpush1.msra.mxu0 0.0
    %2298 = vmatprep.subr.mxu0 0.0
    %2299 = vmatpush1.msra.mxu0 0.0
    %2300 = vmatprep.subr.mxu0 0.0
    %2301 = vmatpush1.msra.mxu0 0.0
    %2302 = vmatprep.subr.mxu0 0.0
    %2303 = vmatpush1.msra.mxu0 0.0
    %2304 = vmatprep.subr.mxu0 0.0
    %2305 = vmatpush1.msra.mxu0 0.0
    %2306 = vmatprep.subr.mxu0 0.0
    %2307 = vmatpush1.msra.mxu0 0.0
    %2308 = vmatprep.subr.mxu0 0.0
    %2309 = vmatpush1.msra.mxu0 0.0
    %2310 = vmatprep.subr.mxu0 0.0
    %2311 = vmatpush1.msra.mxu0 0.0
    %2312 = vmatprep.subr.mxu0 0.0
    %2313 = vmatpush1.msra.mxu0 0.0
    %2314 = vmatprep.mubr.f32.mxu0 0.0
    %2315 = vmatmul.mubr.f32.gmra.mrb[0].mxu0 %v2177
    %v2316 = vpop.f32.mrb[0].mxu0
    %v2317 = vadd.f32 %v489, %v2316
    %v2318 = vpop.f32.mrb[0].mxu0
    %2319 = vdwg.mxu0
    %v2320 = vadd.f32 %v2156, %v2246
    %2321 = vst.msk [vmem:[#allocation4 + $0x20] sm:$0xff] %vm656, %v2320
    %v2322 = vmul.f32 %v2320, 1.442695
    %v2323 = vpow.pop %v2322
    %2325 = vrot.lane.b32.xlu0 %v2159, 32
    %v2326 = vpop.permute.xlu0 %2325
    %v2328 = vmul.f32 %v2323, %v2326
    %2330 = vrot.lane.b32.xlu0 %v2328, 96
    %v2331 = vpop.permute.xlu0 %2330
    %v2333 = vadd.f32 %v2320, %v2331
    %v2334 = vld [vmem:[#allocation6 + $0x38] sm:$0xff]
    %v2335 = vld [vmem:[#allocation6 + $0x98] sm:$0xff]
    %v2336 = vld [vmem:[#allocation6 + $0xf8] sm:$0xff]
    %v2337 = vld [vmem:[#allocation6 + $0x158] sm:$0xff]
    %v2339 = vsel %vm208, %v2333, 0
    %2341 = vmatprep.subr.mxu0 0.0
    %2342 = vmatpush1.msra.mxu0 %v2334
    %2343 = vmatprep.subr.mxu0 0.0
    %2344 = vmatpush1.msra.mxu0 %v2335
    %2345 = vmatprep.subr.mxu0 0.0
    %2346 = vmatpush1.msra.mxu0 %v2336
    %2347 = vmatprep.subr.mxu0 0.0
    %2348 = vmatpush1.msra.mxu0 %v2337
    %2349 = vmatprep.subr.mxu0 0.0
    %2350 = vmatpush1.msra.mxu0 0.0
    %2351 = vmatprep.subr.mxu0 0.0
    %2352 = vmatpush1.msra.mxu0 0.0
    %2353 = vmatprep.subr.mxu0 0.0
    %2354 = vmatpush1.msra.mxu0 0.0
    %2355 = vmatprep.subr.mxu0 0.0
    %2356 = vmatpush1.msra.mxu0 0.0
    %2357 = vmatprep.subr.mxu0 0.0
    %2358 = vmatpush1.msra.mxu0 0.0
    %2359 = vmatprep.subr.mxu0 0.0
    %2360 = vmatpush1.msra.mxu0 0.0
    %2361 = vmatprep.subr.mxu0 0.0
    %2362 = vmatpush1.msra.mxu0 0.0
    %2363 = vmatprep.subr.mxu0 0.0
    %2364 = vmatpush1.msra.mxu0 0.0
    %2365 = vmatprep.subr.mxu0 0.0
    %2366 = vmatpush1.msra.mxu0 0.0
    %2367 = vmatprep.subr.mxu0 0.0
    %2368 = vmatpush1.msra.mxu0 0.0
    %2369 = vmatprep.subr.mxu0 0.0
    %2370 = vmatpush1.msra.mxu0 0.0
    %2371 = vmatprep.subr.mxu0 0.0
    %2372 = vmatpush1.msra.mxu0 0.0
    %2373 = vmatprep.subr.mxu0 0.0
    %2374 = vmatpush1.msra.mxu0 0.0
    %2375 = vmatprep.subr.mxu0 0.0
    %2376 = vmatpush1.msra.mxu0 0.0
    %2377 = vmatprep.subr.mxu0 0.0
    %2378 = vmatpush1.msra.mxu0 0.0
    %2379 = vmatprep.subr.mxu0 0.0
    %2380 = vmatpush1.msra.mxu0 0.0
    %2381 = vmatprep.subr.mxu0 0.0
    %2382 = vmatpush1.msra.mxu0 0.0
    %2383 = vmatprep.subr.mxu0 0.0
    %2384 = vmatpush1.msra.mxu0 0.0
    %2385 = vmatprep.subr.mxu0 0.0
    %2386 = vmatpush1.msra.mxu0 0.0
    %2387 = vmatprep.subr.mxu0 0.0
    %2388 = vmatpush1.msra.mxu0 0.0
    %2389 = vmatprep.subr.mxu0 0.0
    %2390 = vmatpush1.msra.mxu0 0.0
    %2391 = vmatprep.subr.mxu0 0.0
    %2392 = vmatpush1.msra.mxu0 0.0
    %2393 = vmatprep.subr.mxu0 0.0
    %2394 = vmatpush1.msra.mxu0 0.0
    %2395 = vmatprep.subr.mxu0 0.0
    %2396 = vmatpush1.msra.mxu0 0.0
    %2397 = vmatprep.subr.mxu0 0.0
    %2398 = vmatpush1.msra.mxu0 0.0
    %2399 = vmatprep.subr.mxu0 0.0
    %2400 = vmatpush1.msra.mxu0 0.0
    %2401 = vmatprep.subr.mxu0 0.0
    %2402 = vmatpush1.msra.mxu0 0.0
    %2403 = vmatprep.subr.mxu0 0.0
    %2404 = vmatpush1.msra.mxu0 0.0
    %2405 = vmatprep.mubr.f32.mxu0 0.0
    %2406 = vmatmul.mubr.f32.gmra.mrb[0].mxu0 %v2339
    %v2407 = vpop.f32.mrb[0].mxu0
    %v2408 = vadd.f32 %v493, %v2407
    %v2409 = vpop.f32.mrb[0].mxu0
    %2410 = vdwg.mxu0
    %v2411 = vmax.f32 %v2408, 0.0
    %2412 = vst.msk [vmem:[#allocation5 + $0x20] sm:$0xff] %vm208, %v2411
    %v2413 = vld [vmem:[#allocation6 + $0x40] sm:$0xff]
    %v2414 = vld [vmem:[#allocation6 + $0x48] sm:$0xff]
    %v2415 = vld [vmem:[#allocation6 + $0xa0] sm:$0xff]
    %v2416 = vld [vmem:[#allocation6 + $0xa8] sm:$0xff]
    %v2417 = vld [vmem:[#allocation6 + $0x100] sm:$0xff]
    %v2418 = vld [vmem:[#allocation6 + $0x108] sm:$0xff]
    %v2419 = vld [vmem:[#allocation6 + $0x160] sm:$0xff]
    %v2420 = vld [vmem:[#allocation6 + $0x168] sm:$0xff]
    %v2422 = vsel %vm208, %v2411, 0
    %2424 = vmatprep.subr.mxu0 %v2414
    %2425 = vmatpush1.msra.mxu0 %v2413
    %2426 = vmatprep.subr.mxu0 %v2416
    %2427 = vmatpush1.msra.mxu0 %v2415
    %2428 = vmatprep.subr.mxu0 %v2418
    %2429 = vmatpush1.msra.mxu0 %v2417
    %2430 = vmatprep.subr.mxu0 %v2420
    %2431 = vmatpush1.msra.mxu0 %v2419
    %2432 = vmatprep.subr.mxu0 0.0
    %2433 = vmatpush1.msra.mxu0 0.0
    %2434 = vmatprep.subr.mxu0 0.0
    %2435 = vmatpush1.msra.mxu0 0.0
    %2436 = vmatprep.subr.mxu0 0.0
    %2437 = vmatpush1.msra.mxu0 0.0
    %2438 = vmatprep.subr.mxu0 0.0
    %2439 = vmatpush1.msra.mxu0 0.0
    %2440 = vmatprep.subr.mxu0 0.0
    %2441 = vmatpush1.msra.mxu0 0.0
    %2442 = vmatprep.subr.mxu0 0.0
    %2443 = vmatpush1.msra.mxu0 0.0
    %2444 = vmatprep.subr.mxu0 0.0
    %2445 = vmatpush1.msra.mxu0 0.0
    %2446 = vmatprep.subr.mxu0 0.0
    %2447 = vmatpush1.msra.mxu0 0.0
    %2448 = vmatprep.subr.mxu0 0.0
    %2449 = vmatpush1.msra.mxu0 0.0
    %2450 = vmatprep.subr.mxu0 0.0
    %2451 = vmatpush1.msra.mxu0 0.0
    %2452 = vmatprep.subr.mxu0 0.0
    %2453 = vmatpush1.msra.mxu0 0.0
    %2454 = vmatprep.subr.mxu0 0.0
    %2455 = vmatpush1.msra.mxu0 0.0
    %2456 = vmatprep.subr.mxu0 0.0
    %2457 = vmatpush1.msra.mxu0 0.0
    %2458 = vmatprep.subr.mxu0 0.0
    %2459 = vmatpush1.msra.mxu0 0.0
    %2460 = vmatprep.subr.mxu0 0.0
    %2461 = vmatpush1.msra.mxu0 0.0
    %2462 = vmatprep.subr.mxu0 0.0
    %2463 = vmatpush1.msra.mxu0 0.0
    %2464 = vmatprep.subr.mxu0 0.0
    %2465 = vmatpush1.msra.mxu0 0.0
    %2466 = vmatprep.subr.mxu0 0.0
    %2467 = vmatpush1.msra.mxu0 0.0
    %2468 = vmatprep.subr.mxu0 0.0
    %2469 = vmatpush1.msra.mxu0 0.0
    %2470 = vmatprep.subr.mxu0 0.0
    %2471 = vmatpush1.msra.mxu0 0.0
    %2472 = vmatprep.subr.mxu0 0.0
    %2473 = vmatpush1.msra.mxu0 0.0
    %2474 = vmatprep.subr.mxu0 0.0
    %2475 = vmatpush1.msra.mxu0 0.0
    %2476 = vmatprep.subr.mxu0 0.0
    %2477 = vmatpush1.msra.mxu0 0.0
    %2478 = vmatprep.subr.mxu0 0.0
    %2479 = vmatpush1.msra.mxu0 0.0
    %2480 = vmatprep.subr.mxu0 0.0
    %2481 = vmatpush1.msra.mxu0 0.0
    %2482 = vmatprep.subr.mxu0 0.0
    %2483 = vmatpush1.msra.mxu0 0.0
    %2484 = vmatprep.subr.mxu0 0.0
    %2485 = vmatpush1.msra.mxu0 0.0
    %2486 = vmatprep.subr.mxu0 0.0
    %2487 = vmatpush1.msra.mxu0 0.0
    %2488 = vmatprep.mubr.f32.mxu0 0.0
    %2489 = vmatmul.mubr.f32.gmra.mrb[0].mxu0 %v2422
    %v2490 = vpop.f32.mrb[0].mxu0
    %v2491 = vadd.f32 0.0, %v2490
    %v2492 = vpop.f32.mrb[0].mxu0
    %v2493 = vadd.f32 0.0, %v2492
    %2494 = vdwg.mxu0
    %2496 = vrot.lane.b32.xlu0 %v2491, 64
    %v2497 = vpop.permute.xlu0 %2496
    %v2499 = vadd.f32 %v2156, %v2497
    %v2500 = vadd.f32 %v2157, %v2497
    %v2501 = vadd.f32 %v2499, %v2246
    %v2502 = vxor.u32 %v2501, 2147483648
    %v2503 = vmul.f32 %v2502, 1.442695
    %v2504 = vpow.pop %v2503
    %v2505 = vadd.f32 %v2504, 1.0
    %v2506 = vrcp.pop %v2505
    %v2507 = vmul.f32 1.0, %v2506
    %2509 = vrot.lane.b32.xlu0 %v2248, 64
    %v2510 = vpop.permute.xlu0 %2509
    %v2512 = vmul.f32 %v2507, %v2510
    %2514 = vrot.lane.b32.xlu0 %v2512, 64
    %v2515 = vpop.permute.xlu0 %2514
    %v2517 = vadd.f32 %v2500, %v2515
    %v2518 = vtanh.pop %v2517
    %v2519 = vsub.f32 1.0, %v2507
    %2521 = vrot.lane.b32.xlu0 %v2518, 96
    %v2522 = vpop.permute.xlu0 %2521
    %v2524 = vmul.f32 %v2519, %v2522
    %v2525 = vmul.f32 %v2507, %v2155
    %v2526 = vadd.f32 %v2524, %v2525
    %2528 = vrot.lane.b32.xlu0 %v2493, 64
    %v2529 = vpop.permute.xlu0 %2528
    %v2530 = vsel %vm656, %v2497, %v2529
    %v2533 = vadd.f32 %v2157, %v2530
    %v2534 = vadd.f32 %v2158, %v2529
    %v2535 = vadd.f32 %v2533, %v2248
    %v2536 = vadd.f32 %v2534, %v2317
    %v2537 = vxor.u32 %v2535, 2147483648
    %v2538 = vmul.f32 %v2537, 1.442695
    %v2539 = vpow.pop %v2538
    %v2540 = vadd.f32 %v2539, 1.0
    %v2541 = vrcp.pop %v2540
    %v2542 = vmul.f32 1.0, %v2541
    %v2543 = vtanh.pop %v2535
    %v2544 = vxor.u32 %v2536, 2147483648
    %v2545 = vmul.f32 %v2544, 1.442695
    %v2546 = vpow.pop %v2545
    %v2547 = vadd.f32 %v2546, 1.0
    %v2548 = vrcp.pop %v2547
    %v2549 = vmul.f32 1.0, %v2548
    %v2550 = vmul.f32 %v2542, %v2144
    %2552 = vrot.lane.b32.xlu0 %v2543, 64
    %v2553 = vpop.permute.xlu0 %2552
    %v2555 = vmul.f32 %v2542, %v2553
    %2557 = vrot.lane.b32.xlu0 %v2555, 32
    %v2558 = vpop.permute.xlu0 %2557
    %v2560 = vadd.f32 %v2550, %v2558
    %v2561 = vtanh.pop %v2560
    %2563 = vrot.lane.b32.xlu0 %v2561, 64
    %v2564 = vpop.permute.xlu0 %2563
    %v2566 = vmul.f32 %v2549, %v2564
    %2568 = vrot.lane.b32.xlu0 %v2566, 96
    %v2569 = vpop.permute.xlu0 %2568
    %v2571 = vadd.f32 %v2526, %v2569
    %v2572 = vld [vmem:[#allocation2 + $0x78] sm:$0xff]
    %v2573 = vld [vmem:[#allocation2 + $0x80] sm:$0xff]
    %v2574 = vld [vmem:[#allocation2 + $0x88] sm:$0xff]
    %v2575 = vld [vmem:[%s1 + $0x28] sm:$0xff]
    %2577 = vrot.lane.b32.xlu0 %v2571, 32
    %v2578 = vpop.permute.xlu0 %2577
    %2580 = vst.msk [vmem:[#allocation3 + $0x28] sm:$0xff] %vm208, %v2578
    %v2581 = vld [vmem:[#allocation6 + $0x20] sm:$0xff]
    %v2582 = vld [vmem:[#allocation6 + $0x28] sm:$0xff]
    %v2583 = vld [vmem:[#allocation6 + $0x30] sm:$0xff]
    %v2584 = vld [vmem:[#allocation6 + $0x80] sm:$0xff]
    %v2585 = vld [vmem:[#allocation6 + $0x88] sm:$0xff]
    %v2586 = vld [vmem:[#allocation6 + $0x90] sm:$0xff]
    %v2587 = vld [vmem:[#allocation6 + $0xe0] sm:$0xff]
    %v2588 = vld [vmem:[#allocation6 + $0xe8] sm:$0xff]
    %v2589 = vld [vmem:[#allocation6 + $0xf0] sm:$0xff]
    %v2590 = vld [vmem:[#allocation6 + $0x140] sm:$0xff]
    %v2591 = vld [vmem:[#allocation6 + $0x148] sm:$0xff]
    %v2592 = vld [vmem:[#allocation6 + $0x150] sm:$0xff]
    %v2593 = vsel %vm208, %v2578, 0
    %2595 = vmatprep.subr.mxu0 %v2582
    %2596 = vmatpush1.msra.mxu0 %v2581
    %2597 = vmatprep.subr.mxu0 %v2585
    %2598 = vmatpush1.msra.mxu0 %v2584
    %2599 = vmatprep.subr.mxu0 %v2588
    %2600 = vmatpush1.msra.mxu0 %v2587
    %2601 = vmatprep.subr.mxu0 %v2591
    %2602 = vmatpush1.msra.mxu0 %v2590
    %2603 = vmatprep.subr.mxu0 0.0
    %2604 = vmatpush1.msra.mxu0 0.0
    %2605 = vmatprep.subr.mxu0 0.0
    %2606 = vmatpush1.msra.mxu0 0.0
    %2607 = vmatprep.subr.mxu0 0.0
    %2608 = vmatpush1.msra.mxu0 0.0
    %2609 = vmatprep.subr.mxu0 0.0
    %2610 = vmatpush1.msra.mxu0 0.0
    %2611 = vmatprep.subr.mxu0 0.0
    %2612 = vmatpush1.msra.mxu0 0.0
    %2613 = vmatprep.subr.mxu0 0.0
    %2614 = vmatpush1.msra.mxu0 0.0
    %2615 = vmatprep.subr.mxu0 0.0
    %2616 = vmatpush1.msra.mxu0 0.0
    %2617 = vmatprep.subr.mxu0 0.0
    %2618 = vmatpush1.msra.mxu0 0.0
    %2619 = vmatprep.subr.mxu0 0.0
    %2620 = vmatpush1.msra.mxu0 0.0
    %2621 = vmatprep.subr.mxu0 0.0
    %2622 = vmatpush1.msra.mxu0 0.0
    %2623 = vmatprep.subr.mxu0 0.0
    %2624 = vmatpush1.msra.mxu0 0.0
    %2625 = vmatprep.subr.mxu0 0.0
    %2626 = vmatpush1.msra.mxu0 0.0
    %2627 = vmatprep.subr.mxu0 0.0
    %2628 = vmatpush1.msra.mxu0 0.0
    %2629 = vmatprep.subr.mxu0 0.0
    %2630 = vmatpush1.msra.mxu0 0.0
    %2631 = vmatprep.subr.mxu0 0.0
    %2632 = vmatpush1.msra.mxu0 0.0
    %2633 = vmatprep.subr.mxu0 0.0
    %2634 = vmatpush1.msra.mxu0 0.0
    %2635 = vmatprep.subr.mxu0 0.0
    %2636 = vmatpush1.msra.mxu0 0.0
    %2637 = vmatprep.subr.mxu0 0.0
    %2638 = vmatpush1.msra.mxu0 0.0
    %2639 = vmatprep.subr.mxu0 0.0
    %2640 = vmatpush1.msra.mxu0 0.0
    %2641 = vmatprep.subr.mxu0 0.0
    %2642 = vmatpush1.msra.mxu0 0.0
    %2643 = vmatprep.subr.mxu0 0.0
    %2644 = vmatpush1.msra.mxu0 0.0
    %2645 = vmatprep.subr.mxu0 0.0
    %2646 = vmatpush1.msra.mxu0 0.0
    %2647 = vmatprep.subr.mxu0 0.0
    %2648 = vmatpush1.msra.mxu0 0.0
    %2649 = vmatprep.subr.mxu0 0.0
    %2650 = vmatpush1.msra.mxu0 0.0
    %2651 = vmatprep.subr.mxu0 0.0
    %2652 = vmatpush1.msra.mxu0 0.0
    %2653 = vmatprep.subr.mxu0 0.0
    %2654 = vmatpush1.msra.mxu0 0.0
    %2655 = vmatprep.subr.mxu0 0.0
    %2656 = vmatpush1.msra.mxu0 0.0
    %2657 = vmatprep.subr.mxu0 0.0
    %2658 = vmatpush1.msra.mxu0 0.0
    %2659 = vmatprep.mubr.f32.mxu0 0.0
    %2660 = vmatmul.mubr.f32.gmra.mrb[0].mxu0 %v2593
    %v2661 = vpop.f32.mrb[0].mxu0
    %v2662 = vadd.f32 %v481, %v2661
    %v2663 = vpop.f32.mrb[0].mxu0
    %v2664 = vadd.f32 %v485, %v2663
    %2665 = vdwg.mxu0
    %2666 = vmatprep.subr.mxu0 0.0
    %2667 = vmatpush1.msra.mxu0 %v2583
    %2668 = vmatprep.subr.mxu0 0.0
    %2669 = vmatpush1.msra.mxu0 %v2586
    %2670 = vmatprep.subr.mxu0 0.0
    %2671 = vmatpush1.msra.mxu0 %v2589
    %2672 = vmatprep.subr.mxu0 0.0
    %2673 = vmatpush1.msra.mxu0 %v2592
    %2674 = vmatprep.subr.mxu0 0.0
    %2675 = vmatpush1.msra.mxu0 0.0
    %2676 = vmatprep.subr.mxu0 0.0
    %2677 = vmatpush1.msra.mxu0 0.0
    %2678 = vmatprep.subr.mxu0 0.0
    %2679 = vmatpush1.msra.mxu0 0.0
    %2680 = vmatprep.subr.mxu0 0.0
    %2681 = vmatpush1.msra.mxu0 0.0
    %2682 = vmatprep.subr.mxu0 0.0
    %2683 = vmatpush1.msra.mxu0 0.0
    %2684 = vmatprep.subr.mxu0 0.0
    %2685 = vmatpush1.msra.mxu0 0.0
    %2686 = vmatprep.subr.mxu0 0.0
    %2687 = vmatpush1.msra.mxu0 0.0
    %2688 = vmatprep.subr.mxu0 0.0
    %2689 = vmatpush1.msra.mxu0 0.0
    %2690 = vmatprep.subr.mxu0 0.0
    %2691 = vmatpush1.msra.mxu0 0.0
    %2692 = vmatprep.subr.mxu0 0.0
    %2693 = vmatpush1.msra.mxu0 0.0
    %2694 = vmatprep.subr.mxu0 0.0
    %2695 = vmatpush1.msra.mxu0 0.0
    %2696 = vmatprep.subr.mxu0 0.0
    %2697 = vmatpush1.msra.mxu0 0.0
    %2698 = vmatprep.subr.mxu0 0.0
    %2699 = vmatpush1.msra.mxu0 0.0
    %2700 = vmatprep.subr.mxu0 0.0
    %2701 = vmatpush1.msra.mxu0 0.0
    %2702 = vmatprep.subr.mxu0 0.0
    %2703 = vmatpush1.msra.mxu0 0.0
    %2704 = vmatprep.subr.mxu0 0.0
    %2705 = vmatpush1.msra.mxu0 0.0
    %2706 = vmatprep.subr.mxu0 0.0
    %2707 = vmatpush1.msra.mxu0 0.0
    %2708 = vmatprep.subr.mxu0 0.0
    %2709 = vmatpush1.msra.mxu0 0.0
    %2710 = vmatprep.subr.mxu0 0.0
    %2711 = vmatpush1.msra.mxu0 0.0
    %2712 = vmatprep.subr.mxu0 0.0
    %2713 = vmatpush1.msra.mxu0 0.0
    %2714 = vmatprep.subr.mxu0 0.0
    %2715 = vmatpush1.msra.mxu0 0.0
    %2716 = vmatprep.subr.mxu0 0.0
    %2717 = vmatpush1.msra.mxu0 0.0
    %2718 = vmatprep.subr.mxu0 0.0
    %2719 = vmatpush1.msra.mxu0 0.0
    %2720 = vmatprep.subr.mxu0 0.0
    %2721 = vmatpush1.msra.mxu0 0.0
    %2722 = vmatprep.subr.mxu0 0.0
    %2723 = vmatpush1.msra.mxu0 0.0
    %2724 = vmatprep.subr.mxu0 0.0
    %2725 = vmatpush1.msra.mxu0 0.0
    %2726 = vmatprep.subr.mxu0 0.0
    %2727 = vmatpush1.msra.mxu0 0.0
    %2728 = vmatprep.subr.mxu0 0.0
    %2729 = vmatpush1.msra.mxu0 0.0
    %2730 = vmatprep.mubr.f32.mxu0 0.0
    %2731 = vmatmul.mubr.f32.gmra.mrb[0].mxu0 %v2593
    %v2732 = vpop.f32.mrb[0].mxu0
    %v2733 = vadd.f32 %v489, %v2732
    %v2734 = vpop.f32.mrb[0].mxu0
    %2735 = vdwg.mxu0
    %v2736 = vadd.f32 %v2572, %v2662
    %2737 = vst.msk [vmem:[#allocation4 + $0x28] sm:$0xff] %vm656, %v2736
    %v2738 = vmul.f32 %v2736, 1.442695
    %v2739 = vpow.pop %v2738
    %2741 = vrot.lane.b32.xlu0 %v2575, 32
    %v2742 = vpop.permute.xlu0 %2741
    %v2744 = vmul.f32 %v2739, %v2742
    %2746 = vrot.lane.b32.xlu0 %v2744, 96
    %v2747 = vpop.permute.xlu0 %2746
    %v2749 = vadd.f32 %v2736, %v2747
    %v2750 = vld [vmem:[#allocation6 + $0x38] sm:$0xff]
    %v2751 = vld [vmem:[#allocation6 + $0x98] sm:$0xff]
    %v2752 = vld [vmem:[#allocation6 + $0xf8] sm:$0xff]
    %v2753 = vld [vmem:[#allocation6 + $0x158] sm:$0xff]
    %v2755 = vsel %vm208, %v2749, 0
    %2757 = vmatprep.subr.mxu0 0.0
    %2758 = vmatpush1.msra.mxu0 %v2750
    %2759 = vmatprep.subr.mxu0 0.0
    %2760 = vmatpush1.msra.mxu0 %v2751
    %2761 = vmatprep.subr.mxu0 0.0
    %2762 = vmatpush1.msra.mxu0 %v2752
    %2763 = vmatprep.subr.mxu0 0.0
    %2764 = vmatpush1.msra.mxu0 %v2753
    %2765 = vmatprep.subr.mxu0 0.0
    %2766 = vmatpush1.msra.mxu0 0.0
    %2767 = vmatprep.subr.mxu0 0.0
    %2768 = vmatpush1.msra.mxu0 0.0
    %2769 = vmatprep.subr.mxu0 0.0
    %2770 = vmatpush1.msra.mxu0 0.0
    %2771 = vmatprep.subr.mxu0 0.0
    %2772 = vmatpush1.msra.mxu0 0.0
    %2773 = vmatprep.subr.mxu0 0.0
    %2774 = vmatpush1.msra.mxu0 0.0
    %2775 = vmatprep.subr.mxu0 0.0
    %2776 = vmatpush1.msra.mxu0 0.0
    %2777 = vmatprep.subr.mxu0 0.0
    %2778 = vmatpush1.msra.mxu0 0.0
    %2779 = vmatprep.subr.mxu0 0.0
    %2780 = vmatpush1.msra.mxu0 0.0
    %2781 = vmatprep.subr.mxu0 0.0
    %2782 = vmatpush1.msra.mxu0 0.0
    %2783 = vmatprep.subr.mxu0 0.0
    %2784 = vmatpush1.msra.mxu0 0.0
    %2785 = vmatprep.subr.mxu0 0.0
    %2786 = vmatpush1.msra.mxu0 0.0
    %2787 = vmatprep.subr.mxu0 0.0
    %2788 = vmatpush1.msra.mxu0 0.0
    %2789 = vmatprep.subr.mxu0 0.0
    %2790 = vmatpush1.msra.mxu0 0.0
    %2791 = vmatprep.subr.mxu0 0.0
    %2792 = vmatpush1.msra.mxu0 0.0
    %2793 = vmatprep.subr.mxu0 0.0
    %2794 = vmatpush1.msra.mxu0 0.0
    %2795 = vmatprep.subr.mxu0 0.0
    %2796 = vmatpush1.msra.mxu0 0.0
    %2797 = vmatprep.subr.mxu0 0.0
    %2798 = vmatpush1.msra.mxu0 0.0
    %2799 = vmatprep.subr.mxu0 0.0
    %2800 = vmatpush1.msra.mxu0 0.0
    %2801 = vmatprep.subr.mxu0 0.0
    %2802 = vmatpush1.msra.mxu0 0.0
    %2803 = vmatprep.subr.mxu0 0.0
    %2804 = vmatpush1.msra.mxu0 0.0
    %2805 = vmatprep.subr.mxu0 0.0
    %2806 = vmatpush1.msra.mxu0 0.0
    %2807 = vmatprep.subr.mxu0 0.0
    %2808 = vmatpush1.msra.mxu0 0.0
    %2809 = vmatprep.subr.mxu0 0.0
    %2810 = vmatpush1.msra.mxu0 0.0
    %2811 = vmatprep.subr.mxu0 0.0
    %2812 = vmatpush1.msra.mxu0 0.0
    %2813 = vmatprep.subr.mxu0 0.0
    %2814 = vmatpush1.msra.mxu0 0.0
    %2815 = vmatprep.subr.mxu0 0.0
    %2816 = vmatpush1.msra.mxu0 0.0
    %2817 = vmatprep.subr.mxu0 0.0
    %2818 = vmatpush1.msra.mxu0 0.0
    %2819 = vmatprep.subr.mxu0 0.0
    %2820 = vmatpush1.msra.mxu0 0.0
    %2821 = vmatprep.mubr.f32.mxu0 0.0
    %2822 = vmatmul.mubr.f32.gmra.mrb[0].mxu0 %v2755
    %v2823 = vpop.f32.mrb[0].mxu0
    %v2824 = vadd.f32 %v493, %v2823
    %v2825 = vpop.f32.mrb[0].mxu0
    %2826 = vdwg.mxu0
    %v2827 = vmax.f32 %v2824, 0.0
    %2828 = vst.msk [vmem:[#allocation5 + $0x28] sm:$0xff] %vm208, %v2827
    %v2829 = vld [vmem:[#allocation6 + $0x40] sm:$0xff]
    %v2830 = vld [vmem:[#allocation6 + $0x48] sm:$0xff]
    %v2831 = vld [vmem:[#allocation6 + $0xa0] sm:$0xff]
    %v2832 = vld [vmem:[#allocation6 + $0xa8] sm:$0xff]
    %v2833 = vld [vmem:[#allocation6 + $0x100] sm:$0xff]
    %v2834 = vld [vmem:[#allocation6 + $0x108] sm:$0xff]
    %v2835 = vld [vmem:[#allocation6 + $0x160] sm:$0xff]
    %v2836 = vld [vmem:[#allocation6 + $0x168] sm:$0xff]
    %v2838 = vsel %vm208, %v2827, 0
    %2840 = vmatprep.subr.mxu0 %v2830
    %2841 = vmatpush1.msra.mxu0 %v2829
    %2842 = vmatprep.subr.mxu0 %v2832
    %2843 = vmatpush1.msra.mxu0 %v2831
    %2844 = vmatprep.subr.mxu0 %v2834
    %2845 = vmatpush1.msra.mxu0 %v2833
    %2846 = vmatprep.subr.mxu0 %v2836
    %2847 = vmatpush1.msra.mxu0 %v2835
    %2848 = vmatprep.subr.mxu0 0.0
    %2849 = vmatpush1.msra.mxu0 0.0
    %2850 = vmatprep.subr.mxu0 0.0
    %2851 = vmatpush1.msra.mxu0 0.0
    %2852 = vmatprep.subr.mxu0 0.0
    %2853 = vmatpush1.msra.mxu0 0.0
    %2854 = vmatprep.subr.mxu0 0.0
    %2855 = vmatpush1.msra.mxu0 0.0
    %2856 = vmatprep.subr.mxu0 0.0
    %2857 = vmatpush1.msra.mxu0 0.0
    %2858 = vmatprep.subr.mxu0 0.0
    %2859 = vmatpush1.msra.mxu0 0.0
    %2860 = vmatprep.subr.mxu0 0.0
    %2861 = vmatpush1.msra.mxu0 0.0
    %2862 = vmatprep.subr.mxu0 0.0
    %2863 = vmatpush1.msra.mxu0 0.0
    %2864 = vmatprep.subr.mxu0 0.0
    %2865 = vmatpush1.msra.mxu0 0.0
    %2866 = vmatprep.subr.mxu0 0.0
    %2867 = vmatpush1.msra.mxu0 0.0
    %2868 = vmatprep.subr.mxu0 0.0
    %2869 = vmatpush1.msra.mxu0 0.0
    %2870 = vmatprep.subr.mxu0 0.0
    %2871 = vmatpush1.msra.mxu0 0.0
    %2872 = vmatprep.subr.mxu0 0.0
    %2873 = vmatpush1.msra.mxu0 0.0
    %2874 = vmatprep.subr.mxu0 0.0
    %2875 = vmatpush1.msra.mxu0 0.0
    %2876 = vmatprep.subr.mxu0 0.0
    %2877 = vmatpush1.msra.mxu0 0.0
    %2878 = vmatprep.subr.mxu0 0.0
    %2879 = vmatpush1.msra.mxu0 0.0
    %2880 = vmatprep.subr.mxu0 0.0
    %2881 = vmatpush1.msra.mxu0 0.0
    %2882 = vmatprep.subr.mxu0 0.0
    %2883 = vmatpush1.msra.mxu0 0.0
    %2884 = vmatprep.subr.mxu0 0.0
    %2885 = vmatpush1.msra.mxu0 0.0
    %2886 = vmatprep.subr.mxu0 0.0
    %2887 = vmatpush1.msra.mxu0 0.0
    %2888 = vmatprep.subr.mxu0 0.0
    %2889 = vmatpush1.msra.mxu0 0.0
    %2890 = vmatprep.subr.mxu0 0.0
    %2891 = vmatpush1.msra.mxu0 0.0
    %2892 = vmatprep.subr.mxu0 0.0
    %2893 = vmatpush1.msra.mxu0 0.0
    %2894 = vmatprep.subr.mxu0 0.0
    %2895 = vmatpush1.msra.mxu0 0.0
    %2896 = vmatprep.subr.mxu0 0.0
    %2897 = vmatpush1.msra.mxu0 0.0
    %2898 = vmatprep.subr.mxu0 0.0
    %2899 = vmatpush1.msra.mxu0 0.0
    %2900 = vmatprep.subr.mxu0 0.0
    %2901 = vmatpush1.msra.mxu0 0.0
    %2902 = vmatprep.subr.mxu0 0.0
    %2903 = vmatpush1.msra.mxu0 0.0
    %2904 = vmatprep.mubr.f32.mxu0 0.0
    %2905 = vmatmul.mubr.f32.gmra.mrb[0].mxu0 %v2838
    %v2906 = vpop.f32.mrb[0].mxu0
    %v2907 = vadd.f32 0.0, %v2906
    %v2908 = vpop.f32.mrb[0].mxu0
    %v2909 = vadd.f32 0.0, %v2908
    %2910 = vdwg.mxu0
    %2912 = vrot.lane.b32.xlu0 %v2907, 64
    %v2913 = vpop.permute.xlu0 %2912
    %v2915 = vadd.f32 %v2572, %v2913
    %v2916 = vadd.f32 %v2573, %v2913
    %v2917 = vadd.f32 %v2915, %v2662
    %v2918 = vxor.u32 %v2917, 2147483648
    %v2919 = vmul.f32 %v2918, 1.442695
    %v2920 = vpow.pop %v2919
    %v2921 = vadd.f32 %v2920, 1.0
    %v2922 = vrcp.pop %v2921
    %v2923 = vmul.f32 1.0, %v2922
    %2925 = vrot.lane.b32.xlu0 %v2664, 64
    %v2926 = vpop.permute.xlu0 %2925
    %v2928 = vmul.f32 %v2923, %v2926
    %2930 = vrot.lane.b32.xlu0 %v2928, 64
    %v2931 = vpop.permute.xlu0 %2930
    %v2933 = vadd.f32 %v2916, %v2931
    %v2934 = vtanh.pop %v2933
    %v2935 = vsub.f32 1.0, %v2923
    %2937 = vrot.lane.b32.xlu0 %v2934, 96
    %v2938 = vpop.permute.xlu0 %2937
    %v2940 = vmul.f32 %v2935, %v2938
    %v2941 = vmul.f32 %v2923, %v2571
    %v2942 = vadd.f32 %v2940, %v2941
    %2944 = vrot.lane.b32.xlu0 %v2909, 64
    %v2945 = vpop.permute.xlu0 %2944
    %v2946 = vsel %vm656, %v2913, %v2945
    %v2949 = vadd.f32 %v2573, %v2946
    %v2950 = vadd.f32 %v2574, %v2945
    %v2951 = vadd.f32 %v2949, %v2664
    %v2952 = vadd.f32 %v2950, %v2733
    %v2953 = vxor.u32 %v2951, 2147483648
    %v2954 = vmul.f32 %v2953, 1.442695
    %v2955 = vpow.pop %v2954
    %v2956 = vadd.f32 %v2955, 1.0
    %v2957 = vrcp.pop %v2956
    %v2958 = vmul.f32 1.0, %v2957
    %v2959 = vtanh.pop %v2951
    %v2960 = vxor.u32 %v2952, 2147483648
    %v2961 = vmul.f32 %v2960, 1.442695
    %v2962 = vpow.pop %v2961
    %v2963 = vadd.f32 %v2962, 1.0
    %v2964 = vrcp.pop %v2963
    %v2965 = vmul.f32 1.0, %v2964
    %v2966 = vmul.f32 %v2958, %v2560
    %2968 = vrot.lane.b32.xlu0 %v2959, 64
    %v2969 = vpop.permute.xlu0 %2968
    %v2971 = vmul.f32 %v2958, %v2969
    %2973 = vrot.lane.b32.xlu0 %v2971, 32
    %v2974 = vpop.permute.xlu0 %2973
    %v2976 = vadd.f32 %v2966, %v2974
    %v2977 = vtanh.pop %v2976
    %2979 = vrot.lane.b32.xlu0 %v2977, 64
    %v2980 = vpop.permute.xlu0 %2979
    %v2982 = vmul.f32 %v2965, %v2980
    %2984 = vrot.lane.b32.xlu0 %v2982, 96
    %v2985 = vpop.permute.xlu0 %2984
    %v2987 = vadd.f32 %v2942, %v2985
    %v2988 = vld [vmem:[#allocation2 + $0x90] sm:$0xff]
    %v2989 = vld [vmem:[#allocation2 + $0x98] sm:$0xff]
    %v2990 = vld [vmem:[#allocation2 + $0xa0] sm:$0xff]
    %v2991 = vld [vmem:[%s1 + $0x30] sm:$0xff]
    %2993 = vrot.lane.b32.xlu0 %v2987, 32
    %v2994 = vpop.permute.xlu0 %2993
    %2996 = vst.msk [vmem:[#allocation3 + $0x30] sm:$0xff] %vm208, %v2994
    %v2997 = vld [vmem:[#allocation6 + $0x20] sm:$0xff]
    %v2998 = vld [vmem:[#allocation6 + $0x28] sm:$0xff]
    %v2999 = vld [vmem:[#allocation6 + $0x30] sm:$0xff]
    %v3000 = vld [vmem:[#allocation6 + $0x80] sm:$0xff]
    %v3001 = vld [vmem:[#allocation6 + $0x88] sm:$0xff]
    %v3002 = vld [vmem:[#allocation6 + $0x90] sm:$0xff]
    %v3003 = vld [vmem:[#allocation6 + $0xe0] sm:$0xff]
    %v3004 = vld [vmem:[#allocation6 + $0xe8] sm:$0xff]
    %v3005 = vld [vmem:[#allocation6 + $0xf0] sm:$0xff]
    %v3006 = vld [vmem:[#allocation6 + $0x140] sm:$0xff]
    %v3007 = vld [vmem:[#allocation6 + $0x148] sm:$0xff]
    %v3008 = vld [vmem:[#allocation6 + $0x150] sm:$0xff]
    %v3009 = vsel %vm208, %v2994, 0
    %3011 = vmatprep.subr.mxu0 %v2998
    %3012 = vmatpush1.msra.mxu0 %v2997
    %3013 = vmatprep.subr.mxu0 %v3001
    %3014 = vmatpush1.msra.mxu0 %v3000
    %3015 = vmatprep.subr.mxu0 %v3004
    %3016 = vmatpush1.msra.mxu0 %v3003
    %3017 = vmatprep.subr.mxu0 %v3007
    %3018 = vmatpush1.msra.mxu0 %v3006
    %3019 = vmatprep.subr.mxu0 0.0
    %3020 = vmatpush1.msra.mxu0 0.0
    %3021 = vmatprep.subr.mxu0 0.0
    %3022 = vmatpush1.msra.mxu0 0.0
    %3023 = vmatprep.subr.mxu0 0.0
    %3024 = vmatpush1.msra.mxu0 0.0
    %3025 = vmatprep.subr.mxu0 0.0
    %3026 = vmatpush1.msra.mxu0 0.0
    %3027 = vmatprep.subr.mxu0 0.0
    %3028 = vmatpush1.msra.mxu0 0.0
    %3029 = vmatprep.subr.mxu0 0.0
    %3030 = vmatpush1.msra.mxu0 0.0
    %3031 = vmatprep.subr.mxu0 0.0
    %3032 = vmatpush1.msra.mxu0 0.0
    %3033 = vmatprep.subr.mxu0 0.0
    %3034 = vmatpush1.msra.mxu0 0.0
    %3035 = vmatprep.subr.mxu0 0.0
    %3036 = vmatpush1.msra.mxu0 0.0
    %3037 = vmatprep.subr.mxu0 0.0
    %3038 = vmatpush1.msra.mxu0 0.0
    %3039 = vmatprep.subr.mxu0 0.0
    %3040 = vmatpush1.msra.mxu0 0.0
    %3041 = vmatprep.subr.mxu0 0.0
    %3042 = vmatpush1.msra.mxu0 0.0
    %3043 = vmatprep.subr.mxu0 0.0
    %3044 = vmatpush1.msra.mxu0 0.0
    %3045 = vmatprep.subr.mxu0 0.0
    %3046 = vmatpush1.msra.mxu0 0.0
    %3047 = vmatprep.subr.mxu0 0.0
    %3048 = vmatpush1.msra.mxu0 0.0
    %3049 = vmatprep.subr.mxu0 0.0
    %3050 = vmatpush1.msra.mxu0 0.0
    %3051 = vmatprep.subr.mxu0 0.0
    %3052 = vmatpush1.msra.mxu0 0.0
    %3053 = vmatprep.subr.mxu0 0.0
    %3054 = vmatpush1.msra.mxu0 0.0
    %3055 = vmatprep.subr.mxu0 0.0
    %3056 = vmatpush1.msra.mxu0 0.0
    %3057 = vmatprep.subr.mxu0 0.0
    %3058 = vmatpush1.msra.mxu0 0.0
    %3059 = vmatprep.subr.mxu0 0.0
    %3060 = vmatpush1.msra.mxu0 0.0
    %3061 = vmatprep.subr.mxu0 0.0
    %3062 = vmatpush1.msra.mxu0 0.0
    %3063 = vmatprep.subr.mxu0 0.0
    %3064 = vmatpush1.msra.mxu0 0.0
    %3065 = vmatprep.subr.mxu0 0.0
    %3066 = vmatpush1.msra.mxu0 0.0
    %3067 = vmatprep.subr.mxu0 0.0
    %3068 = vmatpush1.msra.mxu0 0.0
    %3069 = vmatprep.subr.mxu0 0.0
    %3070 = vmatpush1.msra.mxu0 0.0
    %3071 = vmatprep.subr.mxu0 0.0
    %3072 = vmatpush1.msra.mxu0 0.0
    %3073 = vmatprep.subr.mxu0 0.0
    %3074 = vmatpush1.msra.mxu0 0.0
    %3075 = vmatprep.mubr.f32.mxu0 0.0
    %3076 = vmatmul.mubr.f32.gmra.mrb[0].mxu0 %v3009
    %v3077 = vpop.f32.mrb[0].mxu0
    %v3078 = vadd.f32 %v481, %v3077
    %v3079 = vpop.f32.mrb[0].mxu0
    %v3080 = vadd.f32 %v485, %v3079
    %3081 = vdwg.mxu0
    %3082 = vmatprep.subr.mxu0 0.0
    %3083 = vmatpush1.msra.mxu0 %v2999
    %3084 = vmatprep.subr.mxu0 0.0
    %3085 = vmatpush1.msra.mxu0 %v3002
    %3086 = vmatprep.subr.mxu0 0.0
    %3087 = vmatpush1.msra.mxu0 %v3005
    %3088 = vmatprep.subr.mxu0 0.0
    %3089 = vmatpush1.msra.mxu0 %v3008
    %3090 = vmatprep.subr.mxu0 0.0
    %3091 = vmatpush1.msra.mxu0 0.0
    %3092 = vmatprep.subr.mxu0 0.0
    %3093 = vmatpush1.msra.mxu0 0.0
    %3094 = vmatprep.subr.mxu0 0.0
    %3095 = vmatpush1.msra.mxu0 0.0
    %3096 = vmatprep.subr.mxu0 0.0
    %3097 = vmatpush1.msra.mxu0 0.0
    %3098 = vmatprep.subr.mxu0 0.0
    %3099 = vmatpush1.msra.mxu0 0.0
    %3100 = vmatprep.subr.mxu0 0.0
    %3101 = vmatpush1.msra.mxu0 0.0
    %3102 = vmatprep.subr.mxu0 0.0
    %3103 = vmatpush1.msra.mxu0 0.0
    %3104 = vmatprep.subr.mxu0 0.0
    %3105 = vmatpush1.msra.mxu0 0.0
    %3106 = vmatprep.subr.mxu0 0.0
    %3107 = vmatpush1.msra.mxu0 0.0
    %3108 = vmatprep.subr.mxu0 0.0
    %3109 = vmatpush1.msra.mxu0 0.0
    %3110 = vmatprep.subr.mxu0 0.0
    %3111 = vmatpush1.msra.mxu0 0.0
    %3112 = vmatprep.subr.mxu0 0.0
    %3113 = vmatpush1.msra.mxu0 0.0
    %3114 = vmatprep.subr.mxu0 0.0
    %3115 = vmatpush1.msra.mxu0 0.0
    %3116 = vmatprep.subr.mxu0 0.0
    %3117 = vmatpush1.msra.mxu0 0.0
    %3118 = vmatprep.subr.mxu0 0.0
    %3119 = vmatpush1.msra.mxu0 0.0
    %3120 = vmatprep.subr.mxu0 0.0
    %3121 = vmatpush1.msra.mxu0 0.0
    %3122 = vmatprep.subr.mxu0 0.0
    %3123 = vmatpush1.msra.mxu0 0.0
    %3124 = vmatprep.subr.mxu0 0.0
    %3125 = vmatpush1.msra.mxu0 0.0
    %3126 = vmatprep.subr.mxu0 0.0
    %3127 = vmatpush1.msra.mxu0 0.0
    %3128 = vmatprep.subr.mxu0 0.0
    %3129 = vmatpush1.msra.mxu0 0.0
    %3130 = vmatprep.subr.mxu0 0.0
    %3131 = vmatpush1.msra.mxu0 0.0
    %3132 = vmatprep.subr.mxu0 0.0
    %3133 = vmatpush1.msra.mxu0 0.0
    %3134 = vmatprep.subr.mxu0 0.0
    %3135 = vmatpush1.msra.mxu0 0.0
    %3136 = vmatprep.subr.mxu0 0.0
    %3137 = vmatpush1.msra.mxu0 0.0
    %3138 = vmatprep.subr.mxu0 0.0
    %3139 = vmatpush1.msra.mxu0 0.0
    %3140 = vmatprep.subr.mxu0 0.0
    %3141 = vmatpush1.msra.mxu0 0.0
    %3142 = vmatprep.subr.mxu0 0.0
    %3143 = vmatpush1.msra.mxu0 0.0
    %3144 = vmatprep.subr.mxu0 0.0
    %3145 = vmatpush1.msra.mxu0 0.0
    %3146 = vmatprep.mubr.f32.mxu0 0.0
    %3147 = vmatmul.mubr.f32.gmra.mrb[0].mxu0 %v3009
    %v3148 = vpop.f32.mrb[0].mxu0
    %v3149 = vadd.f32 %v489, %v3148
    %v3150 = vpop.f32.mrb[0].mxu0
    %3151 = vdwg.mxu0
    %v3152 = vadd.f32 %v2988, %v3078
    %3153 = vst.msk [vmem:[#allocation4 + $0x30] sm:$0xff] %vm656, %v3152
    %v3154 = vmul.f32 %v3152, 1.442695
    %v3155 = vpow.pop %v3154
    %3157 = vrot.lane.b32.xlu0 %v2991, 32
    %v3158 = vpop.permute.xlu0 %3157
    %v3160 = vmul.f32 %v3155, %v3158
    %3162 = vrot.lane.b32.xlu0 %v3160, 96
    %v3163 = vpop.permute.xlu0 %3162
    %v3165 = vadd.f32 %v3152, %v3163
    %v3166 = vld [vmem:[#allocation6 + $0x38] sm:$0xff]
    %v3167 = vld [vmem:[#allocation6 + $0x98] sm:$0xff]
    %v3168 = vld [vmem:[#allocation6 + $0xf8] sm:$0xff]
    %v3169 = vld [vmem:[#allocation6 + $0x158] sm:$0xff]
    %v3171 = vsel %vm208, %v3165, 0
    %3173 = vmatprep.subr.mxu0 0.0
    %3174 = vmatpush1.msra.mxu0 %v3166
    %3175 = vmatprep.subr.mxu0 0.0
    %3176 = vmatpush1.msra.mxu0 %v3167
    %3177 = vmatprep.subr.mxu0 0.0
    %3178 = vmatpush1.msra.mxu0 %v3168
    %3179 = vmatprep.subr.mxu0 0.0
    %3180 = vmatpush1.msra.mxu0 %v3169
    %3181 = vmatprep.subr.mxu0 0.0
    %3182 = vmatpush1.msra.mxu0 0.0
    %3183 = vmatprep.subr.mxu0 0.0
    %3184 = vmatpush1.msra.mxu0 0.0
    %3185 = vmatprep.subr.mxu0 0.0
    %3186 = vmatpush1.msra.mxu0 0.0
    %3187 = vmatprep.subr.mxu0 0.0
    %3188 = vmatpush1.msra.mxu0 0.0
    %3189 = vmatprep.subr.mxu0 0.0
    %3190 = vmatpush1.msra.mxu0 0.0
    %3191 = vmatprep.subr.mxu0 0.0
    %3192 = vmatpush1.msra.mxu0 0.0
    %3193 = vmatprep.subr.mxu0 0.0
    %3194 = vmatpush1.msra.mxu0 0.0
    %3195 = vmatprep.subr.mxu0 0.0
    %3196 = vmatpush1.msra.mxu0 0.0
    %3197 = vmatprep.subr.mxu0 0.0
    %3198 = vmatpush1.msra.mxu0 0.0
    %3199 = vmatprep.subr.mxu0 0.0
    %3200 = vmatpush1.msra.mxu0 0.0
    %3201 = vmatprep.subr.mxu0 0.0
    %3202 = vmatpush1.msra.mxu0 0.0
    %3203 = vmatprep.subr.mxu0 0.0
    %3204 = vmatpush1.msra.mxu0 0.0
    %3205 = vmatprep.subr.mxu0 0.0
    %3206 = vmatpush1.msra.mxu0 0.0
    %3207 = vmatprep.subr.mxu0 0.0
    %3208 = vmatpush1.msra.mxu0 0.0
    %3209 = vmatprep.subr.mxu0 0.0
    %3210 = vmatpush1.msra.mxu0 0.0
    %3211 = vmatprep.subr.mxu0 0.0
    %3212 = vmatpush1.msra.mxu0 0.0
    %3213 = vmatprep.subr.mxu0 0.0
    %3214 = vmatpush1.msra.mxu0 0.0
    %3215 = vmatprep.subr.mxu0 0.0
    %3216 = vmatpush1.msra.mxu0 0.0
    %3217 = vmatprep.subr.mxu0 0.0
    %3218 = vmatpush1.msra.mxu0 0.0
    %3219 = vmatprep.subr.mxu0 0.0
    %3220 = vmatpush1.msra.mxu0 0.0
    %3221 = vmatprep.subr.mxu0 0.0
    %3222 = vmatpush1.msra.mxu0 0.0
    %3223 = vmatprep.subr.mxu0 0.0
    %3224 = vmatpush1.msra.mxu0 0.0
    %3225 = vmatprep.subr.mxu0 0.0
    %3226 = vmatpush1.msra.mxu0 0.0
    %3227 = vmatprep.subr.mxu0 0.0
    %3228 = vmatpush1.msra.mxu0 0.0
    %3229 = vmatprep.subr.mxu0 0.0
    %3230 = vmatpush1.msra.mxu0 0.0
    %3231 = vmatprep.subr.mxu0 0.0
    %3232 = vmatpush1.msra.mxu0 0.0
    %3233 = vmatprep.subr.mxu0 0.0
    %3234 = vmatpush1.msra.mxu0 0.0
    %3235 = vmatprep.subr.mxu0 0.0
    %3236 = vmatpush1.msra.mxu0 0.0
    %3237 = vmatprep.mubr.f32.mxu0 0.0
    %3238 = vmatmul.mubr.f32.gmra.mrb[0].mxu0 %v3171
    %v3239 = vpop.f32.mrb[0].mxu0
    %v3240 = vadd.f32 %v493, %v3239
    %v3241 = vpop.f32.mrb[0].mxu0
    %3242 = vdwg.mxu0
    %v3243 = vmax.f32 %v3240, 0.0
    %3244 = vst.msk [vmem:[#allocation5 + $0x30] sm:$0xff] %vm208, %v3243
    %v3245 = vld [vmem:[#allocation6 + $0x40] sm:$0xff]
    %v3246 = vld [vmem:[#allocation6 + $0x48] sm:$0xff]
    %v3247 = vld [vmem:[#allocation6 + $0xa0] sm:$0xff]
    %v3248 = vld [vmem:[#allocation6 + $0xa8] sm:$0xff]
    %v3249 = vld [vmem:[#allocation6 + $0x100] sm:$0xff]
    %v3250 = vld [vmem:[#allocation6 + $0x108] sm:$0xff]
    %v3251 = vld [vmem:[#allocation6 + $0x160] sm:$0xff]
    %v3252 = vld [vmem:[#allocation6 + $0x168] sm:$0xff]
    %v3254 = vsel %vm208, %v3243, 0
    %3256 = vmatprep.subr.mxu0 %v3246
    %3257 = vmatpush1.msra.mxu0 %v3245
    %3258 = vmatprep.subr.mxu0 %v3248
    %3259 = vmatpush1.msra.mxu0 %v3247
    %3260 = vmatprep.subr.mxu0 %v3250
    %3261 = vmatpush1.msra.mxu0 %v3249
    %3262 = vmatprep.subr.mxu0 %v3252
    %3263 = vmatpush1.msra.mxu0 %v3251
    %3264 = vmatprep.subr.mxu0 0.0
    %3265 = vmatpush1.msra.mxu0 0.0
    %3266 = vmatprep.subr.mxu0 0.0
    %3267 = vmatpush1.msra.mxu0 0.0
    %3268 = vmatprep.subr.mxu0 0.0
    %3269 = vmatpush1.msra.mxu0 0.0
    %3270 = vmatprep.subr.mxu0 0.0
    %3271 = vmatpush1.msra.mxu0 0.0
    %3272 = vmatprep.subr.mxu0 0.0
    %3273 = vmatpush1.msra.mxu0 0.0
    %3274 = vmatprep.subr.mxu0 0.0
    %3275 = vmatpush1.msra.mxu0 0.0
    %3276 = vmatprep.subr.mxu0 0.0
    %3277 = vmatpush1.msra.mxu0 0.0
    %3278 = vmatprep.subr.mxu0 0.0
    %3279 = vmatpush1.msra.mxu0 0.0
    %3280 = vmatprep.subr.mxu0 0.0
    %3281 = vmatpush1.msra.mxu0 0.0
    %3282 = vmatprep.subr.mxu0 0.0
    %3283 = vmatpush1.msra.mxu0 0.0
    %3284 = vmatprep.subr.mxu0 0.0
    %3285 = vmatpush1.msra.mxu0 0.0
    %3286 = vmatprep.subr.mxu0 0.0
    %3287 = vmatpush1.msra.mxu0 0.0
    %3288 = vmatprep.subr.mxu0 0.0
    %3289 = vmatpush1.msra.mxu0 0.0
    %3290 = vmatprep.subr.mxu0 0.0
    %3291 = vmatpush1.msra.mxu0 0.0
    %3292 = vmatprep.subr.mxu0 0.0
    %3293 = vmatpush1.msra.mxu0 0.0
    %3294 = vmatprep.subr.mxu0 0.0
    %3295 = vmatpush1.msra.mxu0 0.0
    %3296 = vmatprep.subr.mxu0 0.0
    %3297 = vmatpush1.msra.mxu0 0.0
    %3298 = vmatprep.subr.mxu0 0.0
    %3299 = vmatpush1.msra.mxu0 0.0
    %3300 = vmatprep.subr.mxu0 0.0
    %3301 = vmatpush1.msra.mxu0 0.0
    %3302 = vmatprep.subr.mxu0 0.0
    %3303 = vmatpush1.msra.mxu0 0.0
    %3304 = vmatprep.subr.mxu0 0.0
    %3305 = vmatpush1.msra.mxu0 0.0
    %3306 = vmatprep.subr.mxu0 0.0
    %3307 = vmatpush1.msra.mxu0 0.0
    %3308 = vmatprep.subr.mxu0 0.0
    %3309 = vmatpush1.msra.mxu0 0.0
    %3310 = vmatprep.subr.mxu0 0.0
    %3311 = vmatpush1.msra.mxu0 0.0
    %3312 = vmatprep.subr.mxu0 0.0
    %3313 = vmatpush1.msra.mxu0 0.0
    %3314 = vmatprep.subr.mxu0 0.0
    %3315 = vmatpush1.msra.mxu0 0.0
    %3316 = vmatprep.subr.mxu0 0.0
    %3317 = vmatpush1.msra.mxu0 0.0
    %3318 = vmatprep.subr.mxu0 0.0
    %3319 = vmatpush1.msra.mxu0 0.0
    %3320 = vmatprep.mubr.f32.mxu0 0.0
    %3321 = vmatmul.mubr.f32.gmra.mrb[0].mxu0 %v3254
    %v3322 = vpop.f32.mrb[0].mxu0
    %v3323 = vadd.f32 0.0, %v3322
    %v3324 = vpop.f32.mrb[0].mxu0
    %v3325 = vadd.f32 0.0, %v3324
    %3326 = vdwg.mxu0
    %3328 = vrot.lane.b32.xlu0 %v3323, 64
    %v3329 = vpop.permute.xlu0 %3328
    %v3331 = vadd.f32 %v2988, %v3329
    %v3332 = vadd.f32 %v2989, %v3329
    %v3333 = vadd.f32 %v3331, %v3078
    %v3334 = vxor.u32 %v3333, 2147483648
    %v3335 = vmul.f32 %v3334, 1.442695
    %v3336 = vpow.pop %v3335
    %v3337 = vadd.f32 %v3336, 1.0
    %v3338 = vrcp.pop %v3337
    %v3339 = vmul.f32 1.0, %v3338
    %3341 = vrot.lane.b32.xlu0 %v3080, 64
    %v3342 = vpop.permute.xlu0 %3341
    %v3344 = vmul.f32 %v3339, %v3342
    %3346 = vrot.lane.b32.xlu0 %v3344, 64
    %v3347 = vpop.permute.xlu0 %3346
    %v3349 = vadd.f32 %v3332, %v3347
    %v3350 = vtanh.pop %v3349
    %v3351 = vsub.f32 1.0, %v3339
    %3353 = vrot.lane.b32.xlu0 %v3350, 96
    %v3354 = vpop.permute.xlu0 %3353
    %v3356 = vmul.f32 %v3351, %v3354
    %v3357 = vmul.f32 %v3339, %v2987
    %v3358 = vadd.f32 %v3356, %v3357
    %3360 = vrot.lane.b32.xlu0 %v3325, 64
    %v3361 = vpop.permute.xlu0 %3360
    %v3362 = vsel %vm656, %v3329, %v3361
    %v3365 = vadd.f32 %v2989, %v3362
    %v3366 = vadd.f32 %v2990, %v3361
    %v3367 = vadd.f32 %v3365, %v3080
    %v3368 = vadd.f32 %v3366, %v3149
    %v3369 = vxor.u32 %v3367, 2147483648
    %v3370 = vmul.f32 %v3369, 1.442695
    %v3371 = vpow.pop %v3370
    %v3372 = vadd.f32 %v3371, 1.0
    %v3373 = vrcp.pop %v3372
    %v3374 = vmul.f32 1.0, %v3373
    %v3375 = vtanh.pop %v3367
    %v3376 = vxor.u32 %v3368, 2147483648
    %v3377 = vmul.f32 %v3376, 1.442695
    %v3378 = vpow.pop %v3377
    %v3379 = vadd.f32 %v3378, 1.0
    %v3380 = vrcp.pop %v3379
    %v3381 = vmul.f32 1.0, %v3380
    %v3382 = vmul.f32 %v3374, %v2976
    %3384 = vrot.lane.b32.xlu0 %v3375, 64
    %v3385 = vpop.permute.xlu0 %3384
    %v3387 = vmul.f32 %v3374, %v3385
    %3389 = vrot.lane.b32.xlu0 %v3387, 32
    %v3390 = vpop.permute.xlu0 %3389
    %v3392 = vadd.f32 %v3382, %v3390
    %v3393 = vtanh.pop %v3392
    %3395 = vrot.lane.b32.xlu0 %v3393, 64
    %v3396 = vpop.permute.xlu0 %3395
    %v3398 = vmul.f32 %v3381, %v3396
    %3400 = vrot.lane.b32.xlu0 %v3398, 96
    %v3401 = vpop.permute.xlu0 %3400
    %v3403 = vadd.f32 %v3358, %v3401
    %v3404 = vld [vmem:[#allocation2 + $0xa8] sm:$0xff]
    %v3405 = vld [vmem:[%s1 + $0x38] sm:$0xff]
    %3407 = vrot.lane.b32.xlu0 %v3403, 32
    %v3408 = vpop.permute.xlu0 %3407
    %3410 = vst.msk [vmem:[#allocation3 + $0x38] sm:$0xff] %vm208, %v3408
    %v3411 = vld [vmem:[#allocation6 + $0x20] sm:$0xff]
    %v3412 = vld [vmem:[#allocation6 + $0x28] sm:$0xff]
    %v3413 = vld [vmem:[#allocation6 + $0x80] sm:$0xff]
    %v3414 = vld [vmem:[#allocation6 + $0x88] sm:$0xff]
    %v3415 = vld [vmem:[#allocation6 + $0xe0] sm:$0xff]
    %v3416 = vld [vmem:[#allocation6 + $0xe8] sm:$0xff]
    %v3417 = vld [vmem:[#allocation6 + $0x140] sm:$0xff]
    %v3418 = vld [vmem:[#allocation6 + $0x148] sm:$0xff]
    %v3419 = vsel %vm208, %v3408, 0
    %3421 = vmatprep.subr.mxu0 %v3412
    %3422 = vmatpush1.msra.mxu0 %v3411
    %3423 = vmatprep.subr.mxu0 %v3414
    %3424 = vmatpush1.msra.mxu0 %v3413
    %3425 = vmatprep.subr.mxu0 %v3416
    %3426 = vmatpush1.msra.mxu0 %v3415
    %3427 = vmatprep.subr.mxu0 %v3418
    %3428 = vmatpush1.msra.mxu0 %v3417
    %3429 = vmatprep.subr.mxu0 0.0
    %3430 = vmatpush1.msra.mxu0 0.0
    %3431 = vmatprep.subr.mxu0 0.0
    %3432 = vmatpush1.msra.mxu0 0.0
    %3433 = vmatprep.subr.mxu0 0.0
    %3434 = vmatpush1.msra.mxu0 0.0
    %3435 = vmatprep.subr.mxu0 0.0
    %3436 = vmatpush1.msra.mxu0 0.0
    %3437 = vmatprep.subr.mxu0 0.0
    %3438 = vmatpush1.msra.mxu0 0.0
    %3439 = vmatprep.subr.mxu0 0.0
    %3440 = vmatpush1.msra.mxu0 0.0
    %3441 = vmatprep.subr.mxu0 0.0
    %3442 = vmatpush1.msra.mxu0 0.0
    %3443 = vmatprep.subr.mxu0 0.0
    %3444 = vmatpush1.msra.mxu0 0.0
    %3445 = vmatprep.subr.mxu0 0.0
    %3446 = vmatpush1.msra.mxu0 0.0
    %3447 = vmatprep.subr.mxu0 0.0
    %3448 = vmatpush1.msra.mxu0 0.0
    %3449 = vmatprep.subr.mxu0 0.0
    %3450 = vmatpush1.msra.mxu0 0.0
    %3451 = vmatprep.subr.mxu0 0.0
    %3452 = vmatpush1.msra.mxu0 0.0
    %3453 = vmatprep.subr.mxu0 0.0
    %3454 = vmatpush1.msra.mxu0 0.0
    %3455 = vmatprep.subr.mxu0 0.0
    %3456 = vmatpush1.msra.mxu0 0.0
    %3457 = vmatprep.subr.mxu0 0.0
    %3458 = vmatpush1.msra.mxu0 0.0
    %3459 = vmatprep.subr.mxu0 0.0
    %3460 = vmatpush1.msra.mxu0 0.0
    %3461 = vmatprep.subr.mxu0 0.0
    %3462 = vmatpush1.msra.mxu0 0.0
    %3463 = vmatprep.subr.mxu0 0.0
    %3464 = vmatpush1.msra.mxu0 0.0
    %3465 = vmatprep.subr.mxu0 0.0
    %3466 = vmatpush1.msra.mxu0 0.0
    %3467 = vmatprep.subr.mxu0 0.0
    %3468 = vmatpush1.msra.mxu0 0.0
    %3469 = vmatprep.subr.mxu0 0.0
    %3470 = vmatpush1.msra.mxu0 0.0
    %3471 = vmatprep.subr.mxu0 0.0
    %3472 = vmatpush1.msra.mxu0 0.0
    %3473 = vmatprep.subr.mxu0 0.0
    %3474 = vmatpush1.msra.mxu0 0.0
    %3475 = vmatprep.subr.mxu0 0.0
    %3476 = vmatpush1.msra.mxu0 0.0
    %3477 = vmatprep.subr.mxu0 0.0
    %3478 = vmatpush1.msra.mxu0 0.0
    %3479 = vmatprep.subr.mxu0 0.0
    %3480 = vmatpush1.msra.mxu0 0.0
    %3481 = vmatprep.subr.mxu0 0.0
    %3482 = vmatpush1.msra.mxu0 0.0
    %3483 = vmatprep.subr.mxu0 0.0
    %3484 = vmatpush1.msra.mxu0 0.0
    %3485 = vmatprep.mubr.f32.mxu0 0.0
    %3486 = vmatmul.mubr.f32.gmra.mrb[0].mxu0 %v3419
    %v3487 = vpop.f32.mrb[0].mxu0
    %v3488 = vadd.f32 %v481, %v3487
    %v3489 = vpop.f32.mrb[0].mxu0
    %3490 = vdwg.mxu0
    %v3491 = vadd.f32 %v3404, %v3488
    %3492 = vst.msk [vmem:[#allocation4 + $0x38] sm:$0xff] %vm656, %v3491
    %v3493 = vmul.f32 %v3491, 1.442695
    %v3494 = vpow.pop %v3493
    %3496 = vrot.lane.b32.xlu0 %v3405, 32
    %v3497 = vpop.permute.xlu0 %3496
    %v3499 = vmul.f32 %v3494, %v3497
    %3501 = vrot.lane.b32.xlu0 %v3499, 96
    %v3502 = vpop.permute.xlu0 %3501
    %v3504 = vadd.f32 %v3491, %v3502
    %v3505 = vld [vmem:[#allocation6 + $0x38] sm:$0xff]
    %v3506 = vld [vmem:[#allocation6 + $0x98] sm:$0xff]
    %v3507 = vld [vmem:[#allocation6 + $0xf8] sm:$0xff]
    %v3508 = vld [vmem:[#allocation6 + $0x158] sm:$0xff]
    %v3510 = vsel %vm208, %v3504, 0
    %3512 = vmatprep.subr.mxu0 0.0
    %3513 = vmatpush1.msra.mxu0 %v3505
    %3514 = vmatprep.subr.mxu0 0.0
    %3515 = vmatpush1.msra.mxu0 %v3506
    %3516 = vmatprep.subr.mxu0 0.0
    %3517 = vmatpush1.msra.mxu0 %v3507
    %3518 = vmatprep.subr.mxu0 0.0
    %3519 = vmatpush1.msra.mxu0 %v3508
    %3520 = vmatprep.subr.mxu0 0.0
    %3521 = vmatpush1.msra.mxu0 0.0
    %3522 = vmatprep.subr.mxu0 0.0
    %3523 = vmatpush1.msra.mxu0 0.0
    %3524 = vmatprep.subr.mxu0 0.0
    %3525 = vmatpush1.msra.mxu0 0.0
    %3526 = vmatprep.subr.mxu0 0.0
    %3527 = vmatpush1.msra.mxu0 0.0
    %3528 = vmatprep.subr.mxu0 0.0
    %3529 = vmatpush1.msra.mxu0 0.0
    %3530 = vmatprep.subr.mxu0 0.0
    %3531 = vmatpush1.msra.mxu0 0.0
    %3532 = vmatprep.subr.mxu0 0.0
    %3533 = vmatpush1.msra.mxu0 0.0
    %3534 = vmatprep.subr.mxu0 0.0
    %3535 = vmatpush1.msra.mxu0 0.0
    %3536 = vmatprep.subr.mxu0 0.0
    %3537 = vmatpush1.msra.mxu0 0.0
    %3538 = vmatprep.subr.mxu0 0.0
    %3539 = vmatpush1.msra.mxu0 0.0
    %3540 = vmatprep.subr.mxu0 0.0
    %3541 = vmatpush1.msra.mxu0 0.0
    %3542 = vmatprep.subr.mxu0 0.0
    %3543 = vmatpush1.msra.mxu0 0.0
    %3544 = vmatprep.subr.mxu0 0.0
    %3545 = vmatpush1.msra.mxu0 0.0
    %3546 = vmatprep.subr.mxu0 0.0
    %3547 = vmatpush1.msra.mxu0 0.0
    %3548 = vmatprep.subr.mxu0 0.0
    %3549 = vmatpush1.msra.mxu0 0.0
    %3550 = vmatprep.subr.mxu0 0.0
    %3551 = vmatpush1.msra.mxu0 0.0
    %3552 = vmatprep.subr.mxu0 0.0
    %3553 = vmatpush1.msra.mxu0 0.0
    %3554 = vmatprep.subr.mxu0 0.0
    %3555 = vmatpush1.msra.mxu0 0.0
    %3556 = vmatprep.subr.mxu0 0.0
    %3557 = vmatpush1.msra.mxu0 0.0
    %3558 = vmatprep.subr.mxu0 0.0
    %3559 = vmatpush1.msra.mxu0 0.0
    %3560 = vmatprep.subr.mxu0 0.0
    %3561 = vmatpush1.msra.mxu0 0.0
    %3562 = vmatprep.subr.mxu0 0.0
    %3563 = vmatpush1.msra.mxu0 0.0
    %3564 = vmatprep.subr.mxu0 0.0
    %3565 = vmatpush1.msra.mxu0 0.0
    %3566 = vmatprep.subr.mxu0 0.0
    %3567 = vmatpush1.msra.mxu0 0.0
    %3568 = vmatprep.subr.mxu0 0.0
    %3569 = vmatpush1.msra.mxu0 0.0
    %3570 = vmatprep.subr.mxu0 0.0
    %3571 = vmatpush1.msra.mxu0 0.0
    %3572 = vmatprep.subr.mxu0 0.0
    %3573 = vmatpush1.msra.mxu0 0.0
    %3574 = vmatprep.subr.mxu0 0.0
    %3575 = vmatpush1.msra.mxu0 0.0
    %3576 = vmatprep.mubr.f32.mxu0 0.0
    %3577 = vmatmul.mubr.f32.gmra.mrb[0].mxu0 %v3510
    %v3578 = vpop.f32.mrb[0].mxu0
    %v3579 = vadd.f32 %v493, %v3578
    %v3580 = vpop.f32.mrb[0].mxu0
    %3581 = vdwg.mxu0
    %v3582 = vmax.f32 %v3579, 0.0
    %3583 = vst.msk [vmem:[#allocation5 + $0x38] sm:$0xff] %vm208, %v3582
    %v3584 = vld [vmem:[#allocation3] sm:$0xff]
    %v3585 = vld [vmem:[#allocation3 + $0x8] sm:$0xff]
    %v3586 = vld [vmem:[#allocation3 + $0x10] sm:$0xff]
    %v3587 = vld [vmem:[#allocation3 + $0x18] sm:$0xff]
    %v3588 = vld [vmem:[#allocation3 + $0x20] sm:$0xff]
    %v3589 = vld [vmem:[#allocation3 + $0x28] sm:$0xff]
    %v3590 = vld [vmem:[#allocation3 + $0x30] sm:$0xff]
    %v3591 = vld [vmem:[#allocation3 + $0x38] sm:$0xff]
    %v3592 = vld [vmem:[#allocation5] sm:$0xff]
    %v3593 = vld [vmem:[#allocation5 + $0x8] sm:$0xff]
    %v3594 = vld [vmem:[#allocation5 + $0x10] sm:$0xff]
    %v3595 = vld [vmem:[#allocation5 + $0x18] sm:$0xff]
    %v3596 = vld [vmem:[#allocation5 + $0x20] sm:$0xff]
    %v3597 = vld [vmem:[#allocation5 + $0x28] sm:$0xff]
    %v3598 = vld [vmem:[#allocation5 + $0x30] sm:$0xff]
    %v3599 = vld [vmem:[#allocation5 + $0x38] sm:$0xff]
    %v3600 = vld [vmem:[#allocation4] sm:$0xff]
    %v3601 = vld [vmem:[#allocation4 + $0x8] sm:$0xff]
    %v3602 = vld [vmem:[#allocation4 + $0x10] sm:$0xff]
    %v3603 = vld [vmem:[#allocation4 + $0x18] sm:$0xff]
    %v3604 = vld [vmem:[#allocation4 + $0x20] sm:$0xff]
    %v3605 = vld [vmem:[#allocation4 + $0x28] sm:$0xff]
    %v3606 = vld [vmem:[#allocation4 + $0x30] sm:$0xff]
    %v3607 = vld [vmem:[#allocation4 + $0x38] sm:$0xff]
    %v3608 = vld [vmem:[#allocation6 + $0x50] sm:$0xff]
    %v3609 = vld [vmem:[#allocation6 + $0xb0] sm:$0xff]
    %v3610 = vld [vmem:[#allocation6 + $0x110] sm:$0xff]
    %v3611 = vld [vmem:[#allocation6 + $0x170] sm:$0xff]
    %v3612 = vld [vmem:[#allocation6 + $0x1d0] ss:$0 sm:$0xff]
    %v3614 = vsel %vm208, %v3584, 0
    %v3617 = vsel %vm208, %v3585, 0
    %v3620 = vsel %vm208, %v3586, 0
    %v3623 = vsel %vm208, %v3587, 0
    %v3626 = vsel %vm208, %v3588, 0
    %v3629 = vsel %vm208, %v3589, 0
    %v3632 = vsel %vm208, %v3590, 0
    %v3635 = vsel %vm208, %v3591, 0
    %3637 = vmatprep.subr.mxu0 0.0
    %3638 = vmatpush1.msra.mxu0 %v3608
    %3639 = vmatprep.subr.mxu0 0.0
    %3640 = vmatpush1.msra.mxu0 %v3609
    %3641 = vmatprep.subr.mxu0 0.0
    %3642 = vmatpush1.msra.mxu0 %v3610
    %3643 = vmatprep.subr.mxu0 0.0
    %3644 = vmatpush1.msra.mxu0 %v3611
    %3645 = vmatprep.subr.mxu0 0.0
    %3646 = vmatpush1.msra.mxu0 0.0
    %3647 = vmatprep.subr.mxu0 0.0
    %3648 = vmatpush1.msra.mxu0 0.0
    %3649 = vmatprep.subr.mxu0 0.0
    %3650 = vmatpush1.msra.mxu0 0.0
    %3651 = vmatprep.subr.mxu0 0.0
    %3652 = vmatpush1.msra.mxu0 0.0
    %3653 = vmatprep.subr.mxu0 0.0
    %3654 = vmatpush1.msra.mxu0 0.0
    %3655 = vmatprep.subr.mxu0 0.0
    %3656 = vmatpush1.msra.mxu0 0.0
    %3657 = vmatprep.subr.mxu0 0.0
    %3658 = vmatpush1.msra.mxu0 0.0
    %3659 = vmatprep.subr.mxu0 0.0
    %3660 = vmatpush1.msra.mxu0 0.0
    %3661 = vmatprep.subr.mxu0 0.0
    %3662 = vmatpush1.msra.mxu0 0.0
    %3663 = vmatprep.subr.mxu0 0.0
    %3664 = vmatpush1.msra.mxu0 0.0
    %3665 = vmatprep.subr.mxu0 0.0
    %3666 = vmatpush1.msra.mxu0 0.0
    %3667 = vmatprep.subr.mxu0 0.0
    %3668 = vmatpush1.msra.mxu0 0.0
    %3669 = vmatprep.subr.mxu0 0.0
    %3670 = vmatpush1.msra.mxu0 0.0
    %3671 = vmatprep.subr.mxu0 0.0
    %3672 = vmatpush1.msra.mxu0 0.0
    %3673 = vmatprep.subr.mxu0 0.0
    %3674 = vmatpush1.msra.mxu0 0.0
    %3675 = vmatprep.subr.mxu0 0.0
    %3676 = vmatpush1.msra.mxu0 0.0
    %3677 = vmatprep.subr.mxu0 0.0
    %3678 = vmatpush1.msra.mxu0 0.0
    %3679 = vmatprep.subr.mxu0 0.0
    %3680 = vmatpush1.msra.mxu0 0.0
    %3681 = vmatprep.subr.mxu0 0.0
    %3682 = vmatpush1.msra.mxu0 0.0
    %3683 = vmatprep.subr.mxu0 0.0
    %3684 = vmatpush1.msra.mxu0 0.0
    %3685 = vmatprep.subr.mxu0 0.0
    %3686 = vmatpush1.msra.mxu0 0.0
    %3687 = vmatprep.subr.mxu0 0.0
    %3688 = vmatpush1.msra.mxu0 0.0
    %3689 = vmatprep.subr.mxu0 0.0
    %3690 = vmatpush1.msra.mxu0 0.0
    %3691 = vmatprep.subr.mxu0 0.0
    %3692 = vmatpush1.msra.mxu0 0.0
    %3693 = vmatprep.subr.mxu0 0.0
    %3694 = vmatpush1.msra.mxu0 0.0
    %3695 = vmatprep.subr.mxu0 0.0
    %3696 = vmatpush1.msra.mxu0 0.0
    %3697 = vmatprep.subr.mxu0 0.0
    %3698 = vmatpush1.msra.mxu0 0.0
    %3699 = vmatprep.subr.mxu0 0.0
    %3700 = vmatpush1.msra.mxu0 0.0
    %3701 = vmatprep.mubr.f32.mxu0 0.0
    %3702 = vmatmul.mubr.f32.gmra.mrb[0].mxu0 %v3614
    %v3703 = vpop.f32.mrb[0].mxu0
    %v3704 = vadd.f32 %v3612, %v3703
    %v3705 = vpop.f32.mrb[0].mxu0
    %3706 = vmatprep.mubr.f32.mxu0 0.0
    %3707 = vmatmul.mubr.f32.gmra.mrb[0].mxu0 %v3617
    %v3708 = vpop.f32.mrb[0].mxu0
    %v3709 = vadd.f32 %v3612, %v3708
    %v3710 = vpop.f32.mrb[0].mxu0
    %3711 = vmatprep.mubr.f32.mxu0 0.0
    %3712 = vmatmul.mubr.f32.gmra.mrb[0].mxu0 %v3620
    %v3713 = vpop.f32.mrb[0].mxu0
    %v3714 = vadd.f32 %v3612, %v3713
    %v3715 = vpop.f32.mrb[0].mxu0
    %3716 = vmatprep.mubr.f32.mxu0 0.0
    %3717 = vmatmul.mubr.f32.gmra.mrb[0].mxu0 %v3623
    %v3718 = vpop.f32.mrb[0].mxu0
    %v3719 = vadd.f32 %v3612, %v3718
    %v3720 = vpop.f32.mrb[0].mxu0
    %3721 = vmatprep.mubr.f32.mxu0 0.0
    %3722 = vmatmul.mubr.f32.gmra.mrb[0].mxu0 %v3626
    %v3723 = vpop.f32.mrb[0].mxu0
    %v3724 = vadd.f32 %v3612, %v3723
    %v3725 = vpop.f32.mrb[0].mxu0
    %3726 = vmatprep.mubr.f32.mxu0 0.0
    %3727 = vmatmul.mubr.f32.gmra.mrb[0].mxu0 %v3629
    %v3728 = vpop.f32.mrb[0].mxu0
    %v3729 = vadd.f32 %v3612, %v3728
    %v3730 = vpop.f32.mrb[0].mxu0
    %3731 = vmatprep.mubr.f32.mxu0 0.0
    %3732 = vmatmul.mubr.f32.gmra.mrb[0].mxu0 %v3632
    %v3733 = vpop.f32.mrb[0].mxu0
    %v3734 = vadd.f32 %v3612, %v3733
    %v3735 = vpop.f32.mrb[0].mxu0
    %3736 = vmatprep.mubr.f32.mxu0 0.0
    %3737 = vmatmul.mubr.f32.gmra.mrb[0].mxu0 %v3635
    %v3738 = vpop.f32.mrb[0].mxu0
    %v3739 = vadd.f32 %v3612, %v3738
    %v3740 = vpop.f32.mrb[0].mxu0
    %3741 = vdwg.mxu0
    %v3742 = vld [vmem:[#allocation6 + $0x58] sm:$0xff]
    %v3743 = vld [vmem:[#allocation6 + $0xb8] sm:$0xff]
    %v3744 = vld [vmem:[#allocation6 + $0x118] sm:$0xff]
    %v3745 = vld [vmem:[#allocation6 + $0x178] sm:$0xff]
    %v3747 = vsel %vm208, %v3592, 0
    %v3750 = vsel %vm208, %v3593, 0
    %v3753 = vsel %vm208, %v3594, 0
    %v3756 = vsel %vm208, %v3595, 0
    %v3759 = vsel %vm208, %v3596, 0
    %v3762 = vsel %vm208, %v3597, 0
    %v3765 = vsel %vm208, %v3598, 0
    %v3768 = vsel %vm208, %v3599, 0
    %3770 = vmatprep.subr.mxu0 0.0
    %3771 = vmatpush1.msra.mxu0 %v3742
    %3772 = vmatprep.subr.mxu0 0.0
    %3773 = vmatpush1.msra.mxu0 %v3743
    %3774 = vmatprep.subr.mxu0 0.0
    %3775 = vmatpush1.msra.mxu0 %v3744
    %3776 = vmatprep.subr.mxu0 0.0
    %3777 = vmatpush1.msra.mxu0 %v3745
    %3778 = vmatprep.subr.mxu0 0.0
    %3779 = vmatpush1.msra.mxu0 0.0
    %3780 = vmatprep.subr.mxu0 0.0
    %3781 = vmatpush1.msra.mxu0 0.0
    %3782 = vmatprep.subr.mxu0 0.0
    %3783 = vmatpush1.msra.mxu0 0.0
    %3784 = vmatprep.subr.mxu0 0.0
    %3785 = vmatpush1.msra.mxu0 0.0
    %3786 = vmatprep.subr.mxu0 0.0
    %3787 = vmatpush1.msra.mxu0 0.0
    %3788 = vmatprep.subr.mxu0 0.0
    %3789 = vmatpush1.msra.mxu0 0.0
    %3790 = vmatprep.subr.mxu0 0.0
    %3791 = vmatpush1.msra.mxu0 0.0
    %3792 = vmatprep.subr.mxu0 0.0
    %3793 = vmatpush1.msra.mxu0 0.0
    %3794 = vmatprep.subr.mxu0 0.0
    %3795 = vmatpush1.msra.mxu0 0.0
    %3796 = vmatprep.subr.mxu0 0.0
    %3797 = vmatpush1.msra.mxu0 0.0
    %3798 = vmatprep.subr.mxu0 0.0
    %3799 = vmatpush1.msra.mxu0 0.0
    %3800 = vmatprep.subr.mxu0 0.0
    %3801 = vmatpush1.msra.mxu0 0.0
    %3802 = vmatprep.subr.mxu0 0.0
    %3803 = vmatpush1.msra.mxu0 0.0
    %3804 = vmatprep.subr.mxu0 0.0
    %3805 = vmatpush1.msra.mxu0 0.0
    %3806 = vmatprep.subr.mxu0 0.0
    %3807 = vmatpush1.msra.mxu0 0.0
    %3808 = vmatprep.subr.mxu0 0.0
    %3809 = vmatpush1.msra.mxu0 0.0
    %3810 = vmatprep.subr.mxu0 0.0
    %3811 = vmatpush1.msra.mxu0 0.0
    %3812 = vmatprep.subr.mxu0 0.0
    %3813 = vmatpush1.msra.mxu0 0.0
    %3814 = vmatprep.subr.mxu0 0.0
    %3815 = vmatpush1.msra.mxu0 0.0
    %3816 = vmatprep.subr.mxu0 0.0
    %3817 = vmatpush1.msra.mxu0 0.0
    %3818 = vmatprep.subr.mxu0 0.0
    %3819 = vmatpush1.msra.mxu0 0.0
    %3820 = vmatprep.subr.mxu0 0.0
    %3821 = vmatpush1.msra.mxu0 0.0
    %3822 = vmatprep.subr.mxu0 0.0
    %3823 = vmatpush1.msra.mxu0 0.0
    %3824 = vmatprep.subr.mxu0 0.0
    %3825 = vmatpush1.msra.mxu0 0.0
    %3826 = vmatprep.subr.mxu0 0.0
    %3827 = vmatpush1.msra.mxu0 0.0
    %3828 = vmatprep.subr.mxu0 0.0
    %3829 = vmatpush1.msra.mxu0 0.0
    %3830 = vmatprep.subr.mxu0 0.0
    %3831 = vmatpush1.msra.mxu0 0.0
    %3832 = vmatprep.subr.mxu0 0.0
    %3833 = vmatpush1.msra.mxu0 0.0
    %3834 = vmatprep.mubr.f32.mxu0 0.0
    %3835 = vmatmul.mubr.f32.gmra.mrb[0].mxu0 %v3747
    %v3836 = vpop.f32.mrb[0].mxu0
    %v3837 = vadd.f32 0.0, %v3836
    %v3838 = vpop.f32.mrb[0].mxu0
    %3839 = vmatprep.mubr.f32.mxu0 0.0
    %3840 = vmatmul.mubr.f32.gmra.mrb[0].mxu0 %v3750
    %v3841 = vpop.f32.mrb[0].mxu0
    %v3842 = vadd.f32 0.0, %v3841
    %v3843 = vpop.f32.mrb[0].mxu0
    %3844 = vmatprep.mubr.f32.mxu0 0.0
    %3845 = vmatmul.mubr.f32.gmra.mrb[0].mxu0 %v3753
    %v3846 = vpop.f32.mrb[0].mxu0
    %v3847 = vadd.f32 0.0, %v3846
    %v3848 = vpop.f32.mrb[0].mxu0
    %3849 = vmatprep.mubr.f32.mxu0 0.0
    %3850 = vmatmul.mubr.f32.gmra.mrb[0].mxu0 %v3756
    %v3851 = vpop.f32.mrb[0].mxu0
    %v3852 = vadd.f32 0.0, %v3851
    %v3853 = vpop.f32.mrb[0].mxu0
    %3854 = vmatprep.mubr.f32.mxu0 0.0
    %3855 = vmatmul.mubr.f32.gmra.mrb[0].mxu0 %v3759
    %v3856 = vpop.f32.mrb[0].mxu0
    %v3857 = vadd.f32 0.0, %v3856
    %v3858 = vpop.f32.mrb[0].mxu0
    %3859 = vmatprep.mubr.f32.mxu0 0.0
    %3860 = vmatmul.mubr.f32.gmra.mrb[0].mxu0 %v3762
    %v3861 = vpop.f32.mrb[0].mxu0
    %v3862 = vadd.f32 0.0, %v3861
    %v3863 = vpop.f32.mrb[0].mxu0
    %3864 = vmatprep.mubr.f32.mxu0 0.0
    %3865 = vmatmul.mubr.f32.gmra.mrb[0].mxu0 %v3765
    %v3866 = vpop.f32.mrb[0].mxu0
    %v3867 = vadd.f32 0.0, %v3866
    %v3868 = vpop.f32.mrb[0].mxu0
    %3869 = vmatprep.mubr.f32.mxu0 0.0
    %3870 = vmatmul.mubr.f32.gmra.mrb[0].mxu0 %v3768
    %v3871 = vpop.f32.mrb[0].mxu0
    %v3872 = vadd.f32 0.0, %v3871
    %v3873 = vpop.f32.mrb[0].mxu0
    %3874 = vdwg.mxu0
    %3883 = vrot.lane.b32.xlu0 %v3837, 64
    %v3884 = vpop.permute.xlu0 %3883
    %3885 = vrot.lane.b32.xlu0 %v3842, 64
    %v3886 = vpop.permute.xlu0 %3885
    %3887 = vrot.lane.b32.xlu0 %v3847, 64
    %v3888 = vpop.permute.xlu0 %3887
    %3889 = vrot.lane.b32.xlu0 %v3852, 64
    %v3890 = vpop.permute.xlu0 %3889
    %3891 = vrot.lane.b32.xlu0 %v3857, 64
    %v3892 = vpop.permute.xlu0 %3891
    %3893 = vrot.lane.b32.xlu0 %v3862, 64
    %v3894 = vpop.permute.xlu0 %3893
    %3895 = vrot.lane.b32.xlu0 %v3867, 64
    %v3896 = vpop.permute.xlu0 %3895
    %3897 = vrot.lane.b32.xlu0 %v3872, 64
    %v3898 = vpop.permute.xlu0 %3897
    %v3907 = vadd.f32 %v3704, %v3884
    %v3908 = vadd.f32 %v3709, %v3886
    %v3909 = vadd.f32 %v3714, %v3888
    %v3910 = vadd.f32 %v3719, %v3890
    %v3911 = vadd.f32 %v3724, %v3892
    %v3912 = vadd.f32 %v3729, %v3894
    %v3913 = vadd.f32 %v3734, %v3896
    %v3914 = vadd.f32 %v3739, %v3898
    %v3915 = vlaneseq
    %v3916 = vshrl.u32 %v3915, 7
    %vm3917 = vcmp.lt.s32.totalorder %v3916, 2
    %v3918 = vsel %vm3917, 1, 0
    %v3919 = vcvt.s32.f32 %v3918
    %v3920 = vsub.f32 %v3600, %v3704
    %v3921 = vsub.f32 %v3601, %v3709
    %v3922 = vsub.f32 %v3602, %v3714
    %v3923 = vsub.f32 %v3603, %v3719
    %v3924 = vsub.f32 %v3604, %v3724
    %v3925 = vsub.f32 %v3605, %v3729
    %v3926 = vsub.f32 %v3606, %v3734
    %v3927 = vsub.f32 %v3607, %v3739
    %v3928 = vmul.f32 %v3600, 2.0
    %v3929 = vmul.f32 %v3601, 2.0
    %v3930 = vmul.f32 %v3602, 2.0
    %v3931 = vmul.f32 %v3603, 2.0
    %v3932 = vmul.f32 %v3604, 2.0
    %v3933 = vmul.f32 %v3605, 2.0
    %v3934 = vmul.f32 %v3606, 2.0
    %v3935 = vmul.f32 %v3607, 2.0
    %v3936 = vmul.f32 %v3928, 1.442695
    %v3937 = vpow.pop %v3936
    %v3938 = vmul.f32 %v3929, 1.442695
    %v3939 = vpow.pop %v3938
    %v3940 = vmul.f32 %v3930, 1.442695
    %v3941 = vpow.pop %v3940
    %v3942 = vmul.f32 %v3931, 1.442695
    %v3943 = vpow.pop %v3942
    %v3944 = vmul.f32 %v3932, 1.442695
    %v3945 = vpow.pop %v3944
    %v3946 = vmul.f32 %v3933, 1.442695
    %v3947 = vpow.pop %v3946
    %v3948 = vmul.f32 %v3934, 1.442695
    %v3949 = vpow.pop %v3948
    %v3950 = vmul.f32 %v3935, 1.442695
    %v3951 = vpow.pop %v3950
    %v3952 = vmul.f32 %v3704, -2.0
    %v3953 = vmul.f32 %v3709, -2.0
    %v3954 = vmul.f32 %v3714, -2.0
    %v3955 = vmul.f32 %v3719, -2.0
    %v3956 = vmul.f32 %v3724, -2.0
    %v3957 = vmul.f32 %v3729, -2.0
    %v3958 = vmul.f32 %v3734, -2.0
    %v3959 = vmul.f32 %v3739, -2.0
    %v3960 = vmul.f32 %v3952, 1.442695
    %v3961 = vpow.pop %v3960
    %v3962 = vmul.f32 %v3953, 1.442695
    %v3963 = vpow.pop %v3962
    %v3964 = vmul.f32 %v3954, 1.442695
    %v3965 = vpow.pop %v3964
    %v3966 = vmul.f32 %v3955, 1.442695
    %v3967 = vpow.pop %v3966
    %v3968 = vmul.f32 %v3956, 1.442695
    %v3969 = vpow.pop %v3968
    %v3970 = vmul.f32 %v3957, 1.442695
    %v3971 = vpow.pop %v3970
    %v3972 = vmul.f32 %v3958, 1.442695
    %v3973 = vpow.pop %v3972
    %v3974 = vmul.f32 %v3959, 1.442695
    %v3975 = vpow.pop %v3974
    %v3976 = vmul.f32 %v3704, 2.0
    %v3977 = vmul.f32 %v3709, 2.0
    %v3978 = vmul.f32 %v3714, 2.0
    %v3979 = vmul.f32 %v3719, 2.0
    %v3980 = vmul.f32 %v3724, 2.0
    %v3981 = vmul.f32 %v3729, 2.0
    %v3982 = vmul.f32 %v3734, 2.0
    %v3983 = vmul.f32 %v3739, 2.0
    %v3984 = vsub.f32 %v3976, %v3928
    %v3985 = vsub.f32 %v3977, %v3929
    %v3986 = vsub.f32 %v3978, %v3930
    %v3987 = vsub.f32 %v3979, %v3931
    %v3988 = vsub.f32 %v3980, %v3932
    %v3989 = vsub.f32 %v3981, %v3933
    %v3990 = vsub.f32 %v3982, %v3934
    %v3991 = vsub.f32 %v3983, %v3935
    %v3992 = vmul.f32 %v3920, %v3920
    %v3993 = vmul.f32 %v3921, %v3921
    %v3994 = vmul.f32 %v3922, %v3922
    %v3995 = vmul.f32 %v3923, %v3923
    %v3996 = vmul.f32 %v3924, %v3924
    %v3997 = vmul.f32 %v3925, %v3925
    %v3998 = vmul.f32 %v3926, %v3926
    %v3999 = vmul.f32 %v3927, %v3927
    %4008 = vrot.lane.b32.xlu0 %v3992, 32
    %v4009 = vpop.permute.xlu0 %4008
    %4010 = vrot.lane.b32.xlu0 %v3993, 32
    %v4011 = vpop.permute.xlu0 %4010
    %4012 = vrot.lane.b32.xlu0 %v3994, 32
    %v4013 = vpop.permute.xlu0 %4012
    %4014 = vrot.lane.b32.xlu0 %v3995, 32
    %v4015 = vpop.permute.xlu0 %4014
    %4016 = vrot.lane.b32.xlu0 %v3996, 32
    %v4017 = vpop.permute.xlu0 %4016
    %4018 = vrot.lane.b32.xlu0 %v3997, 32
    %v4019 = vpop.permute.xlu0 %4018
    %4020 = vrot.lane.b32.xlu0 %v3998, 32
    %v4021 = vpop.permute.xlu0 %4020
    %4022 = vrot.lane.b32.xlu0 %v3999, 32
    %v4023 = vpop.permute.xlu0 %4022
    %v4032 = vadd.f32 %v3937, %v4009
    %v4033 = vadd.f32 %v3939, %v4011
    %v4034 = vadd.f32 %v3941, %v4013
    %v4035 = vadd.f32 %v3943, %v4015
    %v4036 = vadd.f32 %v3945, %v4017
    %v4037 = vadd.f32 %v3947, %v4019
    %v4038 = vadd.f32 %v3949, %v4021
    %v4039 = vadd.f32 %v3951, %v4023
    %v4040 = vmul.f32 %v4032, %v3961
    %v4041 = vmul.f32 %v4033, %v3963
    %v4042 = vmul.f32 %v4034, %v3965
    %v4043 = vmul.f32 %v4035, %v3967
    %v4044 = vmul.f32 %v4036, %v3969
    %v4045 = vmul.f32 %v4037, %v3971
    %v4046 = vmul.f32 %v4038, %v3973
    %v4047 = vmul.f32 %v4039, %v3975
    %v4048 = vadd.f32 %v3984, %v4040
    %v4049 = vadd.f32 %v3985, %v4041
    %v4050 = vadd.f32 %v3986, %v4042
    %v4051 = vadd.f32 %v3987, %v4043
    %v4052 = vadd.f32 %v3988, %v4044
    %v4053 = vadd.f32 %v3989, %v4045
    %v4054 = vadd.f32 %v3990, %v4046
    %v4055 = vadd.f32 %v3991, %v4047
    %4057 = vset.pattern.permute.xlu0 0
    %4058 = vperm.xlu0 %4057, %v3919
    %v4059 = vpop.permute.xlu0 %4058
    %v4061 = vmul.f32 %v4048, %v4059
    %v4062 = vmul.f32 %v4049, %v4059
    %v4063 = vmul.f32 %v4050, %v4059
    %v4064 = vmul.f32 %v4051, %v4059
    %v4065 = vmul.f32 %v4052, %v4059
    %v4066 = vmul.f32 %v4053, %v4059
    %v4067 = vmul.f32 %v4054, %v4059
    %v4068 = vmul.f32 %v4055, %v4059
    %v4069 = vld [vmem:[%s0] sm:$0xff]
    %v4070 = vld [vmem:[%s0 + $0x8] sm:$0xff]
    %v4071 = vld [vmem:[%s0 + $0x10] sm:$0xff]
    %v4072 = vld [vmem:[%s0 + $0x18] sm:$0xff]
    %v4073 = vld [vmem:[%s0 + $0x20] sm:$0xff]
    %v4074 = vld [vmem:[%s0 + $0x28] sm:$0xff]
    %v4075 = vld [vmem:[%s0 + $0x30] sm:$0xff]
    %v4076 = vld [vmem:[%s0 + $0x38] sm:$0xff]
    %v4077 = vmax.f32 %v3907, 0.0
    %v4078 = vmax.f32 %v3908, 0.0
    %v4079 = vmax.f32 %v3909, 0.0
    %v4080 = vmax.f32 %v3910, 0.0
    %v4081 = vmax.f32 %v3911, 0.0
    %v4082 = vmax.f32 %v3912, 0.0
    %v4083 = vmax.f32 %v3913, 0.0
    %v4084 = vmax.f32 %v3914, 0.0
    %v4085 = vand.u32 2147483647, %v3907
    %v4086 = vand.u32 2147483647, %v3908
    %v4087 = vand.u32 2147483647, %v3909
    %v4088 = vand.u32 2147483647, %v3910
    %v4089 = vand.u32 2147483647, %v3911
    %v4090 = vand.u32 2147483647, %v3912
    %v4091 = vand.u32 2147483647, %v3913
    %v4092 = vand.u32 2147483647, %v3914
    %v4093 = vsub.f32 0.0, %v4085
    %v4094 = vsub.f32 0.0, %v4086
    %v4095 = vsub.f32 0.0, %v4087
    %v4096 = vsub.f32 0.0, %v4088
    %v4097 = vsub.f32 0.0, %v4089
    %v4098 = vsub.f32 0.0, %v4090
    %v4099 = vsub.f32 0.0, %v4091
    %v4100 = vsub.f32 0.0, %v4092
    %v4101 = vmul.f32 %v4093, 1.442695
    %v4102 = vpow.pop %v4101
    %v4103 = vmul.f32 %v4094, 1.442695
    %v4104 = vpow.pop %v4103
    %v4105 = vmul.f32 %v4095, 1.442695
    %v4106 = vpow.pop %v4105
    %v4107 = vmul.f32 %v4096, 1.442695
    %v4108 = vpow.pop %v4107
    %v4109 = vmul.f32 %v4097, 1.442695
    %v4110 = vpow.pop %v4109
    %v4111 = vmul.f32 %v4098, 1.442695
    %v4112 = vpow.pop %v4111
    %v4113 = vmul.f32 %v4099, 1.442695
    %v4114 = vpow.pop %v4113
    %v4115 = vmul.f32 %v4100, 1.442695
    %v4116 = vpow.pop %v4115
    %v4117 = vadd.f32 %v4102, 1.0
    %v4118 = vadd.f32 %v4104, 1.0
    %v4119 = vadd.f32 %v4106, 1.0
    %v4120 = vadd.f32 %v4108, 1.0
    %v4121 = vadd.f32 %v4110, 1.0
    %v4122 = vadd.f32 %v4112, 1.0
    %v4123 = vadd.f32 %v4114, 1.0
    %v4124 = vadd.f32 %v4116, 1.0
    %v4125 = vlog2.pop %v4117
    %v4126 = vmul.f32 %v4125, 0.6931472
    %v4127 = vlog2.pop %v4118
    %v4128 = vmul.f32 %v4127, 0.6931472
    %v4129 = vlog2.pop %v4119
    %v4130 = vmul.f32 %v4129, 0.6931472
    %v4131 = vlog2.pop %v4120
    %v4132 = vmul.f32 %v4131, 0.6931472
    %v4133 = vlog2.pop %v4121
    %v4134 = vmul.f32 %v4133, 0.6931472
    %v4135 = vlog2.pop %v4122
    %v4136 = vmul.f32 %v4135, 0.6931472
    %v4137 = vlog2.pop %v4123
    %v4138 = vmul.f32 %v4137, 0.6931472
    %v4139 = vlog2.pop %v4124
    %v4140 = vmul.f32 %v4139, 0.6931472
    %v4141 = vadd.f32 %v4077, %v4126
    %v4142 = vadd.f32 %v4078, %v4128
    %v4143 = vadd.f32 %v4079, %v4130
    %v4144 = vadd.f32 %v4080, %v4132
    %v4145 = vadd.f32 %v4081, %v4134
    %v4146 = vadd.f32 %v4082, %v4136
    %v4147 = vadd.f32 %v4083, %v4138
    %v4148 = vadd.f32 %v4084, %v4140
    %v4149 = vsub.f32 %v3907, %v4141
    %v4150 = vsub.f32 %v3908, %v4142
    %v4151 = vsub.f32 %v3909, %v4143
    %v4152 = vsub.f32 %v3910, %v4144
    %v4153 = vsub.f32 %v3911, %v4145
    %v4154 = vsub.f32 %v3912, %v4146
    %v4155 = vsub.f32 %v3913, %v4147
    %v4156 = vsub.f32 %v3914, %v4148
    %v4157 = vmax.f32 %v4149, -100.0
    %v4158 = vmax.f32 %v4150, -100.0
    %v4159 = vmax.f32 %v4151, -100.0
    %v4160 = vmax.f32 %v4152, -100.0
    %v4161 = vmax.f32 %v4153, -100.0
    %v4162 = vmax.f32 %v4154, -100.0
    %v4163 = vmax.f32 %v4155, -100.0
    %v4164 = vmax.f32 %v4156, -100.0
    %v4165 = vsub.f32 0.0, %v4141
    %v4166 = vsub.f32 0.0, %v4142
    %v4167 = vsub.f32 0.0, %v4143
    %v4168 = vsub.f32 0.0, %v4144
    %v4169 = vsub.f32 0.0, %v4145
    %v4170 = vsub.f32 0.0, %v4146
    %v4171 = vsub.f32 0.0, %v4147
    %v4172 = vsub.f32 0.0, %v4148
    %v4173 = vmax.f32 %v4165, -100.0
    %v4174 = vmax.f32 %v4166, -100.0
    %v4175 = vmax.f32 %v4167, -100.0
    %v4176 = vmax.f32 %v4168, -100.0
    %v4177 = vmax.f32 %v4169, -100.0
    %v4178 = vmax.f32 %v4170, -100.0
    %v4179 = vmax.f32 %v4171, -100.0
    %v4180 = vmax.f32 %v4172, -100.0
    %4189 = vrot.lane.b32.xlu0 %v4157, 64
    %v4190 = vpop.permute.xlu0 %4189
    %4191 = vrot.lane.b32.xlu0 %v4158, 64
    %v4192 = vpop.permute.xlu0 %4191
    %4193 = vrot.lane.b32.xlu0 %v4159, 64
    %v4194 = vpop.permute.xlu0 %4193
    %4195 = vrot.lane.b32.xlu0 %v4160, 64
    %v4196 = vpop.permute.xlu0 %4195
    %4197 = vrot.lane.b32.xlu0 %v4161, 64
    %v4198 = vpop.permute.xlu0 %4197
    %4199 = vrot.lane.b32.xlu0 %v4162, 64
    %v4200 = vpop.permute.xlu0 %4199
    %4201 = vrot.lane.b32.xlu0 %v4163, 64
    %v4202 = vpop.permute.xlu0 %4201
    %4203 = vrot.lane.b32.xlu0 %v4164, 64
    %v4204 = vpop.permute.xlu0 %4203
    %v4213 = vmul.f32 %v4069, %v4190
    %v4214 = vmul.f32 %v4070, %v4192
    %v4215 = vmul.f32 %v4071, %v4194
    %v4216 = vmul.f32 %v4072, %v4196
    %v4217 = vmul.f32 %v4073, %v4198
    %v4218 = vmul.f32 %v4074, %v4200
    %v4219 = vmul.f32 %v4075, %v4202
    %v4220 = vmul.f32 %v4076, %v4204
    %v4221 = vsub.f32 1.0, %v4069
    %v4222 = vsub.f32 1.0, %v4070
    %v4223 = vsub.f32 1.0, %v4071
    %v4224 = vsub.f32 1.0, %v4072
    %v4225 = vsub.f32 1.0, %v4073
    %v4226 = vsub.f32 1.0, %v4074
    %v4227 = vsub.f32 1.0, %v4075
    %v4228 = vsub.f32 1.0, %v4076
    %4237 = vrot.lane.b32.xlu0 %v4173, 64
    %v4238 = vpop.permute.xlu0 %4237
    %4239 = vrot.lane.b32.xlu0 %v4174, 64
    %v4240 = vpop.permute.xlu0 %4239
    %4241 = vrot.lane.b32.xlu0 %v4175, 64
    %v4242 = vpop.permute.xlu0 %4241
    %4243 = vrot.lane.b32.xlu0 %v4176, 64
    %v4244 = vpop.permute.xlu0 %4243
    %4245 = vrot.lane.b32.xlu0 %v4177, 64
    %v4246 = vpop.permute.xlu0 %4245
    %4247 = vrot.lane.b32.xlu0 %v4178, 64
    %v4248 = vpop.permute.xlu0 %4247
    %4249 = vrot.lane.b32.xlu0 %v4179, 64
    %v4250 = vpop.permute.xlu0 %4249
    %4251 = vrot.lane.b32.xlu0 %v4180, 64
    %v4252 = vpop.permute.xlu0 %4251
    %v4261 = vmul.f32 %v4221, %v4238
    %v4262 = vmul.f32 %v4222, %v4240
    %v4263 = vmul.f32 %v4223, %v4242
    %v4264 = vmul.f32 %v4224, %v4244
    %v4265 = vmul.f32 %v4225, %v4246
    %v4266 = vmul.f32 %v4226, %v4248
    %v4267 = vmul.f32 %v4227, %v4250
    %v4268 = vmul.f32 %v4228, %v4252
    %v4269 = vadd.f32 %v4213, %v4261
    %v4270 = vadd.f32 %v4214, %v4262
    %v4271 = vadd.f32 %v4215, %v4263
    %v4272 = vadd.f32 %v4216, %v4264
    %v4273 = vadd.f32 %v4217, %v4265
    %v4274 = vadd.f32 %v4218, %v4266
    %v4275 = vadd.f32 %v4219, %v4267
    %v4276 = vadd.f32 %v4220, %v4268
    %v4277 = vsub.f32 0.0, %v4269
    %v4278 = vsub.f32 0.0, %v4270
    %v4279 = vsub.f32 0.0, %v4271
    %v4280 = vsub.f32 0.0, %v4272
    %v4281 = vsub.f32 0.0, %v4273
    %v4282 = vsub.f32 0.0, %v4274
    %v4283 = vsub.f32 0.0, %v4275
    %v4284 = vsub.f32 0.0, %v4276
    %v4285 = vmul.f32 %v4277, %v4059
    %v4286 = vmul.f32 %v4278, %v4059
    %v4287 = vmul.f32 %v4279, %v4059
    %v4288 = vmul.f32 %v4280, %v4059
    %v4289 = vmul.f32 %v4281, %v4059
    %v4290 = vmul.f32 %v4282, %v4059
    %v4291 = vmul.f32 %v4283, %v4059
    %v4292 = vmul.f32 %v4284, %v4059
    %4301 = vrot.lane.b32.xlu0 %v4061, 96
    %v4302 = vpop.permute.xlu0 %4301
    %4303 = vrot.lane.b32.xlu0 %v4062, 96
    %v4304 = vpop.permute.xlu0 %4303
    %4305 = vrot.lane.b32.xlu0 %v4063, 96
    %v4306 = vpop.permute.xlu0 %4305
    %4307 = vrot.lane.b32.xlu0 %v4064, 96
    %v4308 = vpop.permute.xlu0 %4307
    %4309 = vrot.lane.b32.xlu0 %v4065, 96
    %v4310 = vpop.permute.xlu0 %4309
    %4311 = vrot.lane.b32.xlu0 %v4066, 96
    %v4312 = vpop.permute.xlu0 %4311
    %4313 = vrot.lane.b32.xlu0 %v4067, 96
    %v4314 = vpop.permute.xlu0 %4313
    %4315 = vrot.lane.b32.xlu0 %v4068, 96
    %v4316 = vpop.permute.xlu0 %4315
    %v4325 = vsel %vm208, %v4302, 0.0
    %4326 = vadd.xlane.f32.xlu0 %v4325
    %v4327 = vpop.xlane.xlu0 %4326
    %v4328 = vsel %vm208, %v4304, 0.0
    %4329 = vadd.xlane.f32.xlu0 %v4328
    %v4330 = vpop.xlane.xlu0 %4329
    %v4331 = vsel %vm208, %v4306, 0.0
    %4332 = vadd.xlane.f32.xlu0 %v4331
    %v4333 = vpop.xlane.xlu0 %4332
    %v4334 = vsel %vm208, %v4308, 0.0
    %4335 = vadd.xlane.f32.xlu0 %v4334
    %v4336 = vpop.xlane.xlu0 %4335
    %v4337 = vsel %vm208, %v4310, 0.0
    %4338 = vadd.xlane.f32.xlu0 %v4337
    %v4339 = vpop.xlane.xlu0 %4338
    %v4340 = vsel %vm208, %v4312, 0.0
    %4341 = vadd.xlane.f32.xlu0 %v4340
    %v4342 = vpop.xlane.xlu0 %4341
    %v4343 = vsel %vm208, %v4314, 0.0
    %4344 = vadd.xlane.f32.xlu0 %v4343
    %v4345 = vpop.xlane.xlu0 %4344
    %v4346 = vsel %vm208, %v4316, 0.0
    %4347 = vadd.xlane.f32.xlu0 %v4346
    %v4348 = vpop.xlane.xlu0 %4347
    %v4349 = vadd.f32 %v4327, %v4330
    %v4350 = vadd.f32 %v4349, %v4333
    %v4351 = vadd.f32 %v4350, %v4336
    %v4352 = vadd.f32 %v4351, %v4339
    %v4353 = vadd.f32 %v4352, %v4342
    %v4354 = vadd.f32 %v4353, %v4345
    %v4355 = vadd.f32 %v4354, %v4348
    %v4356 = vrot.slane %v4355, 4
    %v4357 = vadd.f32 %v4355, %v4356
    %v4358 = vrot.slane %v4357, 2
    %v4359 = vadd.f32 %v4357, %v4358
    %v4360 = vrot.slane %v4359, 1
    %v4361 = vadd.f32 %v4359, %v4360
    %v4362 = vsel %vm40, %v4285, 0.0
    %4363 = vadd.xlane.f32.xlu0 %v4362
    %v4364 = vpop.xlane.xlu0 %4363
    %v4365 = vsel %vm40, %v4286, 0.0
    %4366 = vadd.xlane.f32.xlu0 %v4365
    %v4367 = vpop.xlane.xlu0 %4366
    %v4368 = vsel %vm40, %v4287, 0.0
    %4369 = vadd.xlane.f32.xlu0 %v4368
    %v4370 = vpop.xlane.xlu0 %4369
    %v4371 = vsel %vm40, %v4288, 0.0
    %4372 = vadd.xlane.f32.xlu0 %v4371
    %v4373 = vpop.xlane.xlu0 %4372
    %v4374 = vsel %vm40, %v4289, 0.0
    %4375 = vadd.xlane.f32.xlu0 %v4374
    %v4376 = vpop.xlane.xlu0 %4375
    %v4377 = vsel %vm40, %v4290, 0.0
    %4378 = vadd.xlane.f32.xlu0 %v4377
    %v4379 = vpop.xlane.xlu0 %4378
    %v4380 = vsel %vm40, %v4291, 0.0
    %4381 = vadd.xlane.f32.xlu0 %v4380
    %v4382 = vpop.xlane.xlu0 %4381
    %v4383 = vsel %vm40, %v4292, 0.0
    %4384 = vadd.xlane.f32.xlu0 %v4383
    %v4385 = vpop.xlane.xlu0 %4384
    %v4386 = vadd.f32 %v4364, %v4367
    %v4387 = vadd.f32 %v4386, %v4370
    %v4388 = vadd.f32 %v4387, %v4373
    %v4389 = vadd.f32 %v4388, %v4376
    %v4390 = vadd.f32 %v4389, %v4379
    %v4391 = vadd.f32 %v4390, %v4382
    %v4392 = vadd.f32 %v4391, %v4385
    %v4393 = vrot.slane %v4392, 4
    %v4394 = vadd.f32 %v4392, %v4393
    %v4395 = vrot.slane %v4394, 2
    %v4396 = vadd.f32 %v4394, %v4395
    %v4397 = vrot.slane %v4396, 1
    %v4398 = vadd.f32 %v4396, %v4397
    %v4399 = vsub.f32 %v4361, 512.0
    %v4400 = vmul.f32 %v4399, 0.5
    %v4401 = vrcp.pop 80.0
    %v4402 = vmul.f32 %v4398, %v4401
    %v4403 = vmul.f32 %v4400, %v4401
    %v4404 = vadd.f32 %v4402, %v4403
    %vm4405 = vcmask 7168
    %v4406 = vsel %vm4405, %v4404, %v4402
    %vm4407 = vcmask 15360
    %v4408 = vsel %vm4407, %v4406, %v4403
    %vm4409 = vcmask 16384
    %4410 = vst.msk [vmem:[#allocation9] sm:$0x1] %vm4409, %v4408
    // Predicated region
    $region18: #{tpu_custom_call.1} parent=1 // pred_check
      _
    $region19: #{tpu_custom_call.1} parent=1 // pred_check_branch
      %4412 = sbr.rel (0) target = $region21
    $region20: #{tpu_custom_call.1} parent=1 // pred_region
      %s4414 = ssub.s32 16, 16
      %4415 = vsyncadd [#allocation8], %s4414
      %s4417 = sshll.u32 [#allocation9], 4
      %s4418 = int_to_ptr.vmem [resolvable:$true] %s4417
      %4420 = dma.vmem_to_hbm [thread:$0]  %s4418, 16, %s3, [#allocation8]
    $region21: #{tpu_custom_call.1} parent=1 // pred_fallthru
      _
    // Predicated region
    $region22: #{tpu_custom_call.1} parent=1 // pred_check
      _
    $region23: #{tpu_custom_call.1} parent=1 // pred_check_branch
      %4422 = sbr.rel (0) target = $region25
    $region24: #{tpu_custom_call.1} parent=1 // pred_region
      %4423 = dma.done [#allocation8], 16
    $region25: #{tpu_custom_call.1} parent=1 // pred_fallthru
      _
    %4424 = vsyncpa [#allocation7], 1
    %4425 = vsyncpa [#allocation8], 1

</llo_original>
